<compile_context>
chip_gen: v7x
topology: tpu7x:2x2x1
jax: 0.10.0
libtpu: 0.0.40
codegen_flags: <defaults>
</compile_context>

<pallas_src>
import functools

import jax
import jax.numpy as jnp
from jax import lax
from jax.experimental import pallas as pl
from jax.experimental.pallas import tpu as pltpu


def deepar_kernel(xall_ref, yn_ref,
                  wih0x_ref, avec_ref, cvec_ref,
                  wrec_ref, wih1_ref, b1_ref,
                  wmu_ref, bmu_ref, wsig_ref, bsig_ref,
                  mu_ref, sigma_ref, ypred_ref,
                  *, seq_len, horizon, n):
    N = n                                    # padded batch (multiple of 8)
    T = seq_len + horizon
    H = wih1_ref.shape[0]
    H4 = 4 * H
    f32 = jnp.float32
    bf16 = jnp.bfloat16

    # ---------------- one-time prologue (off the recurrence critical path) ---
    w_rec = wrec_ref[...]                    # (2H, 8H) bf16, blockdiag(whh0, whh1)
    wih1 = wih1_ref[...]                     # (H, 4H)  bf16
    a_vec = avec_ref[...]                    # (1, 4H)  = we @ W_ih0[embed rows]

    # Hoisted broadcasts (not CSE'd if left inside the loop).
    a_full = jnp.broadcast_to(a_vec, (N, H4))
    b1_full = jnp.broadcast_to(b1_ref[...], (N, H4))
    wmu_full = jnp.broadcast_to(wmu_ref[...], (N, H))
    wsig_full = jnp.broadcast_to(wsig_ref[...], (N, H))
    bmu_full = jnp.broadcast_to(bmu_ref[...], (N, 1))
    bsig_full = jnp.broadcast_to(bsig_ref[...], (N, 1))

    y_col = yn_ref[:, 0:1]                   # teacher y (zero beyond seq_len)
    noise_col = yn_ref[:, 1:2]               # N(0,1) samples

    # Layer-0 input pre-activation for ALL timesteps in one batched MXU matmul;
    # teacher-forcing y is folded in via the analytic embedding fold, and
    # cvec = be @ W_ih0_y + (b_ih0 + b_hh0).
    pre_all = (jnp.dot(xall_ref[...], wih0x_ref[...],
                       preferred_element_type=f32)
               + y_col * a_vec
               + cvec_ref[...])              # (T*N, 4H) f32

    def lstm_gates(g, c_prev):
        # Gate columns were permuted in the wrapper to (i, f, o, g):
        # one contiguous sigmoid over 3H lanes instead of three H-wide ones.
        sfo = jax.nn.sigmoid(g[:, :3 * H])
        i = sfo[:, 0 * H:1 * H]
        f = sfo[:, 1 * H:2 * H]
        o = sfo[:, 2 * H:3 * H]
        gg = jnp.tanh(g[:, 3 * H:4 * H])
        c = f * c_prev + i * gg
        h = o * jnp.tanh(c)
        return h, c

    def step(pre_s, h0, c0, h1, c1):
        # Single fused recurrent matmul for both layers.
        hcat = jnp.concatenate([h0, h1], axis=1).astype(bf16)      # (N, 2H)
        r = jnp.dot(hcat, w_rec, preferred_element_type=f32)       # (N, 8H)
        g0 = pre_s + r[:, :H4]
        h0n, c0n = lstm_gates(g0, c0)
        g1 = (jnp.dot(h0n.astype(bf16), wih1, preferred_element_type=f32)
              + r[:, H4:] + b1_full)
        h1n, c1n = lstm_gates(g1, c1)
        return h0n, c0n, h1n, c1n

    def softplus(x):
        return jnp.maximum(x, 0.0) + jnp.log(1.0 + jnp.exp(-jnp.abs(x)))

    def head(hs):
        # VPU multiply + lane reduction (no MXU round trip on the serial path).
        mu_t = jnp.sum(hs * wmu_full, axis=1, keepdims=True) + bmu_full
        sp_t = jnp.sum(hs * wsig_full, axis=1, keepdims=True) + bsig_full
        return mu_t, softplus(sp_t) + 1e-6

    h0 = jnp.zeros((N, H), f32)
    c0 = jnp.zeros((N, H), f32)
    h1 = jnp.zeros((N, H), f32)
    c1 = jnp.zeros((N, H), f32)

    # --- Phase A: teacher-forcing steps whose Gaussian sample is never used ---
    # Only the relu'd hidden state is kept; heads run batched after the loops.
    hs_list = []
    for s in range(seq_len - 1):
        pre_s = pre_all[s * N:(s + 1) * N, :]
        h0, c0, h1, c1 = step(pre_s, h0, c0, h1, c1)
        hs_list.append(jnp.maximum(h1, 0.0))

    # --- Phase B: steps whose sample feeds back autoregressively -------------
    mu_list, sigma_list, ys_list = [], [], []
    ynext = jnp.zeros((N, 1), f32)
    for s in range(seq_len - 1, T):
        pre_s = pre_all[s * N:(s + 1) * N, :]
        if s >= seq_len:
            pre_s = pre_s + ynext * a_full          # autoregressive feedback
        h0, c0, h1, c1 = step(pre_s, h0, c0, h1, c1)
        hs = jnp.maximum(h1, 0.0)
        mu_t, sigma_t = head(hs)
        mu_list.append(mu_t)
        sigma_list.append(sigma_t)
        if s < T - 1:
            # Sample only where it is consumed (last-step sample is dead).
            ynext = mu_t + sigma_t * noise_col[s * N:(s + 1) * N, :]
            ys_list.append(ynext)

    # --- Batched head over all teacher-forcing steps (off the critical path) -
    mu_cols_tf, sigma_cols_tf = [], []
    S = seq_len - 1
    if S > 0:
        hs_stack = jnp.concatenate(hs_list, axis=0)              # (S*N, H)
        wmu_stack = jnp.broadcast_to(wmu_ref[...], (S * N, H))
        wsig_stack = jnp.broadcast_to(wsig_ref[...], (S * N, H))
        bmu_stack = jnp.broadcast_to(bmu_ref[...], (S * N, 1))
        bsig_stack = jnp.broadcast_to(bsig_ref[...], (S * N, 1))
        mu_tf = jnp.sum(hs_stack * wmu_stack, axis=1, keepdims=True) + bmu_stack
        sp_tf = jnp.sum(hs_stack * wsig_stack, axis=1, keepdims=True) + bsig_stack
        sigma_tf = softplus(sp_tf) + 1e-6
        # Static sublane slices back to per-step (N, 1) columns (no transpose).
        mu_cols_tf = [mu_tf[s * N:(s + 1) * N, :] for s in range(S)]
        sigma_cols_tf = [sigma_tf[s * N:(s + 1) * N, :] for s in range(S)]

    # --- single concatenate per output + lane-dense final stores -------------
    mu_ref[...] = jnp.concatenate(mu_cols_tf + mu_list, axis=1)
    sigma_ref[...] = jnp.concatenate(sigma_cols_tf + sigma_list, axis=1)
    ypred_ref[...] = jnp.concatenate(ys_list, axis=1)


def deepar_forward(X, y, Xf, noise, params):
    """X: (N, seq_len, F), y: (N, seq_len), Xf: (N, horizon, F), noise: (N, T)."""
    N, seq_len, F = X.shape
    horizon = Xf.shape[1]
    T = seq_len + horizon
    (we, be, wih0, whh0, b0, wih1, whh1, b1, wmu, bmu, wsig, bsig) = params
    H = whh0.shape[0]

    # --- pad the batch to the f32 sublane tile (8) ---
    Np = -(-N // 8) * 8
    pad = Np - N
    Xp = jnp.pad(X, ((0, pad), (0, 0), (0, 0)))
    yp = jnp.pad(y, ((0, pad), (0, 0)))
    Xfp = jnp.pad(Xf, ((0, pad), (0, 0), (0, 0)))
    noisep = jnp.pad(noise, ((0, pad), (0, 0)))

    # Time-major, batch-flattened inputs.
    Xall = jnp.concatenate([Xp, Xfp], axis=1)                       # (Np, T, F)
    xall_tm = jnp.transpose(Xall, (1, 0, 2)).reshape(T * Np, F)     # (T*Np, F)
    ypad = jnp.concatenate([yp, jnp.zeros((Np, horizon), yp.dtype)], axis=1)
    ypad_tm = jnp.transpose(ypad).reshape(T * Np, 1)
    noise_tm = jnp.transpose(noisep).reshape(T * Np, 1)
    yn_tm = jnp.concatenate([ypad_tm, noise_tm], axis=1)            # (T*Np, 2)

    # --- one-time parameter folds / layout prep ---
    # Permute PyTorch gate order (i, f, g, o) -> (i, f, o, g) so the kernel can
    # apply one contiguous sigmoid over the first 3H gate columns.
    perm = jnp.concatenate([jnp.arange(0, 2 * H),
                            jnp.arange(3 * H, 4 * H),
                            jnp.arange(2 * H, 3 * H)])
    wih0p = wih0[:, perm]
    whh0p = whh0[:, perm]
    b0p = b0[:, perm]
    wih1p = wih1[:, perm]
    whh1p = whh1[:, perm]
    b1p = b1[:, perm]

    # Fold the Linear(1,E) input embedding into layer-0 gate pre-activations.
    wih0x = wih0p[:F, :].astype(jnp.bfloat16)        # x-feature rows   (F, 4H)
    wih0y = wih0p[F:, :]                             # embedding rows   (E, 4H)
    a_vec = jnp.dot(we, wih0y)                       # (1, 4H)
    c_vec = jnp.dot(be, wih0y) + b0p                 # (1, 4H)

    # Block-diagonal fused recurrent weight: [ [whh0, 0], [0, whh1] ]  (2H, 8H)
    Z = jnp.zeros((H, 4 * H), jnp.float32)
    w_rec = jnp.concatenate(
        [jnp.concatenate([whh0p, Z], axis=1),
         jnp.concatenate([Z, whh1p], axis=1)], axis=0).astype(jnp.bfloat16)

    wih1_bf = wih1p.astype(jnp.bfloat16)
    wmu_row = wmu.T                                  # (1, H)
    wsig_row = wsig.T                                # (1, H)

    kernel = functools.partial(deepar_kernel, seq_len=seq_len, horizon=horizon,
                               n=Np)
    vmem = pl.BlockSpec(memory_space=pltpu.MemorySpace.VMEM)
    mu_p, sigma_p, ypred_p = pl.pallas_call(
        kernel,
        out_shape=(
            jax.ShapeDtypeStruct((Np, T), jnp.float32),
            jax.ShapeDtypeStruct((Np, T), jnp.float32),
            jax.ShapeDtypeStruct((Np, horizon), jnp.float32),
        ),
        in_specs=[vmem] * 12,
        out_specs=(vmem, vmem, vmem),
        compiler_params=pltpu.CompilerParams(vmem_limit_bytes=32 * 1024 * 1024),
    )(xall_tm.astype(jnp.bfloat16), yn_tm,
      wih0x, a_vec, c_vec, w_rec, wih1_bf, b1p,
      wmu_row, bmu, wsig_row, bsig)

    return ypred_p[:N], mu_p[:N], sigma_p[:N]


def deepar_ref(X, y, Xf, noise, params, seq_len):
    """Pure-JAX reference of the same forward pass (for validation).

    Uses Precision.HIGHEST; the kernel uses bf16 MXU operands (TPU default),
    hence the 2e-2 tolerance below.
    """
    (we, be, wih0, whh0, b0, wih1, whh1, b1, wmu, bmu, wsig, bsig) = params
    N, _, F = X.shape
    horizon = Xf.shape[1]
    T = seq_len + horizon
    Xall = jnp.concatenate([X, Xf], axis=1)
    H = whh0.shape[0]
    P = lax.Precision.HIGHEST

    def cell(x_in, h_prev, c_prev, wihT, whhT, b):
        g = jnp.dot(x_in, wihT, precision=P) + jnp.dot(h_prev, whhT, precision=P) + b
        i = jax.nn.sigmoid(g[:, 0 * H:1 * H])
        f = jax.nn.sigmoid(g[:, 1 * H:2 * H])
        gg = jnp.tanh(g[:, 2 * H:3 * H])
        o = jax.nn.sigmoid(g[:, 3 * H:4 * H])
        c = f * c_prev + i * gg
        return o * jnp.tanh(c), c

    h0 = c0 = h1 = c1 = jnp.zeros((N, H), jnp.float32)
    ynext = jnp.zeros((N, 1), jnp.float32)
    mus, sigmas, ys = [], [], []
    for s in range(T):
        yin = y[:, s][:, None] if s < seq_len else ynext
        yembed = yin * we + be
        x_in = jnp.concatenate([Xall[:, s, :], yembed], axis=1)
        h0, c0 = cell(x_in, h0, c0, wih0, whh0, b0)
        h1, c1 = cell(h0, h1, c1, wih1, whh1, b1)
        hs = jnp.maximum(h1, 0.0)
        mu_t = jnp.dot(hs, wmu, precision=P) + bmu
        sp = jnp.dot(hs, wsig, precision=P) + bsig
        sigma_t = jnp.maximum(sp, 0.0) + jnp.log(1.0 + jnp.exp(-jnp.abs(sp))) + 1e-6
        ynext = mu_t + sigma_t * noise[:, s][:, None]
        mus.append(mu_t); sigmas.append(sigma_t); ys.append(ynext)
    mu = jnp.concatenate(mus, axis=1)
    sigma = jnp.concatenate(sigmas, axis=1)
    ypred = jnp.concatenate(ys[seq_len - 1:seq_len - 1 + horizon], axis=1)
    return ypred, mu, sigma


def init_params(key, input_size, embedding_size, hidden_size):
    E, H, F = embedding_size, hidden_size, input_size
    ks = jax.random.split(key, 12)
    s = 0.1
    we = s * jax.random.normal(ks[0], (1, E), jnp.float32)        # Linear(1, E).weight^T
    be = s * jax.random.normal(ks[1], (1, E), jnp.float32)
    wih0 = s * jax.random.normal(ks[2], (F + E, 4 * H), jnp.float32)   # W_ih_l0^T [x; embed]
    whh0 = s * jax.random.normal(ks[3], (H, 4 * H), jnp.float32)       # W_hh_l0^T
    b0 = s * jax.random.normal(ks[4], (1, 4 * H), jnp.float32)         # b_ih0 + b_hh0
    wih1 = s * jax.random.normal(ks[5], (H, 4 * H), jnp.float32)
    whh1 = s * jax.random.normal(ks[6], (H, 4 * H), jnp.float32)
    b1 = s * jax.random.normal(ks[7], (1, 4 * H), jnp.float32)
    wmu = s * jax.random.normal(ks[8], (H, 1), jnp.float32)
    bmu = s * jax.random.normal(ks[9], (1, 1), jnp.float32)
    wsig = s * jax.random.normal(ks[10], (H, 1), jnp.float32)
    bsig = s * jax.random.normal(ks[11], (1, 1), jnp.float32)
    return [we, be, wih0, whh0, b0, wih1, whh1, b1, wmu, bmu, wsig, bsig]


if __name__ == "__main__":
    # Small config consistent with DeepAR(input_size=4, embedding_size=8,
    # hidden_size=32, num_layers=2, likelihood='g').
    num_ts, seq_len, horizon = 2, 8, 4
    input_size, embedding_size, hidden_size = 4, 8, 32
    T = seq_len + horizon

    root = jax.random.PRNGKey(0)
    kx, ky, kxf, kn, kp = jax.random.split(root, 5)
    X = jax.random.normal(kx, (num_ts, seq_len, input_size), jnp.float32)
    y = jax.random.normal(ky, (num_ts, seq_len), jnp.float32)
    Xf = jax.random.normal(kxf, (num_ts, horizon, input_size), jnp.float32)
    noise = jax.random.normal(kn, (num_ts, T), jnp.float32)   # N(0,1) for Gaussian samples
    params = init_params(kp, input_size, embedding_size, hidden_size)

    ypred, mu, sigma = deepar_forward(X, y, Xf, noise, params)
    jax.block_until_ready((ypred, mu, sigma))

    # Validate against a pure-JAX reference of the same recurrence.
    ypred_r, mu_r, sigma_r = deepar_ref(X, y, Xf, noise, params, seq_len)
    assert ypred.shape == (num_ts, horizon)
    assert mu.shape == (num_ts, T) and sigma.shape == (num_ts, T)
    assert jnp.allclose(mu, mu_r, rtol=2e-2, atol=2e-2)
    assert jnp.allclose(sigma, sigma_r, rtol=2e-2, atol=2e-2)
    assert jnp.allclose(ypred, ypred_r, rtol=2e-2, atol=2e-2)

    print("KERNEL_OK")
</pallas_src>

<mosaic_0001>
module attributes {stable_mosaic.version = 11 : i64} {
  func.func @deepar_kernel(%arg0: memref<96x4xbf16, #tpu.memory_space<vmem>>, %arg1: memref<96x2xf32, #tpu.memory_space<vmem>>, %arg2: memref<4x128xbf16, #tpu.memory_space<vmem>>, %arg3: memref<1x128xf32, #tpu.memory_space<vmem>>, %arg4: memref<1x128xf32, #tpu.memory_space<vmem>>, %arg5: memref<64x256xbf16, #tpu.memory_space<vmem>>, %arg6: memref<32x128xbf16, #tpu.memory_space<vmem>>, %arg7: memref<1x128xf32, #tpu.memory_space<vmem>>, %arg8: memref<1x32xf32, #tpu.memory_space<vmem>>, %arg9: memref<1x1xf32, #tpu.memory_space<vmem>>, %arg10: memref<1x32xf32, #tpu.memory_space<vmem>>, %arg11: memref<1x1xf32, #tpu.memory_space<vmem>>, %arg12: memref<8x12xf32, #tpu.memory_space<vmem>>, %arg13: memref<8x12xf32, #tpu.memory_space<vmem>>, %arg14: memref<8x4xf32, #tpu.memory_space<vmem>>) attributes {dimension_semantics = [], scalar_prefetch = 0 : i64, scratch_operands = 0 : i64, tpu.core_type = #tpu.core_type<tc>} {
    %c0 = arith.constant 0 : index
    %c0_0 = arith.constant 0 : index
    %0 = vector.load %arg5[%c0, %c0_0] : memref<64x256xbf16, #tpu.memory_space<vmem>>, vector<64x256xbf16>
    %c0_1 = arith.constant 0 : index
    %c0_2 = arith.constant 0 : index
    %1 = vector.load %arg6[%c0_1, %c0_2] : memref<32x128xbf16, #tpu.memory_space<vmem>>, vector<32x128xbf16>
    %c0_3 = arith.constant 0 : index
    %c0_4 = arith.constant 0 : index
    %2 = vector.load %arg3[%c0_3, %c0_4] : memref<1x128xf32, #tpu.memory_space<vmem>>, vector<1x128xf32>
    %3 = vector.shape_cast %2 : vector<1x128xf32> to vector<1x128xf32>
    %4 = vector.broadcast %3 : vector<1x128xf32> to vector<8x128xf32>
    %c0_5 = arith.constant 0 : index
    %c0_6 = arith.constant 0 : index
    %5 = vector.load %arg7[%c0_5, %c0_6] : memref<1x128xf32, #tpu.memory_space<vmem>>, vector<1x128xf32>
    %6 = vector.shape_cast %5 : vector<1x128xf32> to vector<1x128xf32>
    %7 = vector.broadcast %6 : vector<1x128xf32> to vector<8x128xf32>
    %c0_7 = arith.constant 0 : index
    %c0_8 = arith.constant 0 : index
    %8 = vector.load %arg8[%c0_7, %c0_8] : memref<1x32xf32, #tpu.memory_space<vmem>>, vector<1x32xf32>
    %9 = vector.shape_cast %8 : vector<1x32xf32> to vector<1x32xf32>
    %10 = vector.broadcast %9 : vector<1x32xf32> to vector<8x32xf32>
    %c0_9 = arith.constant 0 : index
    %c0_10 = arith.constant 0 : index
    %11 = vector.load %arg10[%c0_9, %c0_10] : memref<1x32xf32, #tpu.memory_space<vmem>>, vector<1x32xf32>
    %12 = vector.shape_cast %11 : vector<1x32xf32> to vector<1x32xf32>
    %13 = vector.broadcast %12 : vector<1x32xf32> to vector<8x32xf32>
    %c0_11 = arith.constant 0 : index
    %c0_12 = arith.constant 0 : index
    %14 = vector.load %arg9[%c0_11, %c0_12] : memref<1x1xf32, #tpu.memory_space<vmem>>, vector<1x1xf32>
    %15 = vector.shape_cast %14 : vector<1x1xf32> to vector<1x1xf32>
    %16 = vector.broadcast %15 : vector<1x1xf32> to vector<8x1xf32>
    %c0_13 = arith.constant 0 : index
    %c0_14 = arith.constant 0 : index
    %17 = vector.load %arg11[%c0_13, %c0_14] : memref<1x1xf32, #tpu.memory_space<vmem>>, vector<1x1xf32>
    %18 = vector.shape_cast %17 : vector<1x1xf32> to vector<1x1xf32>
    %19 = vector.broadcast %18 : vector<1x1xf32> to vector<8x1xf32>
    %c0_15 = arith.constant 0 : index
    %c0_16 = arith.constant 0 : index
    %20 = vector.load %arg1[%c0_15, %c0_16] : memref<96x2xf32, #tpu.memory_space<vmem>>, vector<96x1xf32>
    %c0_17 = arith.constant 0 : index
    %c1 = arith.constant 1 : index
    %21 = vector.load %arg1[%c0_17, %c1] : memref<96x2xf32, #tpu.memory_space<vmem>>, vector<96x1xf32>
    %c0_18 = arith.constant 0 : index
    %c0_19 = arith.constant 0 : index
    %22 = vector.load %arg0[%c0_18, %c0_19] : memref<96x4xbf16, #tpu.memory_space<vmem>>, vector<96x4xbf16>
    %c0_20 = arith.constant 0 : index
    %c0_21 = arith.constant 0 : index
    %23 = vector.load %arg2[%c0_20, %c0_21] : memref<4x128xbf16, #tpu.memory_space<vmem>>, vector<4x128xbf16>
    %cst = arith.constant dense<0.000000e+00> : vector<96x128xf32>
    %24 = tpu.matmul %22, %23, %cst {dimension_numbers = #tpu.dot_dimension_numbers<[1], [0], [0], [1], [0, 0, 1, 1], [], []>} : vector<96x4xbf16>, vector<4x128xbf16>, vector<96x128xf32> -> vector<96x128xf32>
    %25 = vector.broadcast %20 : vector<96x1xf32> to vector<96x128xf32>
    %26 = vector.broadcast %2 : vector<1x128xf32> to vector<96x128xf32>
    %27 = arith.mulf %25, %26 : vector<96x128xf32>
    %28 = arith.addf %24, %27 : vector<96x128xf32>
    %c0_22 = arith.constant 0 : index
    %c0_23 = arith.constant 0 : index
    %29 = vector.load %arg4[%c0_22, %c0_23] : memref<1x128xf32, #tpu.memory_space<vmem>>, vector<1x128xf32>
    %30 = vector.broadcast %29 : vector<1x128xf32> to vector<96x128xf32>
    %31 = arith.addf %28, %30 : vector<96x128xf32>
    %cst_24 = arith.constant 0.000000e+00 : f32
    %32 = vector.broadcast %cst_24 : f32 to vector<8x32xf32>
    %cst_25 = arith.constant 0.000000e+00 : f32
    %33 = vector.broadcast %cst_25 : f32 to vector<8x32xf32>
    %cst_26 = arith.constant 0.000000e+00 : f32
    %34 = vector.broadcast %cst_26 : f32 to vector<8x32xf32>
    %cst_27 = arith.constant 0.000000e+00 : f32
    %35 = vector.broadcast %cst_27 : f32 to vector<8x32xf32>
    %36 = vector.extract_strided_slice %31 {offsets = [0, 0], sizes = [8, 128], strides = [1, 1]} : vector<96x128xf32> to vector<8x128xf32>
    %37 = tpu.concatenate %32, %34 in 1 : vector<8x32xf32>, vector<8x32xf32> -> vector<8x64xf32>
    %38 = arith.truncf %37 : vector<8x64xf32> to vector<8x64xbf16>
    %cst_28 = arith.constant dense<0.000000e+00> : vector<8x256xf32>
    %39 = tpu.matmul %38, %0, %cst_28 {dimension_numbers = #tpu.dot_dimension_numbers<[1], [0], [0], [1], [0, 0, 1, 1], [], []>} : vector<8x64xbf16>, vector<64x256xbf16>, vector<8x256xf32> -> vector<8x256xf32>
    %40 = vector.extract_strided_slice %39 {offsets = [0, 0], sizes = [8, 128], strides = [1, 1]} : vector<8x256xf32> to vector<8x128xf32>
    %41 = arith.addf %36, %40 : vector<8x128xf32>
    %42 = vector.extract_strided_slice %41 {offsets = [0, 0], sizes = [8, 96], strides = [1, 1]} : vector<8x128xf32> to vector<8x96xf32>
    %43 = arith.negf %42 : vector<8x96xf32>
    %44 = math.exp %43 : vector<8x96xf32>
    %cst_29 = arith.constant 1.000000e+00 : f32
    %45 = vector.broadcast %cst_29 : f32 to vector<8x96xf32>
    %46 = arith.addf %45, %44 : vector<8x96xf32>
    %47 = arith.divf %45, %46 : vector<8x96xf32>
    %48 = vector.extract_strided_slice %47 {offsets = [0, 0], sizes = [8, 32], strides = [1, 1]} : vector<8x96xf32> to vector<8x32xf32>
    %49 = vector.extract_strided_slice %47 {offsets = [0, 32], sizes = [8, 32], strides = [1, 1]} : vector<8x96xf32> to vector<8x32xf32>
    %50 = vector.extract_strided_slice %47 {offsets = [0, 64], sizes = [8, 32], strides = [1, 1]} : vector<8x96xf32> to vector<8x32xf32>
    %51 = vector.extract_strided_slice %41 {offsets = [0, 96], sizes = [8, 32], strides = [1, 1]} : vector<8x128xf32> to vector<8x32xf32>
    %52 = math.tanh %51 : vector<8x32xf32>
    %53 = arith.mulf %49, %33 : vector<8x32xf32>
    %54 = arith.mulf %48, %52 : vector<8x32xf32>
    %55 = arith.addf %53, %54 : vector<8x32xf32>
    %56 = math.tanh %55 : vector<8x32xf32>
    %57 = arith.mulf %50, %56 : vector<8x32xf32>
    %58 = arith.truncf %57 : vector<8x32xf32> to vector<8x32xbf16>
    %cst_30 = arith.constant dense<0.000000e+00> : vector<8x128xf32>
    %59 = tpu.matmul %58, %1, %cst_30 {dimension_numbers = #tpu.dot_dimension_numbers<[1], [0], [0], [1], [0, 0, 1, 1], [], []>} : vector<8x32xbf16>, vector<32x128xbf16>, vector<8x128xf32> -> vector<8x128xf32>
    %60 = vector.extract_strided_slice %39 {offsets = [0, 128], sizes = [8, 128], strides = [1, 1]} : vector<8x256xf32> to vector<8x128xf32>
    %61 = arith.addf %59, %60 : vector<8x128xf32>
    %62 = arith.addf %61, %7 : vector<8x128xf32>
    %63 = vector.extract_strided_slice %62 {offsets = [0, 0], sizes = [8, 96], strides = [1, 1]} : vector<8x128xf32> to vector<8x96xf32>
    %64 = arith.negf %63 : vector<8x96xf32>
    %65 = math.exp %64 : vector<8x96xf32>
    %cst_31 = arith.constant 1.000000e+00 : f32
    %66 = vector.broadcast %cst_31 : f32 to vector<8x96xf32>
    %67 = arith.addf %66, %65 : vector<8x96xf32>
    %68 = arith.divf %66, %67 : vector<8x96xf32>
    %69 = vector.extract_strided_slice %68 {offsets = [0, 0], sizes = [8, 32], strides = [1, 1]} : vector<8x96xf32> to vector<8x32xf32>
    %70 = vector.extract_strided_slice %68 {offsets = [0, 32], sizes = [8, 32], strides = [1, 1]} : vector<8x96xf32> to vector<8x32xf32>
    %71 = vector.extract_strided_slice %68 {offsets = [0, 64], sizes = [8, 32], strides = [1, 1]} : vector<8x96xf32> to vector<8x32xf32>
    %72 = vector.extract_strided_slice %62 {offsets = [0, 96], sizes = [8, 32], strides = [1, 1]} : vector<8x128xf32> to vector<8x32xf32>
    %73 = math.tanh %72 : vector<8x32xf32>
    %74 = arith.mulf %70, %35 : vector<8x32xf32>
    %75 = arith.mulf %69, %73 : vector<8x32xf32>
    %76 = arith.addf %74, %75 : vector<8x32xf32>
    %77 = math.tanh %76 : vector<8x32xf32>
    %78 = arith.mulf %71, %77 : vector<8x32xf32>
    %cst_32 = arith.constant 0.000000e+00 : f32
    %79 = vector.broadcast %cst_32 : f32 to vector<8x32xf32>
    %80 = arith.maximumf %78, %79 : vector<8x32xf32>
    %81 = vector.extract_strided_slice %31 {offsets = [8, 0], sizes = [8, 128], strides = [1, 1]} : vector<96x128xf32> to vector<8x128xf32>
    %82 = tpu.concatenate %57, %78 in 1 : vector<8x32xf32>, vector<8x32xf32> -> vector<8x64xf32>
    %83 = arith.truncf %82 : vector<8x64xf32> to vector<8x64xbf16>
    %cst_33 = arith.constant dense<0.000000e+00> : vector<8x256xf32>
    %84 = tpu.matmul %83, %0, %cst_33 {dimension_numbers = #tpu.dot_dimension_numbers<[1], [0], [0], [1], [0, 0, 1, 1], [], []>} : vector<8x64xbf16>, vector<64x256xbf16>, vector<8x256xf32> -> vector<8x256xf32>
    %85 = vector.extract_strided_slice %84 {offsets = [0, 0], sizes = [8, 128], strides = [1, 1]} : vector<8x256xf32> to vector<8x128xf32>
    %86 = arith.addf %81, %85 : vector<8x128xf32>
    %87 = vector.extract_strided_slice %86 {offsets = [0, 0], sizes = [8, 96], strides = [1, 1]} : vector<8x128xf32> to vector<8x96xf32>
    %88 = arith.negf %87 : vector<8x96xf32>
    %89 = math.exp %88 : vector<8x96xf32>
    %cst_34 = arith.constant 1.000000e+00 : f32
    %90 = vector.broadcast %cst_34 : f32 to vector<8x96xf32>
    %91 = arith.addf %90, %89 : vector<8x96xf32>
    %92 = arith.divf %90, %91 : vector<8x96xf32>
    %93 = vector.extract_strided_slice %92 {offsets = [0, 0], sizes = [8, 32], strides = [1, 1]} : vector<8x96xf32> to vector<8x32xf32>
    %94 = vector.extract_strided_slice %92 {offsets = [0, 32], sizes = [8, 32], strides = [1, 1]} : vector<8x96xf32> to vector<8x32xf32>
    %95 = vector.extract_strided_slice %92 {offsets = [0, 64], sizes = [8, 32], strides = [1, 1]} : vector<8x96xf32> to vector<8x32xf32>
    %96 = vector.extract_strided_slice %86 {offsets = [0, 96], sizes = [8, 32], strides = [1, 1]} : vector<8x128xf32> to vector<8x32xf32>
    %97 = math.tanh %96 : vector<8x32xf32>
    %98 = arith.mulf %94, %55 : vector<8x32xf32>
    %99 = arith.mulf %93, %97 : vector<8x32xf32>
    %100 = arith.addf %98, %99 : vector<8x32xf32>
    %101 = math.tanh %100 : vector<8x32xf32>
    %102 = arith.mulf %95, %101 : vector<8x32xf32>
    %103 = arith.truncf %102 : vector<8x32xf32> to vector<8x32xbf16>
    %cst_35 = arith.constant dense<0.000000e+00> : vector<8x128xf32>
    %104 = tpu.matmul %103, %1, %cst_35 {dimension_numbers = #tpu.dot_dimension_numbers<[1], [0], [0], [1], [0, 0, 1, 1], [], []>} : vector<8x32xbf16>, vector<32x128xbf16>, vector<8x128xf32> -> vector<8x128xf32>
    %105 = vector.extract_strided_slice %84 {offsets = [0, 128], sizes = [8, 128], strides = [1, 1]} : vector<8x256xf32> to vector<8x128xf32>
    %106 = arith.addf %104, %105 : vector<8x128xf32>
    %107 = arith.addf %106, %7 : vector<8x128xf32>
    %108 = vector.extract_strided_slice %107 {offsets = [0, 0], sizes = [8, 96], strides = [1, 1]} : vector<8x128xf32> to vector<8x96xf32>
    %109 = arith.negf %108 : vector<8x96xf32>
    %110 = math.exp %109 : vector<8x96xf32>
    %cst_36 = arith.constant 1.000000e+00 : f32
    %111 = vector.broadcast %cst_36 : f32 to vector<8x96xf32>
    %112 = arith.addf %111, %110 : vector<8x96xf32>
    %113 = arith.divf %111, %112 : vector<8x96xf32>
    %114 = vector.extract_strided_slice %113 {offsets = [0, 0], sizes = [8, 32], strides = [1, 1]} : vector<8x96xf32> to vector<8x32xf32>
    %115 = vector.extract_strided_slice %113 {offsets = [0, 32], sizes = [8, 32], strides = [1, 1]} : vector<8x96xf32> to vector<8x32xf32>
    %116 = vector.extract_strided_slice %113 {offsets = [0, 64], sizes = [8, 32], strides = [1, 1]} : vector<8x96xf32> to vector<8x32xf32>
    %117 = vector.extract_strided_slice %107 {offsets = [0, 96], sizes = [8, 32], strides = [1, 1]} : vector<8x128xf32> to vector<8x32xf32>
    %118 = math.tanh %117 : vector<8x32xf32>
    %119 = arith.mulf %115, %76 : vector<8x32xf32>
    %120 = arith.mulf %114, %118 : vector<8x32xf32>
    %121 = arith.addf %119, %120 : vector<8x32xf32>
    %122 = math.tanh %121 : vector<8x32xf32>
    %123 = arith.mulf %116, %122 : vector<8x32xf32>
    %cst_37 = arith.constant 0.000000e+00 : f32
    %124 = vector.broadcast %cst_37 : f32 to vector<8x32xf32>
    %125 = arith.maximumf %123, %124 : vector<8x32xf32>
    %126 = vector.extract_strided_slice %31 {offsets = [16, 0], sizes = [8, 128], strides = [1, 1]} : vector<96x128xf32> to vector<8x128xf32>
    %127 = tpu.concatenate %102, %123 in 1 : vector<8x32xf32>, vector<8x32xf32> -> vector<8x64xf32>
    %128 = arith.truncf %127 : vector<8x64xf32> to vector<8x64xbf16>
    %cst_38 = arith.constant dense<0.000000e+00> : vector<8x256xf32>
    %129 = tpu.matmul %128, %0, %cst_38 {dimension_numbers = #tpu.dot_dimension_numbers<[1], [0], [0], [1], [0, 0, 1, 1], [], []>} : vector<8x64xbf16>, vector<64x256xbf16>, vector<8x256xf32> -> vector<8x256xf32>
    %130 = vector.extract_strided_slice %129 {offsets = [0, 0], sizes = [8, 128], strides = [1, 1]} : vector<8x256xf32> to vector<8x128xf32>
    %131 = arith.addf %126, %130 : vector<8x128xf32>
    %132 = vector.extract_strided_slice %131 {offsets = [0, 0], sizes = [8, 96], strides = [1, 1]} : vector<8x128xf32> to vector<8x96xf32>
    %133 = arith.negf %132 : vector<8x96xf32>
    %134 = math.exp %133 : vector<8x96xf32>
    %cst_39 = arith.constant 1.000000e+00 : f32
    %135 = vector.broadcast %cst_39 : f32 to vector<8x96xf32>
    %136 = arith.addf %135, %134 : vector<8x96xf32>
    %137 = arith.divf %135, %136 : vector<8x96xf32>
    %138 = vector.extract_strided_slice %137 {offsets = [0, 0], sizes = [8, 32], strides = [1, 1]} : vector<8x96xf32> to vector<8x32xf32>
    %139 = vector.extract_strided_slice %137 {offsets = [0, 32], sizes = [8, 32], strides = [1, 1]} : vector<8x96xf32> to vector<8x32xf32>
    %140 = vector.extract_strided_slice %137 {offsets = [0, 64], sizes = [8, 32], strides = [1, 1]} : vector<8x96xf32> to vector<8x32xf32>
    %141 = vector.extract_strided_slice %131 {offsets = [0, 96], sizes = [8, 32], strides = [1, 1]} : vector<8x128xf32> to vector<8x32xf32>
    %142 = math.tanh %141 : vector<8x32xf32>
    %143 = arith.mulf %139, %100 : vector<8x32xf32>
    %144 = arith.mulf %138, %142 : vector<8x32xf32>
    %145 = arith.addf %143, %144 : vector<8x32xf32>
    %146 = math.tanh %145 : vector<8x32xf32>
    %147 = arith.mulf %140, %146 : vector<8x32xf32>
    %148 = arith.truncf %147 : vector<8x32xf32> to vector<8x32xbf16>
    %cst_40 = arith.constant dense<0.000000e+00> : vector<8x128xf32>
    %149 = tpu.matmul %148, %1, %cst_40 {dimension_numbers = #tpu.dot_dimension_numbers<[1], [0], [0], [1], [0, 0, 1, 1], [], []>} : vector<8x32xbf16>, vector<32x128xbf16>, vector<8x128xf32> -> vector<8x128xf32>
    %150 = vector.extract_strided_slice %129 {offsets = [0, 128], sizes = [8, 128], strides = [1, 1]} : vector<8x256xf32> to vector<8x128xf32>
    %151 = arith.addf %149, %150 : vector<8x128xf32>
    %152 = arith.addf %151, %7 : vector<8x128xf32>
    %153 = vector.extract_strided_slice %152 {offsets = [0, 0], sizes = [8, 96], strides = [1, 1]} : vector<8x128xf32> to vector<8x96xf32>
    %154 = arith.negf %153 : vector<8x96xf32>
    %155 = math.exp %154 : vector<8x96xf32>
    %cst_41 = arith.constant 1.000000e+00 : f32
    %156 = vector.broadcast %cst_41 : f32 to vector<8x96xf32>
    %157 = arith.addf %156, %155 : vector<8x96xf32>
    %158 = arith.divf %156, %157 : vector<8x96xf32>
    %159 = vector.extract_strided_slice %158 {offsets = [0, 0], sizes = [8, 32], strides = [1, 1]} : vector<8x96xf32> to vector<8x32xf32>
    %160 = vector.extract_strided_slice %158 {offsets = [0, 32], sizes = [8, 32], strides = [1, 1]} : vector<8x96xf32> to vector<8x32xf32>
    %161 = vector.extract_strided_slice %158 {offsets = [0, 64], sizes = [8, 32], strides = [1, 1]} : vector<8x96xf32> to vector<8x32xf32>
    %162 = vector.extract_strided_slice %152 {offsets = [0, 96], sizes = [8, 32], strides = [1, 1]} : vector<8x128xf32> to vector<8x32xf32>
    %163 = math.tanh %162 : vector<8x32xf32>
    %164 = arith.mulf %160, %121 : vector<8x32xf32>
    %165 = arith.mulf %159, %163 : vector<8x32xf32>
    %166 = arith.addf %164, %165 : vector<8x32xf32>
    %167 = math.tanh %166 : vector<8x32xf32>
    %168 = arith.mulf %161, %167 : vector<8x32xf32>
    %cst_42 = arith.constant 0.000000e+00 : f32
    %169 = vector.broadcast %cst_42 : f32 to vector<8x32xf32>
    %170 = arith.maximumf %168, %169 : vector<8x32xf32>
    %171 = vector.extract_strided_slice %31 {offsets = [24, 0], sizes = [8, 128], strides = [1, 1]} : vector<96x128xf32> to vector<8x128xf32>
    %172 = tpu.concatenate %147, %168 in 1 : vector<8x32xf32>, vector<8x32xf32> -> vector<8x64xf32>
    %173 = arith.truncf %172 : vector<8x64xf32> to vector<8x64xbf16>
    %cst_43 = arith.constant dense<0.000000e+00> : vector<8x256xf32>
    %174 = tpu.matmul %173, %0, %cst_43 {dimension_numbers = #tpu.dot_dimension_numbers<[1], [0], [0], [1], [0, 0, 1, 1], [], []>} : vector<8x64xbf16>, vector<64x256xbf16>, vector<8x256xf32> -> vector<8x256xf32>
    %175 = vector.extract_strided_slice %174 {offsets = [0, 0], sizes = [8, 128], strides = [1, 1]} : vector<8x256xf32> to vector<8x128xf32>
    %176 = arith.addf %171, %175 : vector<8x128xf32>
    %177 = vector.extract_strided_slice %176 {offsets = [0, 0], sizes = [8, 96], strides = [1, 1]} : vector<8x128xf32> to vector<8x96xf32>
    %178 = arith.negf %177 : vector<8x96xf32>
    %179 = math.exp %178 : vector<8x96xf32>
    %cst_44 = arith.constant 1.000000e+00 : f32
    %180 = vector.broadcast %cst_44 : f32 to vector<8x96xf32>
    %181 = arith.addf %180, %179 : vector<8x96xf32>
    %182 = arith.divf %180, %181 : vector<8x96xf32>
    %183 = vector.extract_strided_slice %182 {offsets = [0, 0], sizes = [8, 32], strides = [1, 1]} : vector<8x96xf32> to vector<8x32xf32>
    %184 = vector.extract_strided_slice %182 {offsets = [0, 32], sizes = [8, 32], strides = [1, 1]} : vector<8x96xf32> to vector<8x32xf32>
    %185 = vector.extract_strided_slice %182 {offsets = [0, 64], sizes = [8, 32], strides = [1, 1]} : vector<8x96xf32> to vector<8x32xf32>
    %186 = vector.extract_strided_slice %176 {offsets = [0, 96], sizes = [8, 32], strides = [1, 1]} : vector<8x128xf32> to vector<8x32xf32>
    %187 = math.tanh %186 : vector<8x32xf32>
    %188 = arith.mulf %184, %145 : vector<8x32xf32>
    %189 = arith.mulf %183, %187 : vector<8x32xf32>
    %190 = arith.addf %188, %189 : vector<8x32xf32>
    %191 = math.tanh %190 : vector<8x32xf32>
    %192 = arith.mulf %185, %191 : vector<8x32xf32>
    %193 = arith.truncf %192 : vector<8x32xf32> to vector<8x32xbf16>
    %cst_45 = arith.constant dense<0.000000e+00> : vector<8x128xf32>
    %194 = tpu.matmul %193, %1, %cst_45 {dimension_numbers = #tpu.dot_dimension_numbers<[1], [0], [0], [1], [0, 0, 1, 1], [], []>} : vector<8x32xbf16>, vector<32x128xbf16>, vector<8x128xf32> -> vector<8x128xf32>
    %195 = vector.extract_strided_slice %174 {offsets = [0, 128], sizes = [8, 128], strides = [1, 1]} : vector<8x256xf32> to vector<8x128xf32>
    %196 = arith.addf %194, %195 : vector<8x128xf32>
    %197 = arith.addf %196, %7 : vector<8x128xf32>
    %198 = vector.extract_strided_slice %197 {offsets = [0, 0], sizes = [8, 96], strides = [1, 1]} : vector<8x128xf32> to vector<8x96xf32>
    %199 = arith.negf %198 : vector<8x96xf32>
    %200 = math.exp %199 : vector<8x96xf32>
    %cst_46 = arith.constant 1.000000e+00 : f32
    %201 = vector.broadcast %cst_46 : f32 to vector<8x96xf32>
    %202 = arith.addf %201, %200 : vector<8x96xf32>
    %203 = arith.divf %201, %202 : vector<8x96xf32>
    %204 = vector.extract_strided_slice %203 {offsets = [0, 0], sizes = [8, 32], strides = [1, 1]} : vector<8x96xf32> to vector<8x32xf32>
    %205 = vector.extract_strided_slice %203 {offsets = [0, 32], sizes = [8, 32], strides = [1, 1]} : vector<8x96xf32> to vector<8x32xf32>
    %206 = vector.extract_strided_slice %203 {offsets = [0, 64], sizes = [8, 32], strides = [1, 1]} : vector<8x96xf32> to vector<8x32xf32>
    %207 = vector.extract_strided_slice %197 {offsets = [0, 96], sizes = [8, 32], strides = [1, 1]} : vector<8x128xf32> to vector<8x32xf32>
    %208 = math.tanh %207 : vector<8x32xf32>
    %209 = arith.mulf %205, %166 : vector<8x32xf32>
    %210 = arith.mulf %204, %208 : vector<8x32xf32>
    %211 = arith.addf %209, %210 : vector<8x32xf32>
    %212 = math.tanh %211 : vector<8x32xf32>
    %213 = arith.mulf %206, %212 : vector<8x32xf32>
    %cst_47 = arith.constant 0.000000e+00 : f32
    %214 = vector.broadcast %cst_47 : f32 to vector<8x32xf32>
    %215 = arith.maximumf %213, %214 : vector<8x32xf32>
    %216 = vector.extract_strided_slice %31 {offsets = [32, 0], sizes = [8, 128], strides = [1, 1]} : vector<96x128xf32> to vector<8x128xf32>
    %217 = tpu.concatenate %192, %213 in 1 : vector<8x32xf32>, vector<8x32xf32> -> vector<8x64xf32>
    %218 = arith.truncf %217 : vector<8x64xf32> to vector<8x64xbf16>
    %cst_48 = arith.constant dense<0.000000e+00> : vector<8x256xf32>
    %219 = tpu.matmul %218, %0, %cst_48 {dimension_numbers = #tpu.dot_dimension_numbers<[1], [0], [0], [1], [0, 0, 1, 1], [], []>} : vector<8x64xbf16>, vector<64x256xbf16>, vector<8x256xf32> -> vector<8x256xf32>
    %220 = vector.extract_strided_slice %219 {offsets = [0, 0], sizes = [8, 128], strides = [1, 1]} : vector<8x256xf32> to vector<8x128xf32>
    %221 = arith.addf %216, %220 : vector<8x128xf32>
    %222 = vector.extract_strided_slice %221 {offsets = [0, 0], sizes = [8, 96], strides = [1, 1]} : vector<8x128xf32> to vector<8x96xf32>
    %223 = arith.negf %222 : vector<8x96xf32>
    %224 = math.exp %223 : vector<8x96xf32>
    %cst_49 = arith.constant 1.000000e+00 : f32
    %225 = vector.broadcast %cst_49 : f32 to vector<8x96xf32>
    %226 = arith.addf %225, %224 : vector<8x96xf32>
    %227 = arith.divf %225, %226 : vector<8x96xf32>
    %228 = vector.extract_strided_slice %227 {offsets = [0, 0], sizes = [8, 32], strides = [1, 1]} : vector<8x96xf32> to vector<8x32xf32>
    %229 = vector.extract_strided_slice %227 {offsets = [0, 32], sizes = [8, 32], strides = [1, 1]} : vector<8x96xf32> to vector<8x32xf32>
    %230 = vector.extract_strided_slice %227 {offsets = [0, 64], sizes = [8, 32], strides = [1, 1]} : vector<8x96xf32> to vector<8x32xf32>
    %231 = vector.extract_strided_slice %221 {offsets = [0, 96], sizes = [8, 32], strides = [1, 1]} : vector<8x128xf32> to vector<8x32xf32>
    %232 = math.tanh %231 : vector<8x32xf32>
    %233 = arith.mulf %229, %190 : vector<8x32xf32>
    %234 = arith.mulf %228, %232 : vector<8x32xf32>
    %235 = arith.addf %233, %234 : vector<8x32xf32>
    %236 = math.tanh %235 : vector<8x32xf32>
    %237 = arith.mulf %230, %236 : vector<8x32xf32>
    %238 = arith.truncf %237 : vector<8x32xf32> to vector<8x32xbf16>
    %cst_50 = arith.constant dense<0.000000e+00> : vector<8x128xf32>
    %239 = tpu.matmul %238, %1, %cst_50 {dimension_numbers = #tpu.dot_dimension_numbers<[1], [0], [0], [1], [0, 0, 1, 1], [], []>} : vector<8x32xbf16>, vector<32x128xbf16>, vector<8x128xf32> -> vector<8x128xf32>
    %240 = vector.extract_strided_slice %219 {offsets = [0, 128], sizes = [8, 128], strides = [1, 1]} : vector<8x256xf32> to vector<8x128xf32>
    %241 = arith.addf %239, %240 : vector<8x128xf32>
    %242 = arith.addf %241, %7 : vector<8x128xf32>
    %243 = vector.extract_strided_slice %242 {offsets = [0, 0], sizes = [8, 96], strides = [1, 1]} : vector<8x128xf32> to vector<8x96xf32>
    %244 = arith.negf %243 : vector<8x96xf32>
    %245 = math.exp %244 : vector<8x96xf32>
    %cst_51 = arith.constant 1.000000e+00 : f32
    %246 = vector.broadcast %cst_51 : f32 to vector<8x96xf32>
    %247 = arith.addf %246, %245 : vector<8x96xf32>
    %248 = arith.divf %246, %247 : vector<8x96xf32>
    %249 = vector.extract_strided_slice %248 {offsets = [0, 0], sizes = [8, 32], strides = [1, 1]} : vector<8x96xf32> to vector<8x32xf32>
    %250 = vector.extract_strided_slice %248 {offsets = [0, 32], sizes = [8, 32], strides = [1, 1]} : vector<8x96xf32> to vector<8x32xf32>
    %251 = vector.extract_strided_slice %248 {offsets = [0, 64], sizes = [8, 32], strides = [1, 1]} : vector<8x96xf32> to vector<8x32xf32>
    %252 = vector.extract_strided_slice %242 {offsets = [0, 96], sizes = [8, 32], strides = [1, 1]} : vector<8x128xf32> to vector<8x32xf32>
    %253 = math.tanh %252 : vector<8x32xf32>
    %254 = arith.mulf %250, %211 : vector<8x32xf32>
    %255 = arith.mulf %249, %253 : vector<8x32xf32>
    %256 = arith.addf %254, %255 : vector<8x32xf32>
    %257 = math.tanh %256 : vector<8x32xf32>
    %258 = arith.mulf %251, %257 : vector<8x32xf32>
    %cst_52 = arith.constant 0.000000e+00 : f32
    %259 = vector.broadcast %cst_52 : f32 to vector<8x32xf32>
    %260 = arith.maximumf %258, %259 : vector<8x32xf32>
    %261 = vector.extract_strided_slice %31 {offsets = [40, 0], sizes = [8, 128], strides = [1, 1]} : vector<96x128xf32> to vector<8x128xf32>
    %262 = tpu.concatenate %237, %258 in 1 : vector<8x32xf32>, vector<8x32xf32> -> vector<8x64xf32>
    %263 = arith.truncf %262 : vector<8x64xf32> to vector<8x64xbf16>
    %cst_53 = arith.constant dense<0.000000e+00> : vector<8x256xf32>
    %264 = tpu.matmul %263, %0, %cst_53 {dimension_numbers = #tpu.dot_dimension_numbers<[1], [0], [0], [1], [0, 0, 1, 1], [], []>} : vector<8x64xbf16>, vector<64x256xbf16>, vector<8x256xf32> -> vector<8x256xf32>
    %265 = vector.extract_strided_slice %264 {offsets = [0, 0], sizes = [8, 128], strides = [1, 1]} : vector<8x256xf32> to vector<8x128xf32>
    %266 = arith.addf %261, %265 : vector<8x128xf32>
    %267 = vector.extract_strided_slice %266 {offsets = [0, 0], sizes = [8, 96], strides = [1, 1]} : vector<8x128xf32> to vector<8x96xf32>
    %268 = arith.negf %267 : vector<8x96xf32>
    %269 = math.exp %268 : vector<8x96xf32>
    %cst_54 = arith.constant 1.000000e+00 : f32
    %270 = vector.broadcast %cst_54 : f32 to vector<8x96xf32>
    %271 = arith.addf %270, %269 : vector<8x96xf32>
    %272 = arith.divf %270, %271 : vector<8x96xf32>
    %273 = vector.extract_strided_slice %272 {offsets = [0, 0], sizes = [8, 32], strides = [1, 1]} : vector<8x96xf32> to vector<8x32xf32>
    %274 = vector.extract_strided_slice %272 {offsets = [0, 32], sizes = [8, 32], strides = [1, 1]} : vector<8x96xf32> to vector<8x32xf32>
    %275 = vector.extract_strided_slice %272 {offsets = [0, 64], sizes = [8, 32], strides = [1, 1]} : vector<8x96xf32> to vector<8x32xf32>
    %276 = vector.extract_strided_slice %266 {offsets = [0, 96], sizes = [8, 32], strides = [1, 1]} : vector<8x128xf32> to vector<8x32xf32>
    %277 = math.tanh %276 : vector<8x32xf32>
    %278 = arith.mulf %274, %235 : vector<8x32xf32>
    %279 = arith.mulf %273, %277 : vector<8x32xf32>
    %280 = arith.addf %278, %279 : vector<8x32xf32>
    %281 = math.tanh %280 : vector<8x32xf32>
    %282 = arith.mulf %275, %281 : vector<8x32xf32>
    %283 = arith.truncf %282 : vector<8x32xf32> to vector<8x32xbf16>
    %cst_55 = arith.constant dense<0.000000e+00> : vector<8x128xf32>
    %284 = tpu.matmul %283, %1, %cst_55 {dimension_numbers = #tpu.dot_dimension_numbers<[1], [0], [0], [1], [0, 0, 1, 1], [], []>} : vector<8x32xbf16>, vector<32x128xbf16>, vector<8x128xf32> -> vector<8x128xf32>
    %285 = vector.extract_strided_slice %264 {offsets = [0, 128], sizes = [8, 128], strides = [1, 1]} : vector<8x256xf32> to vector<8x128xf32>
    %286 = arith.addf %284, %285 : vector<8x128xf32>
    %287 = arith.addf %286, %7 : vector<8x128xf32>
    %288 = vector.extract_strided_slice %287 {offsets = [0, 0], sizes = [8, 96], strides = [1, 1]} : vector<8x128xf32> to vector<8x96xf32>
    %289 = arith.negf %288 : vector<8x96xf32>
    %290 = math.exp %289 : vector<8x96xf32>
    %cst_56 = arith.constant 1.000000e+00 : f32
    %291 = vector.broadcast %cst_56 : f32 to vector<8x96xf32>
    %292 = arith.addf %291, %290 : vector<8x96xf32>
    %293 = arith.divf %291, %292 : vector<8x96xf32>
    %294 = vector.extract_strided_slice %293 {offsets = [0, 0], sizes = [8, 32], strides = [1, 1]} : vector<8x96xf32> to vector<8x32xf32>
    %295 = vector.extract_strided_slice %293 {offsets = [0, 32], sizes = [8, 32], strides = [1, 1]} : vector<8x96xf32> to vector<8x32xf32>
    %296 = vector.extract_strided_slice %293 {offsets = [0, 64], sizes = [8, 32], strides = [1, 1]} : vector<8x96xf32> to vector<8x32xf32>
    %297 = vector.extract_strided_slice %287 {offsets = [0, 96], sizes = [8, 32], strides = [1, 1]} : vector<8x128xf32> to vector<8x32xf32>
    %298 = math.tanh %297 : vector<8x32xf32>
    %299 = arith.mulf %295, %256 : vector<8x32xf32>
    %300 = arith.mulf %294, %298 : vector<8x32xf32>
    %301 = arith.addf %299, %300 : vector<8x32xf32>
    %302 = math.tanh %301 : vector<8x32xf32>
    %303 = arith.mulf %296, %302 : vector<8x32xf32>
    %cst_57 = arith.constant 0.000000e+00 : f32
    %304 = vector.broadcast %cst_57 : f32 to vector<8x32xf32>
    %305 = arith.maximumf %303, %304 : vector<8x32xf32>
    %306 = vector.extract_strided_slice %31 {offsets = [48, 0], sizes = [8, 128], strides = [1, 1]} : vector<96x128xf32> to vector<8x128xf32>
    %307 = tpu.concatenate %282, %303 in 1 : vector<8x32xf32>, vector<8x32xf32> -> vector<8x64xf32>
    %308 = arith.truncf %307 : vector<8x64xf32> to vector<8x64xbf16>
    %cst_58 = arith.constant dense<0.000000e+00> : vector<8x256xf32>
    %309 = tpu.matmul %308, %0, %cst_58 {dimension_numbers = #tpu.dot_dimension_numbers<[1], [0], [0], [1], [0, 0, 1, 1], [], []>} : vector<8x64xbf16>, vector<64x256xbf16>, vector<8x256xf32> -> vector<8x256xf32>
    %310 = vector.extract_strided_slice %309 {offsets = [0, 0], sizes = [8, 128], strides = [1, 1]} : vector<8x256xf32> to vector<8x128xf32>
    %311 = arith.addf %306, %310 : vector<8x128xf32>
    %312 = vector.extract_strided_slice %311 {offsets = [0, 0], sizes = [8, 96], strides = [1, 1]} : vector<8x128xf32> to vector<8x96xf32>
    %313 = arith.negf %312 : vector<8x96xf32>
    %314 = math.exp %313 : vector<8x96xf32>
    %cst_59 = arith.constant 1.000000e+00 : f32
    %315 = vector.broadcast %cst_59 : f32 to vector<8x96xf32>
    %316 = arith.addf %315, %314 : vector<8x96xf32>
    %317 = arith.divf %315, %316 : vector<8x96xf32>
    %318 = vector.extract_strided_slice %317 {offsets = [0, 0], sizes = [8, 32], strides = [1, 1]} : vector<8x96xf32> to vector<8x32xf32>
    %319 = vector.extract_strided_slice %317 {offsets = [0, 32], sizes = [8, 32], strides = [1, 1]} : vector<8x96xf32> to vector<8x32xf32>
    %320 = vector.extract_strided_slice %317 {offsets = [0, 64], sizes = [8, 32], strides = [1, 1]} : vector<8x96xf32> to vector<8x32xf32>
    %321 = vector.extract_strided_slice %311 {offsets = [0, 96], sizes = [8, 32], strides = [1, 1]} : vector<8x128xf32> to vector<8x32xf32>
    %322 = math.tanh %321 : vector<8x32xf32>
    %323 = arith.mulf %319, %280 : vector<8x32xf32>
    %324 = arith.mulf %318, %322 : vector<8x32xf32>
    %325 = arith.addf %323, %324 : vector<8x32xf32>
    %326 = math.tanh %325 : vector<8x32xf32>
    %327 = arith.mulf %320, %326 : vector<8x32xf32>
    %328 = arith.truncf %327 : vector<8x32xf32> to vector<8x32xbf16>
    %cst_60 = arith.constant dense<0.000000e+00> : vector<8x128xf32>
    %329 = tpu.matmul %328, %1, %cst_60 {dimension_numbers = #tpu.dot_dimension_numbers<[1], [0], [0], [1], [0, 0, 1, 1], [], []>} : vector<8x32xbf16>, vector<32x128xbf16>, vector<8x128xf32> -> vector<8x128xf32>
    %330 = vector.extract_strided_slice %309 {offsets = [0, 128], sizes = [8, 128], strides = [1, 1]} : vector<8x256xf32> to vector<8x128xf32>
    %331 = arith.addf %329, %330 : vector<8x128xf32>
    %332 = arith.addf %331, %7 : vector<8x128xf32>
    %333 = vector.extract_strided_slice %332 {offsets = [0, 0], sizes = [8, 96], strides = [1, 1]} : vector<8x128xf32> to vector<8x96xf32>
    %334 = arith.negf %333 : vector<8x96xf32>
    %335 = math.exp %334 : vector<8x96xf32>
    %cst_61 = arith.constant 1.000000e+00 : f32
    %336 = vector.broadcast %cst_61 : f32 to vector<8x96xf32>
    %337 = arith.addf %336, %335 : vector<8x96xf32>
    %338 = arith.divf %336, %337 : vector<8x96xf32>
    %339 = vector.extract_strided_slice %338 {offsets = [0, 0], sizes = [8, 32], strides = [1, 1]} : vector<8x96xf32> to vector<8x32xf32>
    %340 = vector.extract_strided_slice %338 {offsets = [0, 32], sizes = [8, 32], strides = [1, 1]} : vector<8x96xf32> to vector<8x32xf32>
    %341 = vector.extract_strided_slice %338 {offsets = [0, 64], sizes = [8, 32], strides = [1, 1]} : vector<8x96xf32> to vector<8x32xf32>
    %342 = vector.extract_strided_slice %332 {offsets = [0, 96], sizes = [8, 32], strides = [1, 1]} : vector<8x128xf32> to vector<8x32xf32>
    %343 = math.tanh %342 : vector<8x32xf32>
    %344 = arith.mulf %340, %301 : vector<8x32xf32>
    %345 = arith.mulf %339, %343 : vector<8x32xf32>
    %346 = arith.addf %344, %345 : vector<8x32xf32>
    %347 = math.tanh %346 : vector<8x32xf32>
    %348 = arith.mulf %341, %347 : vector<8x32xf32>
    %cst_62 = arith.constant 0.000000e+00 : f32
    %349 = vector.broadcast %cst_62 : f32 to vector<8x32xf32>
    %350 = arith.maximumf %348, %349 : vector<8x32xf32>
    %351 = vector.extract_strided_slice %31 {offsets = [56, 0], sizes = [8, 128], strides = [1, 1]} : vector<96x128xf32> to vector<8x128xf32>
    %352 = tpu.concatenate %327, %348 in 1 : vector<8x32xf32>, vector<8x32xf32> -> vector<8x64xf32>
    %353 = arith.truncf %352 : vector<8x64xf32> to vector<8x64xbf16>
    %cst_63 = arith.constant dense<0.000000e+00> : vector<8x256xf32>
    %354 = tpu.matmul %353, %0, %cst_63 {dimension_numbers = #tpu.dot_dimension_numbers<[1], [0], [0], [1], [0, 0, 1, 1], [], []>} : vector<8x64xbf16>, vector<64x256xbf16>, vector<8x256xf32> -> vector<8x256xf32>
    %355 = vector.extract_strided_slice %354 {offsets = [0, 0], sizes = [8, 128], strides = [1, 1]} : vector<8x256xf32> to vector<8x128xf32>
    %356 = arith.addf %351, %355 : vector<8x128xf32>
    %357 = vector.extract_strided_slice %356 {offsets = [0, 0], sizes = [8, 96], strides = [1, 1]} : vector<8x128xf32> to vector<8x96xf32>
    %358 = arith.negf %357 : vector<8x96xf32>
    %359 = math.exp %358 : vector<8x96xf32>
    %cst_64 = arith.constant 1.000000e+00 : f32
    %360 = vector.broadcast %cst_64 : f32 to vector<8x96xf32>
    %361 = arith.addf %360, %359 : vector<8x96xf32>
    %362 = arith.divf %360, %361 : vector<8x96xf32>
    %363 = vector.extract_strided_slice %362 {offsets = [0, 0], sizes = [8, 32], strides = [1, 1]} : vector<8x96xf32> to vector<8x32xf32>
    %364 = vector.extract_strided_slice %362 {offsets = [0, 32], sizes = [8, 32], strides = [1, 1]} : vector<8x96xf32> to vector<8x32xf32>
    %365 = vector.extract_strided_slice %362 {offsets = [0, 64], sizes = [8, 32], strides = [1, 1]} : vector<8x96xf32> to vector<8x32xf32>
    %366 = vector.extract_strided_slice %356 {offsets = [0, 96], sizes = [8, 32], strides = [1, 1]} : vector<8x128xf32> to vector<8x32xf32>
    %367 = math.tanh %366 : vector<8x32xf32>
    %368 = arith.mulf %364, %325 : vector<8x32xf32>
    %369 = arith.mulf %363, %367 : vector<8x32xf32>
    %370 = arith.addf %368, %369 : vector<8x32xf32>
    %371 = math.tanh %370 : vector<8x32xf32>
    %372 = arith.mulf %365, %371 : vector<8x32xf32>
    %373 = arith.truncf %372 : vector<8x32xf32> to vector<8x32xbf16>
    %cst_65 = arith.constant dense<0.000000e+00> : vector<8x128xf32>
    %374 = tpu.matmul %373, %1, %cst_65 {dimension_numbers = #tpu.dot_dimension_numbers<[1], [0], [0], [1], [0, 0, 1, 1], [], []>} : vector<8x32xbf16>, vector<32x128xbf16>, vector<8x128xf32> -> vector<8x128xf32>
    %375 = vector.extract_strided_slice %354 {offsets = [0, 128], sizes = [8, 128], strides = [1, 1]} : vector<8x256xf32> to vector<8x128xf32>
    %376 = arith.addf %374, %375 : vector<8x128xf32>
    %377 = arith.addf %376, %7 : vector<8x128xf32>
    %378 = vector.extract_strided_slice %377 {offsets = [0, 0], sizes = [8, 96], strides = [1, 1]} : vector<8x128xf32> to vector<8x96xf32>
    %379 = arith.negf %378 : vector<8x96xf32>
    %380 = math.exp %379 : vector<8x96xf32>
    %cst_66 = arith.constant 1.000000e+00 : f32
    %381 = vector.broadcast %cst_66 : f32 to vector<8x96xf32>
    %382 = arith.addf %381, %380 : vector<8x96xf32>
    %383 = arith.divf %381, %382 : vector<8x96xf32>
    %384 = vector.extract_strided_slice %383 {offsets = [0, 0], sizes = [8, 32], strides = [1, 1]} : vector<8x96xf32> to vector<8x32xf32>
    %385 = vector.extract_strided_slice %383 {offsets = [0, 32], sizes = [8, 32], strides = [1, 1]} : vector<8x96xf32> to vector<8x32xf32>
    %386 = vector.extract_strided_slice %383 {offsets = [0, 64], sizes = [8, 32], strides = [1, 1]} : vector<8x96xf32> to vector<8x32xf32>
    %387 = vector.extract_strided_slice %377 {offsets = [0, 96], sizes = [8, 32], strides = [1, 1]} : vector<8x128xf32> to vector<8x32xf32>
    %388 = math.tanh %387 : vector<8x32xf32>
    %389 = arith.mulf %385, %346 : vector<8x32xf32>
    %390 = arith.mulf %384, %388 : vector<8x32xf32>
    %391 = arith.addf %389, %390 : vector<8x32xf32>
    %392 = math.tanh %391 : vector<8x32xf32>
    %393 = arith.mulf %386, %392 : vector<8x32xf32>
    %cst_67 = arith.constant 0.000000e+00 : f32
    %394 = vector.broadcast %cst_67 : f32 to vector<8x32xf32>
    %395 = arith.maximumf %393, %394 : vector<8x32xf32>
    %396 = arith.mulf %395, %10 : vector<8x32xf32>
    %cst_68 = arith.constant dense<0.000000e+00> : vector<8xf32>
    %397 = vector.multi_reduction <add>, %396, %cst_68 [1] : vector<8x32xf32> to vector<8xf32>
    %398 = vector.shape_cast %397 : vector<8xf32> to vector<8x1xf32>
    %399 = arith.addf %398, %16 : vector<8x1xf32>
    %400 = arith.mulf %395, %13 : vector<8x32xf32>
    %cst_69 = arith.constant dense<0.000000e+00> : vector<8xf32>
    %401 = vector.multi_reduction <add>, %400, %cst_69 [1] : vector<8x32xf32> to vector<8xf32>
    %402 = vector.shape_cast %401 : vector<8xf32> to vector<8x1xf32>
    %403 = arith.addf %402, %19 : vector<8x1xf32>
    %cst_70 = arith.constant 0.000000e+00 : f32
    %404 = vector.broadcast %cst_70 : f32 to vector<8x1xf32>
    %405 = arith.maximumf %403, %404 : vector<8x1xf32>
    %406 = math.absf %403 : vector<8x1xf32>
    %cst_71 = arith.constant 0.000000e+00 : f32
    %407 = vector.broadcast %cst_71 : f32 to vector<8x1xf32>
    %408 = arith.subf %407, %406 : vector<8x1xf32>
    %409 = math.exp %408 : vector<8x1xf32>
    %cst_72 = arith.constant 1.000000e+00 : f32
    %410 = vector.broadcast %cst_72 : f32 to vector<8x1xf32>
    %411 = arith.addf %410, %409 : vector<8x1xf32>
    %412 = math.log %411 : vector<8x1xf32>
    %413 = arith.addf %405, %412 : vector<8x1xf32>
    %cst_73 = arith.constant 9.99999997E-7 : f32
    %414 = vector.broadcast %cst_73 : f32 to vector<8x1xf32>
    %415 = arith.addf %413, %414 : vector<8x1xf32>
    %416 = vector.extract_strided_slice %21 {offsets = [56, 0], sizes = [8, 1], strides = [1, 1]} : vector<96x1xf32> to vector<8x1xf32>
    %417 = arith.mulf %415, %416 : vector<8x1xf32>
    %418 = arith.addf %399, %417 : vector<8x1xf32>
    %419 = vector.extract_strided_slice %31 {offsets = [64, 0], sizes = [8, 128], strides = [1, 1]} : vector<96x128xf32> to vector<8x128xf32>
    %420 = vector.broadcast %418 : vector<8x1xf32> to vector<8x128xf32>
    %421 = arith.mulf %420, %4 : vector<8x128xf32>
    %422 = arith.addf %419, %421 : vector<8x128xf32>
    %423 = tpu.concatenate %372, %393 in 1 : vector<8x32xf32>, vector<8x32xf32> -> vector<8x64xf32>
    %424 = arith.truncf %423 : vector<8x64xf32> to vector<8x64xbf16>
    %cst_74 = arith.constant dense<0.000000e+00> : vector<8x256xf32>
    %425 = tpu.matmul %424, %0, %cst_74 {dimension_numbers = #tpu.dot_dimension_numbers<[1], [0], [0], [1], [0, 0, 1, 1], [], []>} : vector<8x64xbf16>, vector<64x256xbf16>, vector<8x256xf32> -> vector<8x256xf32>
    %426 = vector.extract_strided_slice %425 {offsets = [0, 0], sizes = [8, 128], strides = [1, 1]} : vector<8x256xf32> to vector<8x128xf32>
    %427 = arith.addf %422, %426 : vector<8x128xf32>
    %428 = vector.extract_strided_slice %427 {offsets = [0, 0], sizes = [8, 96], strides = [1, 1]} : vector<8x128xf32> to vector<8x96xf32>
    %429 = arith.negf %428 : vector<8x96xf32>
    %430 = math.exp %429 : vector<8x96xf32>
    %cst_75 = arith.constant 1.000000e+00 : f32
    %431 = vector.broadcast %cst_75 : f32 to vector<8x96xf32>
    %432 = arith.addf %431, %430 : vector<8x96xf32>
    %433 = arith.divf %431, %432 : vector<8x96xf32>
    %434 = vector.extract_strided_slice %433 {offsets = [0, 0], sizes = [8, 32], strides = [1, 1]} : vector<8x96xf32> to vector<8x32xf32>
    %435 = vector.extract_strided_slice %433 {offsets = [0, 32], sizes = [8, 32], strides = [1, 1]} : vector<8x96xf32> to vector<8x32xf32>
    %436 = vector.extract_strided_slice %433 {offsets = [0, 64], sizes = [8, 32], strides = [1, 1]} : vector<8x96xf32> to vector<8x32xf32>
    %437 = vector.extract_strided_slice %427 {offsets = [0, 96], sizes = [8, 32], strides = [1, 1]} : vector<8x128xf32> to vector<8x32xf32>
    %438 = math.tanh %437 : vector<8x32xf32>
    %439 = arith.mulf %435, %370 : vector<8x32xf32>
    %440 = arith.mulf %434, %438 : vector<8x32xf32>
    %441 = arith.addf %439, %440 : vector<8x32xf32>
    %442 = math.tanh %441 : vector<8x32xf32>
    %443 = arith.mulf %436, %442 : vector<8x32xf32>
    %444 = arith.truncf %443 : vector<8x32xf32> to vector<8x32xbf16>
    %cst_76 = arith.constant dense<0.000000e+00> : vector<8x128xf32>
    %445 = tpu.matmul %444, %1, %cst_76 {dimension_numbers = #tpu.dot_dimension_numbers<[1], [0], [0], [1], [0, 0, 1, 1], [], []>} : vector<8x32xbf16>, vector<32x128xbf16>, vector<8x128xf32> -> vector<8x128xf32>
    %446 = vector.extract_strided_slice %425 {offsets = [0, 128], sizes = [8, 128], strides = [1, 1]} : vector<8x256xf32> to vector<8x128xf32>
    %447 = arith.addf %445, %446 : vector<8x128xf32>
    %448 = arith.addf %447, %7 : vector<8x128xf32>
    %449 = vector.extract_strided_slice %448 {offsets = [0, 0], sizes = [8, 96], strides = [1, 1]} : vector<8x128xf32> to vector<8x96xf32>
    %450 = arith.negf %449 : vector<8x96xf32>
    %451 = math.exp %450 : vector<8x96xf32>
    %cst_77 = arith.constant 1.000000e+00 : f32
    %452 = vector.broadcast %cst_77 : f32 to vector<8x96xf32>
    %453 = arith.addf %452, %451 : vector<8x96xf32>
    %454 = arith.divf %452, %453 : vector<8x96xf32>
    %455 = vector.extract_strided_slice %454 {offsets = [0, 0], sizes = [8, 32], strides = [1, 1]} : vector<8x96xf32> to vector<8x32xf32>
    %456 = vector.extract_strided_slice %454 {offsets = [0, 32], sizes = [8, 32], strides = [1, 1]} : vector<8x96xf32> to vector<8x32xf32>
    %457 = vector.extract_strided_slice %454 {offsets = [0, 64], sizes = [8, 32], strides = [1, 1]} : vector<8x96xf32> to vector<8x32xf32>
    %458 = vector.extract_strided_slice %448 {offsets = [0, 96], sizes = [8, 32], strides = [1, 1]} : vector<8x128xf32> to vector<8x32xf32>
    %459 = math.tanh %458 : vector<8x32xf32>
    %460 = arith.mulf %456, %391 : vector<8x32xf32>
    %461 = arith.mulf %455, %459 : vector<8x32xf32>
    %462 = arith.addf %460, %461 : vector<8x32xf32>
    %463 = math.tanh %462 : vector<8x32xf32>
    %464 = arith.mulf %457, %463 : vector<8x32xf32>
    %cst_78 = arith.constant 0.000000e+00 : f32
    %465 = vector.broadcast %cst_78 : f32 to vector<8x32xf32>
    %466 = arith.maximumf %464, %465 : vector<8x32xf32>
    %467 = arith.mulf %466, %10 : vector<8x32xf32>
    %cst_79 = arith.constant dense<0.000000e+00> : vector<8xf32>
    %468 = vector.multi_reduction <add>, %467, %cst_79 [1] : vector<8x32xf32> to vector<8xf32>
    %469 = vector.shape_cast %468 : vector<8xf32> to vector<8x1xf32>
    %470 = arith.addf %469, %16 : vector<8x1xf32>
    %471 = arith.mulf %466, %13 : vector<8x32xf32>
    %cst_80 = arith.constant dense<0.000000e+00> : vector<8xf32>
    %472 = vector.multi_reduction <add>, %471, %cst_80 [1] : vector<8x32xf32> to vector<8xf32>
    %473 = vector.shape_cast %472 : vector<8xf32> to vector<8x1xf32>
    %474 = arith.addf %473, %19 : vector<8x1xf32>
    %cst_81 = arith.constant 0.000000e+00 : f32
    %475 = vector.broadcast %cst_81 : f32 to vector<8x1xf32>
    %476 = arith.maximumf %474, %475 : vector<8x1xf32>
    %477 = math.absf %474 : vector<8x1xf32>
    %cst_82 = arith.constant 0.000000e+00 : f32
    %478 = vector.broadcast %cst_82 : f32 to vector<8x1xf32>
    %479 = arith.subf %478, %477 : vector<8x1xf32>
    %480 = math.exp %479 : vector<8x1xf32>
    %cst_83 = arith.constant 1.000000e+00 : f32
    %481 = vector.broadcast %cst_83 : f32 to vector<8x1xf32>
    %482 = arith.addf %481, %480 : vector<8x1xf32>
    %483 = math.log %482 : vector<8x1xf32>
    %484 = arith.addf %476, %483 : vector<8x1xf32>
    %cst_84 = arith.constant 9.99999997E-7 : f32
    %485 = vector.broadcast %cst_84 : f32 to vector<8x1xf32>
    %486 = arith.addf %484, %485 : vector<8x1xf32>
    %487 = vector.extract_strided_slice %21 {offsets = [64, 0], sizes = [8, 1], strides = [1, 1]} : vector<96x1xf32> to vector<8x1xf32>
    %488 = arith.mulf %486, %487 : vector<8x1xf32>
    %489 = arith.addf %470, %488 : vector<8x1xf32>
    %490 = vector.extract_strided_slice %31 {offsets = [72, 0], sizes = [8, 128], strides = [1, 1]} : vector<96x128xf32> to vector<8x128xf32>
    %491 = vector.broadcast %489 : vector<8x1xf32> to vector<8x128xf32>
    %492 = arith.mulf %491, %4 : vector<8x128xf32>
    %493 = arith.addf %490, %492 : vector<8x128xf32>
    %494 = tpu.concatenate %443, %464 in 1 : vector<8x32xf32>, vector<8x32xf32> -> vector<8x64xf32>
    %495 = arith.truncf %494 : vector<8x64xf32> to vector<8x64xbf16>
    %cst_85 = arith.constant dense<0.000000e+00> : vector<8x256xf32>
    %496 = tpu.matmul %495, %0, %cst_85 {dimension_numbers = #tpu.dot_dimension_numbers<[1], [0], [0], [1], [0, 0, 1, 1], [], []>} : vector<8x64xbf16>, vector<64x256xbf16>, vector<8x256xf32> -> vector<8x256xf32>
    %497 = vector.extract_strided_slice %496 {offsets = [0, 0], sizes = [8, 128], strides = [1, 1]} : vector<8x256xf32> to vector<8x128xf32>
    %498 = arith.addf %493, %497 : vector<8x128xf32>
    %499 = vector.extract_strided_slice %498 {offsets = [0, 0], sizes = [8, 96], strides = [1, 1]} : vector<8x128xf32> to vector<8x96xf32>
    %500 = arith.negf %499 : vector<8x96xf32>
    %501 = math.exp %500 : vector<8x96xf32>
    %cst_86 = arith.constant 1.000000e+00 : f32
    %502 = vector.broadcast %cst_86 : f32 to vector<8x96xf32>
    %503 = arith.addf %502, %501 : vector<8x96xf32>
    %504 = arith.divf %502, %503 : vector<8x96xf32>
    %505 = vector.extract_strided_slice %504 {offsets = [0, 0], sizes = [8, 32], strides = [1, 1]} : vector<8x96xf32> to vector<8x32xf32>
    %506 = vector.extract_strided_slice %504 {offsets = [0, 32], sizes = [8, 32], strides = [1, 1]} : vector<8x96xf32> to vector<8x32xf32>
    %507 = vector.extract_strided_slice %504 {offsets = [0, 64], sizes = [8, 32], strides = [1, 1]} : vector<8x96xf32> to vector<8x32xf32>
    %508 = vector.extract_strided_slice %498 {offsets = [0, 96], sizes = [8, 32], strides = [1, 1]} : vector<8x128xf32> to vector<8x32xf32>
    %509 = math.tanh %508 : vector<8x32xf32>
    %510 = arith.mulf %506, %441 : vector<8x32xf32>
    %511 = arith.mulf %505, %509 : vector<8x32xf32>
    %512 = arith.addf %510, %511 : vector<8x32xf32>
    %513 = math.tanh %512 : vector<8x32xf32>
    %514 = arith.mulf %507, %513 : vector<8x32xf32>
    %515 = arith.truncf %514 : vector<8x32xf32> to vector<8x32xbf16>
    %cst_87 = arith.constant dense<0.000000e+00> : vector<8x128xf32>
    %516 = tpu.matmul %515, %1, %cst_87 {dimension_numbers = #tpu.dot_dimension_numbers<[1], [0], [0], [1], [0, 0, 1, 1], [], []>} : vector<8x32xbf16>, vector<32x128xbf16>, vector<8x128xf32> -> vector<8x128xf32>
    %517 = vector.extract_strided_slice %496 {offsets = [0, 128], sizes = [8, 128], strides = [1, 1]} : vector<8x256xf32> to vector<8x128xf32>
    %518 = arith.addf %516, %517 : vector<8x128xf32>
    %519 = arith.addf %518, %7 : vector<8x128xf32>
    %520 = vector.extract_strided_slice %519 {offsets = [0, 0], sizes = [8, 96], strides = [1, 1]} : vector<8x128xf32> to vector<8x96xf32>
    %521 = arith.negf %520 : vector<8x96xf32>
    %522 = math.exp %521 : vector<8x96xf32>
    %cst_88 = arith.constant 1.000000e+00 : f32
    %523 = vector.broadcast %cst_88 : f32 to vector<8x96xf32>
    %524 = arith.addf %523, %522 : vector<8x96xf32>
    %525 = arith.divf %523, %524 : vector<8x96xf32>
    %526 = vector.extract_strided_slice %525 {offsets = [0, 0], sizes = [8, 32], strides = [1, 1]} : vector<8x96xf32> to vector<8x32xf32>
    %527 = vector.extract_strided_slice %525 {offsets = [0, 32], sizes = [8, 32], strides = [1, 1]} : vector<8x96xf32> to vector<8x32xf32>
    %528 = vector.extract_strided_slice %525 {offsets = [0, 64], sizes = [8, 32], strides = [1, 1]} : vector<8x96xf32> to vector<8x32xf32>
    %529 = vector.extract_strided_slice %519 {offsets = [0, 96], sizes = [8, 32], strides = [1, 1]} : vector<8x128xf32> to vector<8x32xf32>
    %530 = math.tanh %529 : vector<8x32xf32>
    %531 = arith.mulf %527, %462 : vector<8x32xf32>
    %532 = arith.mulf %526, %530 : vector<8x32xf32>
    %533 = arith.addf %531, %532 : vector<8x32xf32>
    %534 = math.tanh %533 : vector<8x32xf32>
    %535 = arith.mulf %528, %534 : vector<8x32xf32>
    %cst_89 = arith.constant 0.000000e+00 : f32
    %536 = vector.broadcast %cst_89 : f32 to vector<8x32xf32>
    %537 = arith.maximumf %535, %536 : vector<8x32xf32>
    %538 = arith.mulf %537, %10 : vector<8x32xf32>
    %cst_90 = arith.constant dense<0.000000e+00> : vector<8xf32>
    %539 = vector.multi_reduction <add>, %538, %cst_90 [1] : vector<8x32xf32> to vector<8xf32>
    %540 = vector.shape_cast %539 : vector<8xf32> to vector<8x1xf32>
    %541 = arith.addf %540, %16 : vector<8x1xf32>
    %542 = arith.mulf %537, %13 : vector<8x32xf32>
    %cst_91 = arith.constant dense<0.000000e+00> : vector<8xf32>
    %543 = vector.multi_reduction <add>, %542, %cst_91 [1] : vector<8x32xf32> to vector<8xf32>
    %544 = vector.shape_cast %543 : vector<8xf32> to vector<8x1xf32>
    %545 = arith.addf %544, %19 : vector<8x1xf32>
    %cst_92 = arith.constant 0.000000e+00 : f32
    %546 = vector.broadcast %cst_92 : f32 to vector<8x1xf32>
    %547 = arith.maximumf %545, %546 : vector<8x1xf32>
    %548 = math.absf %545 : vector<8x1xf32>
    %cst_93 = arith.constant 0.000000e+00 : f32
    %549 = vector.broadcast %cst_93 : f32 to vector<8x1xf32>
    %550 = arith.subf %549, %548 : vector<8x1xf32>
    %551 = math.exp %550 : vector<8x1xf32>
    %cst_94 = arith.constant 1.000000e+00 : f32
    %552 = vector.broadcast %cst_94 : f32 to vector<8x1xf32>
    %553 = arith.addf %552, %551 : vector<8x1xf32>
    %554 = math.log %553 : vector<8x1xf32>
    %555 = arith.addf %547, %554 : vector<8x1xf32>
    %cst_95 = arith.constant 9.99999997E-7 : f32
    %556 = vector.broadcast %cst_95 : f32 to vector<8x1xf32>
    %557 = arith.addf %555, %556 : vector<8x1xf32>
    %558 = vector.extract_strided_slice %21 {offsets = [72, 0], sizes = [8, 1], strides = [1, 1]} : vector<96x1xf32> to vector<8x1xf32>
    %559 = arith.mulf %557, %558 : vector<8x1xf32>
    %560 = arith.addf %541, %559 : vector<8x1xf32>
    %561 = vector.extract_strided_slice %31 {offsets = [80, 0], sizes = [8, 128], strides = [1, 1]} : vector<96x128xf32> to vector<8x128xf32>
    %562 = vector.broadcast %560 : vector<8x1xf32> to vector<8x128xf32>
    %563 = arith.mulf %562, %4 : vector<8x128xf32>
    %564 = arith.addf %561, %563 : vector<8x128xf32>
    %565 = tpu.concatenate %514, %535 in 1 : vector<8x32xf32>, vector<8x32xf32> -> vector<8x64xf32>
    %566 = arith.truncf %565 : vector<8x64xf32> to vector<8x64xbf16>
    %cst_96 = arith.constant dense<0.000000e+00> : vector<8x256xf32>
    %567 = tpu.matmul %566, %0, %cst_96 {dimension_numbers = #tpu.dot_dimension_numbers<[1], [0], [0], [1], [0, 0, 1, 1], [], []>} : vector<8x64xbf16>, vector<64x256xbf16>, vector<8x256xf32> -> vector<8x256xf32>
    %568 = vector.extract_strided_slice %567 {offsets = [0, 0], sizes = [8, 128], strides = [1, 1]} : vector<8x256xf32> to vector<8x128xf32>
    %569 = arith.addf %564, %568 : vector<8x128xf32>
    %570 = vector.extract_strided_slice %569 {offsets = [0, 0], sizes = [8, 96], strides = [1, 1]} : vector<8x128xf32> to vector<8x96xf32>
    %571 = arith.negf %570 : vector<8x96xf32>
    %572 = math.exp %571 : vector<8x96xf32>
    %cst_97 = arith.constant 1.000000e+00 : f32
    %573 = vector.broadcast %cst_97 : f32 to vector<8x96xf32>
    %574 = arith.addf %573, %572 : vector<8x96xf32>
    %575 = arith.divf %573, %574 : vector<8x96xf32>
    %576 = vector.extract_strided_slice %575 {offsets = [0, 0], sizes = [8, 32], strides = [1, 1]} : vector<8x96xf32> to vector<8x32xf32>
    %577 = vector.extract_strided_slice %575 {offsets = [0, 32], sizes = [8, 32], strides = [1, 1]} : vector<8x96xf32> to vector<8x32xf32>
    %578 = vector.extract_strided_slice %575 {offsets = [0, 64], sizes = [8, 32], strides = [1, 1]} : vector<8x96xf32> to vector<8x32xf32>
    %579 = vector.extract_strided_slice %569 {offsets = [0, 96], sizes = [8, 32], strides = [1, 1]} : vector<8x128xf32> to vector<8x32xf32>
    %580 = math.tanh %579 : vector<8x32xf32>
    %581 = arith.mulf %577, %512 : vector<8x32xf32>
    %582 = arith.mulf %576, %580 : vector<8x32xf32>
    %583 = arith.addf %581, %582 : vector<8x32xf32>
    %584 = math.tanh %583 : vector<8x32xf32>
    %585 = arith.mulf %578, %584 : vector<8x32xf32>
    %586 = arith.truncf %585 : vector<8x32xf32> to vector<8x32xbf16>
    %cst_98 = arith.constant dense<0.000000e+00> : vector<8x128xf32>
    %587 = tpu.matmul %586, %1, %cst_98 {dimension_numbers = #tpu.dot_dimension_numbers<[1], [0], [0], [1], [0, 0, 1, 1], [], []>} : vector<8x32xbf16>, vector<32x128xbf16>, vector<8x128xf32> -> vector<8x128xf32>
    %588 = vector.extract_strided_slice %567 {offsets = [0, 128], sizes = [8, 128], strides = [1, 1]} : vector<8x256xf32> to vector<8x128xf32>
    %589 = arith.addf %587, %588 : vector<8x128xf32>
    %590 = arith.addf %589, %7 : vector<8x128xf32>
    %591 = vector.extract_strided_slice %590 {offsets = [0, 0], sizes = [8, 96], strides = [1, 1]} : vector<8x128xf32> to vector<8x96xf32>
    %592 = arith.negf %591 : vector<8x96xf32>
    %593 = math.exp %592 : vector<8x96xf32>
    %cst_99 = arith.constant 1.000000e+00 : f32
    %594 = vector.broadcast %cst_99 : f32 to vector<8x96xf32>
    %595 = arith.addf %594, %593 : vector<8x96xf32>
    %596 = arith.divf %594, %595 : vector<8x96xf32>
    %597 = vector.extract_strided_slice %596 {offsets = [0, 0], sizes = [8, 32], strides = [1, 1]} : vector<8x96xf32> to vector<8x32xf32>
    %598 = vector.extract_strided_slice %596 {offsets = [0, 32], sizes = [8, 32], strides = [1, 1]} : vector<8x96xf32> to vector<8x32xf32>
    %599 = vector.extract_strided_slice %596 {offsets = [0, 64], sizes = [8, 32], strides = [1, 1]} : vector<8x96xf32> to vector<8x32xf32>
    %600 = vector.extract_strided_slice %590 {offsets = [0, 96], sizes = [8, 32], strides = [1, 1]} : vector<8x128xf32> to vector<8x32xf32>
    %601 = math.tanh %600 : vector<8x32xf32>
    %602 = arith.mulf %598, %533 : vector<8x32xf32>
    %603 = arith.mulf %597, %601 : vector<8x32xf32>
    %604 = arith.addf %602, %603 : vector<8x32xf32>
    %605 = math.tanh %604 : vector<8x32xf32>
    %606 = arith.mulf %599, %605 : vector<8x32xf32>
    %cst_100 = arith.constant 0.000000e+00 : f32
    %607 = vector.broadcast %cst_100 : f32 to vector<8x32xf32>
    %608 = arith.maximumf %606, %607 : vector<8x32xf32>
    %609 = arith.mulf %608, %10 : vector<8x32xf32>
    %cst_101 = arith.constant dense<0.000000e+00> : vector<8xf32>
    %610 = vector.multi_reduction <add>, %609, %cst_101 [1] : vector<8x32xf32> to vector<8xf32>
    %611 = vector.shape_cast %610 : vector<8xf32> to vector<8x1xf32>
    %612 = arith.addf %611, %16 : vector<8x1xf32>
    %613 = arith.mulf %608, %13 : vector<8x32xf32>
    %cst_102 = arith.constant dense<0.000000e+00> : vector<8xf32>
    %614 = vector.multi_reduction <add>, %613, %cst_102 [1] : vector<8x32xf32> to vector<8xf32>
    %615 = vector.shape_cast %614 : vector<8xf32> to vector<8x1xf32>
    %616 = arith.addf %615, %19 : vector<8x1xf32>
    %cst_103 = arith.constant 0.000000e+00 : f32
    %617 = vector.broadcast %cst_103 : f32 to vector<8x1xf32>
    %618 = arith.maximumf %616, %617 : vector<8x1xf32>
    %619 = math.absf %616 : vector<8x1xf32>
    %cst_104 = arith.constant 0.000000e+00 : f32
    %620 = vector.broadcast %cst_104 : f32 to vector<8x1xf32>
    %621 = arith.subf %620, %619 : vector<8x1xf32>
    %622 = math.exp %621 : vector<8x1xf32>
    %cst_105 = arith.constant 1.000000e+00 : f32
    %623 = vector.broadcast %cst_105 : f32 to vector<8x1xf32>
    %624 = arith.addf %623, %622 : vector<8x1xf32>
    %625 = math.log %624 : vector<8x1xf32>
    %626 = arith.addf %618, %625 : vector<8x1xf32>
    %cst_106 = arith.constant 9.99999997E-7 : f32
    %627 = vector.broadcast %cst_106 : f32 to vector<8x1xf32>
    %628 = arith.addf %626, %627 : vector<8x1xf32>
    %629 = vector.extract_strided_slice %21 {offsets = [80, 0], sizes = [8, 1], strides = [1, 1]} : vector<96x1xf32> to vector<8x1xf32>
    %630 = arith.mulf %628, %629 : vector<8x1xf32>
    %631 = arith.addf %612, %630 : vector<8x1xf32>
    %632 = vector.extract_strided_slice %31 {offsets = [88, 0], sizes = [8, 128], strides = [1, 1]} : vector<96x128xf32> to vector<8x128xf32>
    %633 = vector.broadcast %631 : vector<8x1xf32> to vector<8x128xf32>
    %634 = arith.mulf %633, %4 : vector<8x128xf32>
    %635 = arith.addf %632, %634 : vector<8x128xf32>
    %636 = tpu.concatenate %585, %606 in 1 : vector<8x32xf32>, vector<8x32xf32> -> vector<8x64xf32>
    %637 = arith.truncf %636 : vector<8x64xf32> to vector<8x64xbf16>
    %cst_107 = arith.constant dense<0.000000e+00> : vector<8x256xf32>
    %638 = tpu.matmul %637, %0, %cst_107 {dimension_numbers = #tpu.dot_dimension_numbers<[1], [0], [0], [1], [0, 0, 1, 1], [], []>} : vector<8x64xbf16>, vector<64x256xbf16>, vector<8x256xf32> -> vector<8x256xf32>
    %639 = vector.extract_strided_slice %638 {offsets = [0, 0], sizes = [8, 128], strides = [1, 1]} : vector<8x256xf32> to vector<8x128xf32>
    %640 = arith.addf %635, %639 : vector<8x128xf32>
    %641 = vector.extract_strided_slice %640 {offsets = [0, 0], sizes = [8, 96], strides = [1, 1]} : vector<8x128xf32> to vector<8x96xf32>
    %642 = arith.negf %641 : vector<8x96xf32>
    %643 = math.exp %642 : vector<8x96xf32>
    %cst_108 = arith.constant 1.000000e+00 : f32
    %644 = vector.broadcast %cst_108 : f32 to vector<8x96xf32>
    %645 = arith.addf %644, %643 : vector<8x96xf32>
    %646 = arith.divf %644, %645 : vector<8x96xf32>
    %647 = vector.extract_strided_slice %646 {offsets = [0, 0], sizes = [8, 32], strides = [1, 1]} : vector<8x96xf32> to vector<8x32xf32>
    %648 = vector.extract_strided_slice %646 {offsets = [0, 32], sizes = [8, 32], strides = [1, 1]} : vector<8x96xf32> to vector<8x32xf32>
    %649 = vector.extract_strided_slice %646 {offsets = [0, 64], sizes = [8, 32], strides = [1, 1]} : vector<8x96xf32> to vector<8x32xf32>
    %650 = vector.extract_strided_slice %640 {offsets = [0, 96], sizes = [8, 32], strides = [1, 1]} : vector<8x128xf32> to vector<8x32xf32>
    %651 = math.tanh %650 : vector<8x32xf32>
    %652 = arith.mulf %648, %583 : vector<8x32xf32>
    %653 = arith.mulf %647, %651 : vector<8x32xf32>
    %654 = arith.addf %652, %653 : vector<8x32xf32>
    %655 = math.tanh %654 : vector<8x32xf32>
    %656 = arith.mulf %649, %655 : vector<8x32xf32>
    %657 = arith.truncf %656 : vector<8x32xf32> to vector<8x32xbf16>
    %cst_109 = arith.constant dense<0.000000e+00> : vector<8x128xf32>
    %658 = tpu.matmul %657, %1, %cst_109 {dimension_numbers = #tpu.dot_dimension_numbers<[1], [0], [0], [1], [0, 0, 1, 1], [], []>} : vector<8x32xbf16>, vector<32x128xbf16>, vector<8x128xf32> -> vector<8x128xf32>
    %659 = vector.extract_strided_slice %638 {offsets = [0, 128], sizes = [8, 128], strides = [1, 1]} : vector<8x256xf32> to vector<8x128xf32>
    %660 = arith.addf %658, %659 : vector<8x128xf32>
    %661 = arith.addf %660, %7 : vector<8x128xf32>
    %662 = vector.extract_strided_slice %661 {offsets = [0, 0], sizes = [8, 96], strides = [1, 1]} : vector<8x128xf32> to vector<8x96xf32>
    %663 = arith.negf %662 : vector<8x96xf32>
    %664 = math.exp %663 : vector<8x96xf32>
    %cst_110 = arith.constant 1.000000e+00 : f32
    %665 = vector.broadcast %cst_110 : f32 to vector<8x96xf32>
    %666 = arith.addf %665, %664 : vector<8x96xf32>
    %667 = arith.divf %665, %666 : vector<8x96xf32>
    %668 = vector.extract_strided_slice %667 {offsets = [0, 0], sizes = [8, 32], strides = [1, 1]} : vector<8x96xf32> to vector<8x32xf32>
    %669 = vector.extract_strided_slice %667 {offsets = [0, 32], sizes = [8, 32], strides = [1, 1]} : vector<8x96xf32> to vector<8x32xf32>
    %670 = vector.extract_strided_slice %667 {offsets = [0, 64], sizes = [8, 32], strides = [1, 1]} : vector<8x96xf32> to vector<8x32xf32>
    %671 = vector.extract_strided_slice %661 {offsets = [0, 96], sizes = [8, 32], strides = [1, 1]} : vector<8x128xf32> to vector<8x32xf32>
    %672 = math.tanh %671 : vector<8x32xf32>
    %673 = arith.mulf %669, %604 : vector<8x32xf32>
    %674 = arith.mulf %668, %672 : vector<8x32xf32>
    %675 = arith.addf %673, %674 : vector<8x32xf32>
    %676 = math.tanh %675 : vector<8x32xf32>
    %677 = arith.mulf %670, %676 : vector<8x32xf32>
    %cst_111 = arith.constant 0.000000e+00 : f32
    %678 = vector.broadcast %cst_111 : f32 to vector<8x32xf32>
    %679 = arith.maximumf %677, %678 : vector<8x32xf32>
    %680 = arith.mulf %679, %10 : vector<8x32xf32>
    %cst_112 = arith.constant dense<0.000000e+00> : vector<8xf32>
    %681 = vector.multi_reduction <add>, %680, %cst_112 [1] : vector<8x32xf32> to vector<8xf32>
    %682 = vector.shape_cast %681 : vector<8xf32> to vector<8x1xf32>
    %683 = arith.addf %682, %16 : vector<8x1xf32>
    %684 = arith.mulf %679, %13 : vector<8x32xf32>
    %cst_113 = arith.constant dense<0.000000e+00> : vector<8xf32>
    %685 = vector.multi_reduction <add>, %684, %cst_113 [1] : vector<8x32xf32> to vector<8xf32>
    %686 = vector.shape_cast %685 : vector<8xf32> to vector<8x1xf32>
    %687 = arith.addf %686, %19 : vector<8x1xf32>
    %cst_114 = arith.constant 0.000000e+00 : f32
    %688 = vector.broadcast %cst_114 : f32 to vector<8x1xf32>
    %689 = arith.maximumf %687, %688 : vector<8x1xf32>
    %690 = math.absf %687 : vector<8x1xf32>
    %cst_115 = arith.constant 0.000000e+00 : f32
    %691 = vector.broadcast %cst_115 : f32 to vector<8x1xf32>
    %692 = arith.subf %691, %690 : vector<8x1xf32>
    %693 = math.exp %692 : vector<8x1xf32>
    %cst_116 = arith.constant 1.000000e+00 : f32
    %694 = vector.broadcast %cst_116 : f32 to vector<8x1xf32>
    %695 = arith.addf %694, %693 : vector<8x1xf32>
    %696 = math.log %695 : vector<8x1xf32>
    %697 = arith.addf %689, %696 : vector<8x1xf32>
    %cst_117 = arith.constant 9.99999997E-7 : f32
    %698 = vector.broadcast %cst_117 : f32 to vector<8x1xf32>
    %699 = arith.addf %697, %698 : vector<8x1xf32>
    %700 = tpu.concatenate %80, %125, %170, %215, %260, %305, %350 in 0 : vector<8x32xf32>, vector<8x32xf32>, vector<8x32xf32>, vector<8x32xf32>, vector<8x32xf32>, vector<8x32xf32>, vector<8x32xf32> -> vector<56x32xf32>
    %c0_118 = arith.constant 0 : index
    %c0_119 = arith.constant 0 : index
    %701 = vector.load %arg8[%c0_118, %c0_119] : memref<1x32xf32, #tpu.memory_space<vmem>>, vector<1x32xf32>
    %702 = vector.shape_cast %701 : vector<1x32xf32> to vector<1x32xf32>
    %703 = vector.broadcast %702 : vector<1x32xf32> to vector<56x32xf32>
    %c0_120 = arith.constant 0 : index
    %c0_121 = arith.constant 0 : index
    %704 = vector.load %arg10[%c0_120, %c0_121] : memref<1x32xf32, #tpu.memory_space<vmem>>, vector<1x32xf32>
    %705 = vector.shape_cast %704 : vector<1x32xf32> to vector<1x32xf32>
    %706 = vector.broadcast %705 : vector<1x32xf32> to vector<56x32xf32>
    %c0_122 = arith.constant 0 : index
    %c0_123 = arith.constant 0 : index
    %707 = vector.load %arg9[%c0_122, %c0_123] : memref<1x1xf32, #tpu.memory_space<vmem>>, vector<1x1xf32>
    %708 = vector.shape_cast %707 : vector<1x1xf32> to vector<1x1xf32>
    %709 = vector.broadcast %708 : vector<1x1xf32> to vector<56x1xf32>
    %c0_124 = arith.constant 0 : index
    %c0_125 = arith.constant 0 : index
    %710 = vector.load %arg11[%c0_124, %c0_125] : memref<1x1xf32, #tpu.memory_space<vmem>>, vector<1x1xf32>
    %711 = vector.shape_cast %710 : vector<1x1xf32> to vector<1x1xf32>
    %712 = vector.broadcast %711 : vector<1x1xf32> to vector<56x1xf32>
    %713 = arith.mulf %700, %703 : vector<56x32xf32>
    %cst_126 = arith.constant dense<0.000000e+00> : vector<56xf32>
    %714 = vector.multi_reduction <add>, %713, %cst_126 [1] : vector<56x32xf32> to vector<56xf32>
    %715 = vector.shape_cast %714 : vector<56xf32> to vector<56x1xf32>
    %716 = arith.addf %715, %709 : vector<56x1xf32>
    %717 = arith.mulf %700, %706 : vector<56x32xf32>
    %cst_127 = arith.constant dense<0.000000e+00> : vector<56xf32>
    %718 = vector.multi_reduction <add>, %717, %cst_127 [1] : vector<56x32xf32> to vector<56xf32>
    %719 = vector.shape_cast %718 : vector<56xf32> to vector<56x1xf32>
    %720 = arith.addf %719, %712 : vector<56x1xf32>
    %cst_128 = arith.constant 0.000000e+00 : f32
    %721 = vector.broadcast %cst_128 : f32 to vector<56x1xf32>
    %722 = arith.maximumf %720, %721 : vector<56x1xf32>
    %723 = math.absf %720 : vector<56x1xf32>
    %cst_129 = arith.constant 0.000000e+00 : f32
    %724 = vector.broadcast %cst_129 : f32 to vector<56x1xf32>
    %725 = arith.subf %724, %723 : vector<56x1xf32>
    %726 = math.exp %725 : vector<56x1xf32>
    %cst_130 = arith.constant 1.000000e+00 : f32
    %727 = vector.broadcast %cst_130 : f32 to vector<56x1xf32>
    %728 = arith.addf %727, %726 : vector<56x1xf32>
    %729 = math.log %728 : vector<56x1xf32>
    %730 = arith.addf %722, %729 : vector<56x1xf32>
    %cst_131 = arith.constant 9.99999997E-7 : f32
    %731 = vector.broadcast %cst_131 : f32 to vector<56x1xf32>
    %732 = arith.addf %730, %731 : vector<56x1xf32>
    %733 = vector.extract_strided_slice %716 {offsets = [0, 0], sizes = [8, 1], strides = [1, 1]} : vector<56x1xf32> to vector<8x1xf32>
    %734 = vector.extract_strided_slice %716 {offsets = [8, 0], sizes = [8, 1], strides = [1, 1]} : vector<56x1xf32> to vector<8x1xf32>
    %735 = vector.extract_strided_slice %716 {offsets = [16, 0], sizes = [8, 1], strides = [1, 1]} : vector<56x1xf32> to vector<8x1xf32>
    %736 = vector.extract_strided_slice %716 {offsets = [24, 0], sizes = [8, 1], strides = [1, 1]} : vector<56x1xf32> to vector<8x1xf32>
    %737 = vector.extract_strided_slice %716 {offsets = [32, 0], sizes = [8, 1], strides = [1, 1]} : vector<56x1xf32> to vector<8x1xf32>
    %738 = vector.extract_strided_slice %716 {offsets = [40, 0], sizes = [8, 1], strides = [1, 1]} : vector<56x1xf32> to vector<8x1xf32>
    %739 = vector.extract_strided_slice %716 {offsets = [48, 0], sizes = [8, 1], strides = [1, 1]} : vector<56x1xf32> to vector<8x1xf32>
    %740 = vector.extract_strided_slice %732 {offsets = [0, 0], sizes = [8, 1], strides = [1, 1]} : vector<56x1xf32> to vector<8x1xf32>
    %741 = vector.extract_strided_slice %732 {offsets = [8, 0], sizes = [8, 1], strides = [1, 1]} : vector<56x1xf32> to vector<8x1xf32>
    %742 = vector.extract_strided_slice %732 {offsets = [16, 0], sizes = [8, 1], strides = [1, 1]} : vector<56x1xf32> to vector<8x1xf32>
    %743 = vector.extract_strided_slice %732 {offsets = [24, 0], sizes = [8, 1], strides = [1, 1]} : vector<56x1xf32> to vector<8x1xf32>
    %744 = vector.extract_strided_slice %732 {offsets = [32, 0], sizes = [8, 1], strides = [1, 1]} : vector<56x1xf32> to vector<8x1xf32>
    %745 = vector.extract_strided_slice %732 {offsets = [40, 0], sizes = [8, 1], strides = [1, 1]} : vector<56x1xf32> to vector<8x1xf32>
    %746 = vector.extract_strided_slice %732 {offsets = [48, 0], sizes = [8, 1], strides = [1, 1]} : vector<56x1xf32> to vector<8x1xf32>
    %747 = tpu.concatenate %733, %734, %735, %736, %737, %738, %739, %399, %470, %541, %612, %683 in 1 : vector<8x1xf32>, vector<8x1xf32>, vector<8x1xf32>, vector<8x1xf32>, vector<8x1xf32>, vector<8x1xf32>, vector<8x1xf32>, vector<8x1xf32>, vector<8x1xf32>, vector<8x1xf32>, vector<8x1xf32>, vector<8x1xf32> -> vector<8x12xf32>
    %c0_132 = arith.constant 0 : index
    %c0_133 = arith.constant 0 : index
    %748 = vector.load %arg12[%c0_132, %c0_133] : memref<8x12xf32, #tpu.memory_space<vmem>>, vector<8x12xf32>
    tpu.vector_store %arg12[%c0_132, %c0_133], %747 {strides = array<i32>} : memref<8x12xf32, #tpu.memory_space<vmem>>, vector<8x12xf32>,
    %749 = tpu.concatenate %740, %741, %742, %743, %744, %745, %746, %415, %486, %557, %628, %699 in 1 : vector<8x1xf32>, vector<8x1xf32>, vector<8x1xf32>, vector<8x1xf32>, vector<8x1xf32>, vector<8x1xf32>, vector<8x1xf32>, vector<8x1xf32>, vector<8x1xf32>, vector<8x1xf32>, vector<8x1xf32>, vector<8x1xf32> -> vector<8x12xf32>
    %c0_134 = arith.constant 0 : index
    %c0_135 = arith.constant 0 : index
    %750 = vector.load %arg13[%c0_134, %c0_135] : memref<8x12xf32, #tpu.memory_space<vmem>>, vector<8x12xf32>
    tpu.vector_store %arg13[%c0_134, %c0_135], %749 {strides = array<i32>} : memref<8x12xf32, #tpu.memory_space<vmem>>, vector<8x12xf32>,
    %751 = tpu.concatenate %418, %489, %560, %631 in 1 : vector<8x1xf32>, vector<8x1xf32>, vector<8x1xf32>, vector<8x1xf32> -> vector<8x4xf32>
    %c0_136 = arith.constant 0 : index
    %c0_137 = arith.constant 0 : index
    %752 = vector.load %arg14[%c0_136, %c0_137] : memref<8x4xf32, #tpu.memory_space<vmem>>, vector<8x4xf32>
    tpu.vector_store %arg14[%c0_136, %c0_137], %751 {strides = array<i32>} : memref<8x4xf32, #tpu.memory_space<vmem>>, vector<8x4xf32>,
    return
  }
}

</mosaic_0001>

<llo_original>
// kernel: tpu_custom_call.1
$region0: #{tpu_custom_call.1}
  #allocation0 [shape = 'u32[]', space=smem, size = 0x4, offset = 0x4, fixed_abs, tag = 'smem constant byte address 0x4 - core index']
  #allocation1 [shape = 'u32[144,128]{1,0:T(1,128)}', space=vmem, size = 0x12000, scoped, tag = 'internal scratch']
  #allocation2 [shape = 'f32[1,1]{1,0:T(1,128)S(1)}', space=vmem, size = 0x200, scoped, tag = 'scoped memory for tpu_custom_call.1']
  #allocation3 [shape = 'f32[1,1]{1,0:T(1,128)S(1)}', space=vmem, size = 0x200, scoped, tag = 'scoped memory for tpu_custom_call.1']
  %s0 = inlined_call_operand.vmem [shape: bf16[96,4], index: 0, kind: input, shape index: {}]
  %s1 = inlined_call_operand.vmem [shape: f32[96,2], index: 1, kind: input, shape index: {}]
  %s2 = inlined_call_operand.vmem [shape: bf16[4,128], index: 2, kind: input, shape index: {}]
  %s3 = inlined_call_operand.vmem [shape: f32[1,128], index: 3, kind: input, shape index: {}]
  %s4 = inlined_call_operand.vmem [shape: f32[1,128], index: 4, kind: input, shape index: {}]
  %s5 = inlined_call_operand.vmem [shape: bf16[64,256], index: 5, kind: input, shape index: {}]
  %s6 = inlined_call_operand.vmem [shape: bf16[32,128], index: 6, kind: input, shape index: {}]
  %s7 = inlined_call_operand.vmem [shape: f32[1,128], index: 7, kind: input, shape index: {}]
  %s8 = inlined_call_operand.vmem [shape: f32[1,32], index: 8, kind: input, shape index: {}]
  %s9 = inlined_call_operand.<no memory space> [shape: f32[1,1], index: 9, kind: input, shape index: {}]
  %s10 = inlined_call_operand.vmem [shape: f32[1,32], index: 10, kind: input, shape index: {}]
  %s11 = inlined_call_operand.<no memory space> [shape: f32[1,1], index: 11, kind: input, shape index: {}]
  %s12 = inlined_call_operand.hbm [shape: f32[8,12], index: 12, kind: output, shape index: {0}]
  %s13 = inlined_call_operand.hbm [shape: f32[8,12], index: 13, kind: output, shape index: {1}]
  %s14 = inlined_call_operand.vmem [shape: f32[8,4], index: 14, kind: output, shape index: {2}]
  %15 = xla_tuple %s12, %s13, %s14
  %s16 = sld [smem:[#allocation0]]
  $region74: #{tpu_custom_call.1} parent=0
    _
  %s18 = ssub.s32 1, %s16
  %s19 = scalar_select 0, %s18, %s16
  %v20 = vstv %s9
  %21 = vst [vmem:[#allocation2] sm:$0x1] %v20
  %v22 = vstv %s11
  %23 = vst [vmem:[#allocation3] sm:$0x1] %v22
  $region1: #{tpu_custom_call.1} parent=0
    #allocation4 [shape = 'u8[4096]{0}', space=vmem, size = 0x1000, scoped, tag = 'output window, operand 0, single buffered']
    #allocation5 [shape = 's32[1]{0}', space=sflag, size = 0x4, scoped, tag = 'scoped memory for tpu_custom_call.1']
    #allocation6 [shape = 'u8[4096]{0}', space=vmem, size = 0x1000, scoped, tag = 'output window, operand 1, single buffered']
    #allocation7 [shape = 's32[1]{0}', space=sflag, size = 0x4, scoped, tag = 'scoped memory for tpu_custom_call.1']
    %24 = vsyncpa [#allocation5], 0
    %25 = vsyncpa [#allocation7], 0
    // Predicated region
    $region2: #{tpu_custom_call.1} parent=1 // pred_check
      _
    $region3: #{tpu_custom_call.1} parent=1 // pred_check_branch
      %27 = sbr.rel (0) target = $region5
    $region4: #{tpu_custom_call.1} parent=1 // pred_region
      _
    $region5: #{tpu_custom_call.1} parent=1 // pred_fallthru
      _
    // Predicated region
    $region6: #{tpu_custom_call.1} parent=1 // pred_check
      _
    $region7: #{tpu_custom_call.1} parent=1 // pred_check_branch
      %29 = sbr.rel (0) target = $region9
    $region8: #{tpu_custom_call.1} parent=1 // pred_region
      _
    $region9: #{tpu_custom_call.1} parent=1 // pred_fallthru
      _
    // Predicated region
    $region10: #{tpu_custom_call.1} parent=1 // pred_check
      _
    $region11: #{tpu_custom_call.1} parent=1 // pred_check_branch
      %31 = sbr.rel (0) target = $region13
    $region12: #{tpu_custom_call.1} parent=1 // pred_region
      _
    $region13: #{tpu_custom_call.1} parent=1 // pred_fallthru
      _
    // Predicated region
    $region14: #{tpu_custom_call.1} parent=1 // pred_check
      _
    $region15: #{tpu_custom_call.1} parent=1 // pred_check_branch
      %33 = sbr.rel (0) target = $region17
    $region16: #{tpu_custom_call.1} parent=1 // pred_region
      _
    $region17: #{tpu_custom_call.1} parent=1 // pred_fallthru
      _
    // Predicated region
    $region18: #{tpu_custom_call.1} parent=1 // pred_check
      _
    $region19: #{tpu_custom_call.1} parent=1 // pred_check_branch
      %35 = sbr.rel (0) target = $region21
    $region20: #{tpu_custom_call.1} parent=1 // pred_region
      _
    $region21: #{tpu_custom_call.1} parent=1 // pred_fallthru
      _
    // Predicated region
    $region22: #{tpu_custom_call.1} parent=1 // pred_check
      _
    $region23: #{tpu_custom_call.1} parent=1 // pred_check_branch
      %37 = sbr.rel (0) target = $region25
    $region24: #{tpu_custom_call.1} parent=1 // pred_region
      _
    $region25: #{tpu_custom_call.1} parent=1 // pred_fallthru
      _
    // Predicated region
    $region26: #{tpu_custom_call.1} parent=1 // pred_check
      _
    $region27: #{tpu_custom_call.1} parent=1 // pred_check_branch
      %39 = sbr.rel (0) target = $region29
    $region28: #{tpu_custom_call.1} parent=1 // pred_region
      _
    $region29: #{tpu_custom_call.1} parent=1 // pred_fallthru
      _
    // Predicated region
    $region30: #{tpu_custom_call.1} parent=1 // pred_check
      _
    $region31: #{tpu_custom_call.1} parent=1 // pred_check_branch
      %41 = sbr.rel (0) target = $region33
    $region32: #{tpu_custom_call.1} parent=1 // pred_region
      _
    $region33: #{tpu_custom_call.1} parent=1 // pred_fallthru
      _
    // Predicated region
    $region34: #{tpu_custom_call.1} parent=1 // pred_check
      _
    $region35: #{tpu_custom_call.1} parent=1 // pred_check_branch
      %43 = sbr.rel (0) target = $region37
    $region36: #{tpu_custom_call.1} parent=1 // pred_region
      _
    $region37: #{tpu_custom_call.1} parent=1 // pred_fallthru
      _
    // Predicated region
    $region38: #{tpu_custom_call.1} parent=1 // pred_check
      _
    $region39: #{tpu_custom_call.1} parent=1 // pred_check_branch
      %45 = sbr.rel (0) target = $region41
    $region40: #{tpu_custom_call.1} parent=1 // pred_region
      _
    $region41: #{tpu_custom_call.1} parent=1 // pred_fallthru
      _
    // Predicated region
    $region42: #{tpu_custom_call.1} parent=1 // pred_check
      _
    $region43: #{tpu_custom_call.1} parent=1 // pred_check_branch
      %47 = sbr.rel (0) target = $region45
    $region44: #{tpu_custom_call.1} parent=1 // pred_region
      _
    $region45: #{tpu_custom_call.1} parent=1 // pred_fallthru
      _
    // Predicated region
    $region46: #{tpu_custom_call.1} parent=1 // pred_check
      _
    $region47: #{tpu_custom_call.1} parent=1 // pred_check_branch
      %49 = sbr.rel (0) target = $region49
    $region48: #{tpu_custom_call.1} parent=1 // pred_region
      _
    $region49: #{tpu_custom_call.1} parent=1 // pred_fallthru
      _
    %v51 = vld [vmem:[%s5] sm:$0xff]
    %v52 = vld [vmem:[%s5 + $0x8] sm:$0xff]
    %v53 = vld [vmem:[%s5 + $0x10] sm:$0xff]
    %v54 = vld [vmem:[%s5 + $0x18] sm:$0xff]
    %v55 = vld [vmem:[%s5 + $0x20] sm:$0xff]
    %v56 = vld [vmem:[%s5 + $0x28] sm:$0xff]
    %v57 = vld [vmem:[%s5 + $0x30] sm:$0xff]
    %v58 = vld [vmem:[%s5 + $0x38] sm:$0xff]
    %v59 = vld [vmem:[%s6] sm:$0xf]
    %v60 = vld [vmem:[%s6 + $0x4] sm:$0xf]
    %v61 = vld [vmem:[%s6 + $0x8] sm:$0xf]
    %v62 = vld [vmem:[%s6 + $0xc] sm:$0xf]
    %v63 = vld [vmem:[%s3] sm:$0x1]
    %v65 = vlaneseq
    %v66 = vshrl.u32 %v65, 7
    %v67 = vsub.s32 0, %v66
    %v68 = vrot.slane %v63, %v67
    %v70 = vld [vmem:[%s7] sm:$0x1]
    %v72 = vlaneseq
    %v73 = vshrl.u32 %v72, 7
    %v74 = vsub.s32 0, %v73
    %v75 = vrot.slane %v70, %v74
    %v77 = vld [vmem:[%s8] sm:$0x1]
    %v79 = vlaneseq
    %v80 = vshrl.u32 %v79, 7
    %v81 = vsub.s32 0, %v80
    %v82 = vrot.slane %v77, %v81
    %v83 = vld [vmem:[%s10] sm:$0x1]
    %v85 = vlaneseq
    %v86 = vshrl.u32 %v85, 7
    %v87 = vsub.s32 0, %v86
    %v88 = vrot.slane %v83, %v87
    %v89 = vld [vmem:[#allocation2] sm:$0x1]
    %v91 = vlaneseq
    %v92 = vshrl.u32 %v91, 7
    %v93 = vsub.s32 0, %v92
    %v94 = vrot.slane %v89, %v93
    %v96 = vld [vmem:[#allocation3] sm:$0x1]
    %v98 = vlaneseq
    %v99 = vshrl.u32 %v98, 7
    %v100 = vsub.s32 0, %v99
    %v101 = vrot.slane %v96, %v100
    %v103 = vld [vmem:[%s1] sm:$0xff]
    %v104 = vld [vmem:[%s1 + $0x8] sm:$0xff]
    %v105 = vld [vmem:[%s1 + $0x10] sm:$0xff]
    %v106 = vld [vmem:[%s1 + $0x18] sm:$0xff]
    %v107 = vld [vmem:[%s1 + $0x20] sm:$0xff]
    %v108 = vld [vmem:[%s1 + $0x28] sm:$0xff]
    %v109 = vld [vmem:[%s1 + $0x30] sm:$0xff]
    %v110 = vld [vmem:[%s1 + $0x38] sm:$0xff]
    %v111 = vld [vmem:[%s1 + $0x40] sm:$0xff]
    %v112 = vld [vmem:[%s1 + $0x48] sm:$0xff]
    %v113 = vld [vmem:[%s1 + $0x50] sm:$0xff]
    %v114 = vld [vmem:[%s1 + $0x58] sm:$0xff]
    %v115 = vld [vmem:[%s0] sm:$0xf]
    %v116 = vld [vmem:[%s0 + $0x4] sm:$0xf]
    %v117 = vld [vmem:[%s0 + $0x8] sm:$0xf]
    %v118 = vld [vmem:[%s0 + $0xc] sm:$0xf]
    %v119 = vld [vmem:[%s0 + $0x10] sm:$0xf]
    %v120 = vld [vmem:[%s0 + $0x14] sm:$0xf]
    %v121 = vld [vmem:[%s0 + $0x18] sm:$0xf]
    %v122 = vld [vmem:[%s0 + $0x1c] sm:$0xf]
    %v123 = vld [vmem:[%s0 + $0x20] sm:$0xf]
    %v124 = vld [vmem:[%s0 + $0x24] sm:$0xf]
    %v125 = vld [vmem:[%s0 + $0x28] sm:$0xf]
    %v126 = vld [vmem:[%s0 + $0x2c] sm:$0xf]
    %v127 = vld [vmem:[%s2] sm:$0x3]
    %129 = vset.pattern.permute.xlu0 0
    %130 = vperm.xlu0 %129, %v103
    %v131 = vpop.permute.xlu0 %130
    %134 = vset.pattern.permute.xlu0 0
    %135 = vperm.xlu0 %134, %v104
    %v136 = vpop.permute.xlu0 %135
    %139 = vset.pattern.permute.xlu0 0
    %140 = vperm.xlu0 %139, %v105
    %v141 = vpop.permute.xlu0 %140
    %144 = vset.pattern.permute.xlu0 0
    %145 = vperm.xlu0 %144, %v106
    %v146 = vpop.permute.xlu0 %145
    %149 = vset.pattern.permute.xlu0 0
    %150 = vperm.xlu0 %149, %v107
    %v151 = vpop.permute.xlu0 %150
    %154 = vset.pattern.permute.xlu0 0
    %155 = vperm.xlu0 %154, %v108
    %v156 = vpop.permute.xlu0 %155
    %159 = vset.pattern.permute.xlu0 0
    %160 = vperm.xlu0 %159, %v109
    %v161 = vpop.permute.xlu0 %160
    %164 = vset.pattern.permute.xlu0 0
    %165 = vperm.xlu0 %164, %v110
    %v166 = vpop.permute.xlu0 %165
    %169 = vset.pattern.permute.xlu0 0
    %170 = vperm.xlu0 %169, %v111
    %v171 = vpop.permute.xlu0 %170
    %174 = vset.pattern.permute.xlu0 0
    %175 = vperm.xlu0 %174, %v112
    %v176 = vpop.permute.xlu0 %175
    %179 = vset.pattern.permute.xlu0 0
    %180 = vperm.xlu0 %179, %v113
    %v181 = vpop.permute.xlu0 %180
    %184 = vset.pattern.permute.xlu0 0
    %185 = vperm.xlu0 %184, %v114
    %v186 = vpop.permute.xlu0 %185
    %v188 = vmul.f32 %v131, %v68
    %v189 = vmul.f32 %v136, %v68
    %v190 = vmul.f32 %v141, %v68
    %v191 = vmul.f32 %v146, %v68
    %v192 = vmul.f32 %v151, %v68
    %v193 = vmul.f32 %v156, %v68
    %v194 = vmul.f32 %v161, %v68
    %v195 = vmul.f32 %v166, %v68
    %v196 = vmul.f32 %v171, %v68
    %v197 = vmul.f32 %v176, %v68
    %v198 = vmul.f32 %v181, %v68
    %v199 = vmul.f32 %v186, %v68
    %v212 = vunpack.c.l.b16 %v115
    %v213 = vunpack.c.l.b16 %v116
    %v214 = vunpack.c.l.b16 %v117
    %v215 = vunpack.c.l.b16 %v118
    %v216 = vunpack.c.l.b16 %v119
    %v217 = vunpack.c.l.b16 %v120
    %v218 = vunpack.c.l.b16 %v121
    %v219 = vunpack.c.l.b16 %v122
    %v220 = vunpack.c.l.b16 %v123
    %v221 = vunpack.c.l.b16 %v124
    %v222 = vunpack.c.l.b16 %v125
    %v223 = vunpack.c.l.b16 %v126
    %v224 = vpack.c.b16 %v213, %v212
    %v225 = vpack.c.b16 %v215, %v214
    %v226 = vpack.c.b16 %v217, %v216
    %v227 = vpack.c.b16 %v219, %v218
    %v228 = vpack.c.b16 %v221, %v220
    %v229 = vpack.c.b16 %v223, %v222
    %vm230 = vcmask 31744
    %v232 = vsel %vm230, %v224, 0
    %v235 = vsel %vm230, %v225, 0
    %v238 = vsel %vm230, %v226, 0
    %v241 = vsel %vm230, %v227, 0
    %v244 = vsel %vm230, %v228, 0
    %v247 = vsel %vm230, %v229, 0
    %vm249 = vcmask 1041408
    %v251 = vsel %vm249, %v127, 0
    %253 = vmatprep.subr.bf16.mxu0 0
    %254 = vmatpush1.bf16.msra.mxu0 %v251
    %255 = vmatprep.subr.bf16.mxu0 0
    %256 = vmatpush1.bf16.msra.mxu0 0
    %257 = vmatprep.subr.bf16.mxu0 0
    %258 = vmatpush1.bf16.msra.mxu0 0
    %259 = vmatprep.subr.bf16.mxu0 0
    %260 = vmatpush1.bf16.msra.mxu0 0
    %261 = vmatprep.subr.bf16.mxu0 0
    %262 = vmatpush1.bf16.msra.mxu0 0
    %263 = vmatprep.subr.bf16.mxu0 0
    %264 = vmatpush1.bf16.msra.mxu0 0
    %265 = vmatprep.subr.bf16.mxu0 0
    %266 = vmatpush1.bf16.msra.mxu0 0
    %267 = vmatprep.subr.bf16.mxu0 0
    %268 = vmatpush1.bf16.msra.mxu0 0
    %269 = vmatprep.subr.bf16.mxu0 0
    %270 = vmatpush1.bf16.msra.mxu0 0
    %271 = vmatprep.subr.bf16.mxu0 0
    %272 = vmatpush1.bf16.msra.mxu0 0
    %273 = vmatprep.subr.bf16.mxu0 0
    %274 = vmatpush1.bf16.msra.mxu0 0
    %275 = vmatprep.subr.bf16.mxu0 0
    %276 = vmatpush1.bf16.msra.mxu0 0
    %277 = vmatprep.subr.bf16.mxu0 0
    %278 = vmatpush1.bf16.msra.mxu0 0
    %279 = vmatprep.subr.bf16.mxu0 0
    %280 = vmatpush1.bf16.msra.mxu0 0
    %281 = vmatprep.subr.bf16.mxu0 0
    %282 = vmatpush1.bf16.msra.mxu0 0
    %283 = vmatprep.subr.bf16.mxu0 0
    %284 = vmatpush1.bf16.msra.mxu0 0
    %285 = vmatprep.mubr.bf16.mxu0 0
    %286 = vmatmul.mubr.bf16.gmra.mrb[0].mxu0 %v232
    %v287 = vpop.f32.mrb[0].mxu0
    %v288 = vadd.f32 %v188, %v287
    %v289 = vpop.f32.mrb[0].mxu0
    %v290 = vpop.f32.mrb[0].mxu0
    %v291 = vadd.f32 %v189, %v290
    %v292 = vpop.f32.mrb[0].mxu0
    %293 = vmatprep.mubr.bf16.mxu0 0
    %294 = vmatmul.mubr.bf16.gmra.mrb[0].mxu0 %v235
    %v295 = vpop.f32.mrb[0].mxu0
    %v296 = vadd.f32 %v190, %v295
    %v297 = vpop.f32.mrb[0].mxu0
    %v298 = vpop.f32.mrb[0].mxu0
    %v299 = vadd.f32 %v191, %v298
    %v300 = vpop.f32.mrb[0].mxu0
    %301 = vmatprep.mubr.bf16.mxu0 0
    %302 = vmatmul.mubr.bf16.gmra.mrb[0].mxu0 %v238
    %v303 = vpop.f32.mrb[0].mxu0
    %v304 = vadd.f32 %v192, %v303
    %v305 = vpop.f32.mrb[0].mxu0
    %v306 = vpop.f32.mrb[0].mxu0
    %v307 = vadd.f32 %v193, %v306
    %v308 = vpop.f32.mrb[0].mxu0
    %309 = vmatprep.mubr.bf16.mxu0 0
    %310 = vmatmul.mubr.bf16.gmra.mrb[0].mxu0 %v241
    %v311 = vpop.f32.mrb[0].mxu0
    %v312 = vadd.f32 %v194, %v311
    %v313 = vpop.f32.mrb[0].mxu0
    %v314 = vpop.f32.mrb[0].mxu0
    %v315 = vadd.f32 %v195, %v314
    %v316 = vpop.f32.mrb[0].mxu0
    %317 = vmatprep.mubr.bf16.mxu0 0
    %318 = vmatmul.mubr.bf16.gmra.mrb[0].mxu0 %v244
    %v319 = vpop.f32.mrb[0].mxu0
    %v320 = vadd.f32 %v196, %v319
    %v321 = vpop.f32.mrb[0].mxu0
    %v322 = vpop.f32.mrb[0].mxu0
    %v323 = vadd.f32 %v197, %v322
    %v324 = vpop.f32.mrb[0].mxu0
    %325 = vmatprep.mubr.bf16.mxu0 0
    %326 = vmatmul.mubr.bf16.gmra.mrb[0].mxu0 %v247
    %v327 = vpop.f32.mrb[0].mxu0
    %v328 = vadd.f32 %v198, %v327
    %v329 = vpop.f32.mrb[0].mxu0
    %v330 = vpop.f32.mrb[0].mxu0
    %v331 = vadd.f32 %v199, %v330
    %v332 = vpop.f32.mrb[0].mxu0
    %333 = vdwg.mxu0
    %v334 = vld [vmem:[%s4] sm:$0x1]
    %v336 = vlaneseq
    %v337 = vshrl.u32 %v336, 7
    %v338 = vsub.s32 0, %v337
    %v339 = vrot.slane %v334, %v338
    %v341 = vadd.f32 %v288, %v339
    %v342 = vadd.f32 %v291, %v339
    %v343 = vadd.f32 %v296, %v339
    %v344 = vadd.f32 %v299, %v339
    %v345 = vadd.f32 %v304, %v339
    %v346 = vadd.f32 %v307, %v339
    %v347 = vadd.f32 %v312, %v339
    %v348 = vadd.f32 %v315, %v339
    %v349 = vadd.f32 %v320, %v339
    %v350 = vadd.f32 %v323, %v339
    %v351 = vadd.f32 %v328, %v339
    %v352 = vadd.f32 %v331, %v339
    %v353 = vpack.c.bf16 0.0, 0.0
    %v362 = vunpack.c.l.b16 %v51
    %v363 = vunpack.c.h.b16 %v51
    %v364 = vunpack.c.l.b16 %v52
    %v365 = vunpack.c.h.b16 %v52
    %v366 = vunpack.c.l.b16 %v53
    %v367 = vunpack.c.h.b16 %v53
    %v368 = vunpack.c.l.b16 %v54
    %v369 = vunpack.c.h.b16 %v54
    %v370 = vunpack.c.l.b16 %v55
    %v371 = vunpack.c.h.b16 %v55
    %v372 = vunpack.c.l.b16 %v56
    %v373 = vunpack.c.h.b16 %v56
    %v374 = vunpack.c.l.b16 %v57
    %v375 = vunpack.c.h.b16 %v57
    %v376 = vunpack.c.l.b16 %v58
    %v377 = vunpack.c.h.b16 %v58
    %v378 = vpack.c.b16 %v364, %v362
    %v379 = vpack.c.b16 %v365, %v363
    %v380 = vpack.c.b16 %v368, %v366
    %v381 = vpack.c.b16 %v369, %v367
    %v382 = vpack.c.b16 %v372, %v370
    %v383 = vpack.c.b16 %v373, %v371
    %v384 = vpack.c.b16 %v376, %v374
    %v385 = vpack.c.b16 %v377, %v375
    %vm394 = vcmask 523264
    %v396 = vsel %vm394, %v353, 0
    %398 = vmatprep.subr.bf16.mxu0 %v379
    %399 = vmatpush1.bf16.msra.mxu0 %v378
    %400 = vmatprep.subr.bf16.mxu0 %v381
    %401 = vmatpush1.bf16.msra.mxu0 %v380
    %402 = vmatprep.subr.bf16.mxu0 %v383
    %403 = vmatpush1.bf16.msra.mxu0 %v382
    %404 = vmatprep.subr.bf16.mxu0 %v385
    %405 = vmatpush1.bf16.msra.mxu0 %v384
    %406 = vmatprep.subr.bf16.mxu0 0
    %407 = vmatpush1.bf16.msra.mxu0 0
    %408 = vmatprep.subr.bf16.mxu0 0
    %409 = vmatpush1.bf16.msra.mxu0 0
    %410 = vmatprep.subr.bf16.mxu0 0
    %411 = vmatpush1.bf16.msra.mxu0 0
    %412 = vmatprep.subr.bf16.mxu0 0
    %413 = vmatpush1.bf16.msra.mxu0 0
    %414 = vmatprep.subr.bf16.mxu0 0
    %415 = vmatpush1.bf16.msra.mxu0 0
    %416 = vmatprep.subr.bf16.mxu0 0
    %417 = vmatpush1.bf16.msra.mxu0 0
    %418 = vmatprep.subr.bf16.mxu0 0
    %419 = vmatpush1.bf16.msra.mxu0 0
    %420 = vmatprep.subr.bf16.mxu0 0
    %421 = vmatpush1.bf16.msra.mxu0 0
    %422 = vmatprep.subr.bf16.mxu0 0
    %423 = vmatpush1.bf16.msra.mxu0 0
    %424 = vmatprep.subr.bf16.mxu0 0
    %425 = vmatpush1.bf16.msra.mxu0 0
    %426 = vmatprep.subr.bf16.mxu0 0
    %427 = vmatpush1.bf16.msra.mxu0 0
    %428 = vmatprep.subr.bf16.mxu0 0
    %429 = vmatpush1.bf16.msra.mxu0 0
    %430 = vmatprep.mubr.bf16.mxu0 0
    %431 = vmatmul.mubr.bf16.gmra.mrb[0].mxu0 %v396
    %v432 = vpop.f32.mrb[0].mxu0
    %v433 = vadd.f32 0.0, %v432
    %v434 = vpop.f32.mrb[0].mxu0
    %v435 = vadd.f32 0.0, %v434
    %v436 = vpop.f32.mrb[0].mxu0
    %v437 = vpop.f32.mrb[0].mxu0
    %438 = vdwg.mxu0
    %v439 = vadd.f32 %v341, %v433
    %v440 = vxor.u32 %v439, 2147483648
    %v441 = vmul.f32 %v440, 1.442695
    %v442 = vpow.pop %v441
    %v443 = vadd.f32 %v442, 1.0
    %v444 = vrcp.pop %v443
    %v445 = vmul.f32 1.0, %v444
    %v446 = vtanh.pop %v439
    %v447 = vmul.f32 %v445, 0.0
    %449 = vrot.lane.b32.xlu0 %v446, 32
    %v450 = vpop.permute.xlu0 %449
    %v452 = vmul.f32 %v445, %v450
    %454 = vrot.lane.b32.xlu0 %v452, 32
    %v455 = vpop.permute.xlu0 %454
    %v457 = vadd.f32 %v447, %v455
    %v458 = vtanh.pop %v457
    %460 = vrot.lane.b32.xlu0 %v458, 32
    %v461 = vpop.permute.xlu0 %460
    %v463 = vmul.f32 %v445, %v461
    %v464 = vpack.c.bf16 %v463, %v463
    %466 = vrot.lane.b32.xlu0 %v464, 64
    %v467 = vpop.permute.xlu0 %466
    %v472 = vunpack.c.l.b16 %v59
    %v473 = vunpack.c.l.b16 %v60
    %v474 = vunpack.c.l.b16 %v61
    %v475 = vunpack.c.l.b16 %v62
    %v476 = vpack.c.b16 %v473, %v472
    %v477 = vpack.c.b16 %v475, %v474
    %vm480 = vcmask 261120
    %v482 = vsel %vm480, %v467, 0
    %484 = vmatprep.subr.bf16.mxu0 0
    %485 = vmatpush1.bf16.msra.mxu0 %v476
    %486 = vmatprep.subr.bf16.mxu0 0
    %487 = vmatpush1.bf16.msra.mxu0 %v477
    %488 = vmatprep.subr.bf16.mxu0 0
    %489 = vmatpush1.bf16.msra.mxu0 0
    %490 = vmatprep.subr.bf16.mxu0 0
    %491 = vmatpush1.bf16.msra.mxu0 0
    %492 = vmatprep.subr.bf16.mxu0 0
    %493 = vmatpush1.bf16.msra.mxu0 0
    %494 = vmatprep.subr.bf16.mxu0 0
    %495 = vmatpush1.bf16.msra.mxu0 0
    %496 = vmatprep.subr.bf16.mxu0 0
    %497 = vmatpush1.bf16.msra.mxu0 0
    %498 = vmatprep.subr.bf16.mxu0 0
    %499 = vmatpush1.bf16.msra.mxu0 0
    %500 = vmatprep.subr.bf16.mxu0 0
    %501 = vmatpush1.bf16.msra.mxu0 0
    %502 = vmatprep.subr.bf16.mxu0 0
    %503 = vmatpush1.bf16.msra.mxu0 0
    %504 = vmatprep.subr.bf16.mxu0 0
    %505 = vmatpush1.bf16.msra.mxu0 0
    %506 = vmatprep.subr.bf16.mxu0 0
    %507 = vmatpush1.bf16.msra.mxu0 0
    %508 = vmatprep.subr.bf16.mxu0 0
    %509 = vmatpush1.bf16.msra.mxu0 0
    %510 = vmatprep.subr.bf16.mxu0 0
    %511 = vmatpush1.bf16.msra.mxu0 0
    %512 = vmatprep.subr.bf16.mxu0 0
    %513 = vmatpush1.bf16.msra.mxu0 0
    %514 = vmatprep.subr.bf16.mxu0 0
    %515 = vmatpush1.bf16.msra.mxu0 0
    %516 = vmatprep.mubr.bf16.mxu0 0
    %517 = vmatmul.mubr.bf16.gmra.mrb[0].mxu0 %v482
    %v518 = vpop.f32.mrb[0].mxu0
    %v519 = vadd.f32 %v435, %v518
    %v520 = vpop.f32.mrb[0].mxu0
    %v521 = vpop.f32.mrb[0].mxu0
    %v522 = vpop.f32.mrb[0].mxu0
    %523 = vdwg.mxu0
    %v524 = vadd.f32 %v519, %v75
    %v525 = vxor.u32 %v524, 2147483648
    %v526 = vmul.f32 %v525, 1.442695
    %v527 = vpow.pop %v526
    %v528 = vadd.f32 %v527, 1.0
    %v529 = vrcp.pop %v528
    %v530 = vmul.f32 1.0, %v529
    %v531 = vtanh.pop %v524
    %v532 = vmul.f32 %v530, 0.0
    %534 = vrot.lane.b32.xlu0 %v531, 32
    %v535 = vpop.permute.xlu0 %534
    %v537 = vmul.f32 %v530, %v535
    %539 = vrot.lane.b32.xlu0 %v537, 32
    %v540 = vpop.permute.xlu0 %539
    %v542 = vadd.f32 %v532, %v540
    %v543 = vtanh.pop %v542
    %545 = vrot.lane.b32.xlu0 %v543, 32
    %v546 = vpop.permute.xlu0 %545
    %v548 = vmul.f32 %v530, %v546
    %v549 = vmax.f32 %v548, 0.0
    %551 = vrot.lane.b32.xlu0 %v463, 64
    %v552 = vpop.permute.xlu0 %551
    %555 = vrot.lane.b32.xlu0 %v548, 96
    %v556 = vpop.permute.xlu0 %555
    %v558 = vsel %vm480, %v552, %v556
    %v559 = vpack.c.bf16 %v558, %v558
    %v561 = vsel %vm394, %v559, 0
    %563 = vmatprep.subr.bf16.mxu0 %v379
    %564 = vmatpush1.bf16.msra.mxu0 %v378
    %565 = vmatprep.subr.bf16.mxu0 %v381
    %566 = vmatpush1.bf16.msra.mxu0 %v380
    %567 = vmatprep.subr.bf16.mxu0 %v383
    %568 = vmatpush1.bf16.msra.mxu0 %v382
    %569 = vmatprep.subr.bf16.mxu0 %v385
    %570 = vmatpush1.bf16.msra.mxu0 %v384
    %571 = vmatprep.subr.bf16.mxu0 0
    %572 = vmatpush1.bf16.msra.mxu0 0
    %573 = vmatprep.subr.bf16.mxu0 0
    %574 = vmatpush1.bf16.msra.mxu0 0
    %575 = vmatprep.subr.bf16.mxu0 0
    %576 = vmatpush1.bf16.msra.mxu0 0
    %577 = vmatprep.subr.bf16.mxu0 0
    %578 = vmatpush1.bf16.msra.mxu0 0
    %579 = vmatprep.subr.bf16.mxu0 0
    %580 = vmatpush1.bf16.msra.mxu0 0
    %581 = vmatprep.subr.bf16.mxu0 0
    %582 = vmatpush1.bf16.msra.mxu0 0
    %583 = vmatprep.subr.bf16.mxu0 0
    %584 = vmatpush1.bf16.msra.mxu0 0
    %585 = vmatprep.subr.bf16.mxu0 0
    %586 = vmatpush1.bf16.msra.mxu0 0
    %587 = vmatprep.subr.bf16.mxu0 0
    %588 = vmatpush1.bf16.msra.mxu0 0
    %589 = vmatprep.subr.bf16.mxu0 0
    %590 = vmatpush1.bf16.msra.mxu0 0
    %591 = vmatprep.subr.bf16.mxu0 0
    %592 = vmatpush1.bf16.msra.mxu0 0
    %593 = vmatprep.subr.bf16.mxu0 0
    %594 = vmatpush1.bf16.msra.mxu0 0
    %595 = vmatprep.mubr.bf16.mxu0 0
    %596 = vmatmul.mubr.bf16.gmra.mrb[0].mxu0 %v561
    %v597 = vpop.f32.mrb[0].mxu0
    %v598 = vadd.f32 0.0, %v597
    %v599 = vpop.f32.mrb[0].mxu0
    %v600 = vadd.f32 0.0, %v599
    %v601 = vpop.f32.mrb[0].mxu0
    %v602 = vpop.f32.mrb[0].mxu0
    %603 = vdwg.mxu0
    %v604 = vadd.f32 %v342, %v598
    %v605 = vxor.u32 %v604, 2147483648
    %v606 = vmul.f32 %v605, 1.442695
    %v607 = vpow.pop %v606
    %v608 = vadd.f32 %v607, 1.0
    %v609 = vrcp.pop %v608
    %v610 = vmul.f32 1.0, %v609
    %v611 = vtanh.pop %v604
    %v612 = vmul.f32 %v610, %v457
    %614 = vrot.lane.b32.xlu0 %v611, 32
    %v615 = vpop.permute.xlu0 %614
    %v617 = vmul.f32 %v610, %v615
    %619 = vrot.lane.b32.xlu0 %v617, 32
    %v620 = vpop.permute.xlu0 %619
    %v622 = vadd.f32 %v612, %v620
    %v623 = vtanh.pop %v622
    %625 = vrot.lane.b32.xlu0 %v623, 32
    %v626 = vpop.permute.xlu0 %625
    %v628 = vmul.f32 %v610, %v626
    %v629 = vpack.c.bf16 %v628, %v628
    %631 = vrot.lane.b32.xlu0 %v629, 64
    %v632 = vpop.permute.xlu0 %631
    %v634 = vsel %vm480, %v632, 0
    %636 = vmatprep.subr.bf16.mxu0 0
    %637 = vmatpush1.bf16.msra.mxu0 %v476
    %638 = vmatprep.subr.bf16.mxu0 0
    %639 = vmatpush1.bf16.msra.mxu0 %v477
    %640 = vmatprep.subr.bf16.mxu0 0
    %641 = vmatpush1.bf16.msra.mxu0 0
    %642 = vmatprep.subr.bf16.mxu0 0
    %643 = vmatpush1.bf16.msra.mxu0 0
    %644 = vmatprep.subr.bf16.mxu0 0
    %645 = vmatpush1.bf16.msra.mxu0 0
    %646 = vmatprep.subr.bf16.mxu0 0
    %647 = vmatpush1.bf16.msra.mxu0 0
    %648 = vmatprep.subr.bf16.mxu0 0
    %649 = vmatpush1.bf16.msra.mxu0 0
    %650 = vmatprep.subr.bf16.mxu0 0
    %651 = vmatpush1.bf16.msra.mxu0 0
    %652 = vmatprep.subr.bf16.mxu0 0
    %653 = vmatpush1.bf16.msra.mxu0 0
    %654 = vmatprep.subr.bf16.mxu0 0
    %655 = vmatpush1.bf16.msra.mxu0 0
    %656 = vmatprep.subr.bf16.mxu0 0
    %657 = vmatpush1.bf16.msra.mxu0 0
    %658 = vmatprep.subr.bf16.mxu0 0
    %659 = vmatpush1.bf16.msra.mxu0 0
    %660 = vmatprep.subr.bf16.mxu0 0
    %661 = vmatpush1.bf16.msra.mxu0 0
    %662 = vmatprep.subr.bf16.mxu0 0
    %663 = vmatpush1.bf16.msra.mxu0 0
    %664 = vmatprep.subr.bf16.mxu0 0
    %665 = vmatpush1.bf16.msra.mxu0 0
    %666 = vmatprep.subr.bf16.mxu0 0
    %667 = vmatpush1.bf16.msra.mxu0 0
    %668 = vmatprep.mubr.bf16.mxu0 0
    %669 = vmatmul.mubr.bf16.gmra.mrb[0].mxu0 %v634
    %v670 = vpop.f32.mrb[0].mxu0
    %v671 = vadd.f32 %v600, %v670
    %v672 = vpop.f32.mrb[0].mxu0
    %v673 = vpop.f32.mrb[0].mxu0
    %v674 = vpop.f32.mrb[0].mxu0
    %675 = vdwg.mxu0
    %v676 = vadd.f32 %v671, %v75
    %v677 = vxor.u32 %v676, 2147483648
    %v678 = vmul.f32 %v677, 1.442695
    %v679 = vpow.pop %v678
    %v680 = vadd.f32 %v679, 1.0
    %v681 = vrcp.pop %v680
    %v682 = vmul.f32 1.0, %v681
    %v683 = vtanh.pop %v676
    %v684 = vmul.f32 %v682, %v542
    %686 = vrot.lane.b32.xlu0 %v683, 32
    %v687 = vpop.permute.xlu0 %686
    %v689 = vmul.f32 %v682, %v687
    %691 = vrot.lane.b32.xlu0 %v689, 32
    %v692 = vpop.permute.xlu0 %691
    %v694 = vadd.f32 %v684, %v692
    %v695 = vtanh.pop %v694
    %697 = vrot.lane.b32.xlu0 %v695, 32
    %v698 = vpop.permute.xlu0 %697
    %v700 = vmul.f32 %v682, %v698
    %v701 = vmax.f32 %v700, 0.0
    %703 = vrot.lane.b32.xlu0 %v628, 64
    %v704 = vpop.permute.xlu0 %703
    %707 = vrot.lane.b32.xlu0 %v700, 96
    %v708 = vpop.permute.xlu0 %707
    %v710 = vsel %vm480, %v704, %v708
    %v711 = vpack.c.bf16 %v710, %v710
    %v713 = vsel %vm394, %v711, 0
    %715 = vmatprep.subr.bf16.mxu0 %v379
    %716 = vmatpush1.bf16.msra.mxu0 %v378
    %717 = vmatprep.subr.bf16.mxu0 %v381
    %718 = vmatpush1.bf16.msra.mxu0 %v380
    %719 = vmatprep.subr.bf16.mxu0 %v383
    %720 = vmatpush1.bf16.msra.mxu0 %v382
    %721 = vmatprep.subr.bf16.mxu0 %v385
    %722 = vmatpush1.bf16.msra.mxu0 %v384
    %723 = vmatprep.subr.bf16.mxu0 0
    %724 = vmatpush1.bf16.msra.mxu0 0
    %725 = vmatprep.subr.bf16.mxu0 0
    %726 = vmatpush1.bf16.msra.mxu0 0
    %727 = vmatprep.subr.bf16.mxu0 0
    %728 = vmatpush1.bf16.msra.mxu0 0
    %729 = vmatprep.subr.bf16.mxu0 0
    %730 = vmatpush1.bf16.msra.mxu0 0
    %731 = vmatprep.subr.bf16.mxu0 0
    %732 = vmatpush1.bf16.msra.mxu0 0
    %733 = vmatprep.subr.bf16.mxu0 0
    %734 = vmatpush1.bf16.msra.mxu0 0
    %735 = vmatprep.subr.bf16.mxu0 0
    %736 = vmatpush1.bf16.msra.mxu0 0
    %737 = vmatprep.subr.bf16.mxu0 0
    %738 = vmatpush1.bf16.msra.mxu0 0
    %739 = vmatprep.subr.bf16.mxu0 0
    %740 = vmatpush1.bf16.msra.mxu0 0
    %741 = vmatprep.subr.bf16.mxu0 0
    %742 = vmatpush1.bf16.msra.mxu0 0
    %743 = vmatprep.subr.bf16.mxu0 0
    %744 = vmatpush1.bf16.msra.mxu0 0
    %745 = vmatprep.subr.bf16.mxu0 0
    %746 = vmatpush1.bf16.msra.mxu0 0
    %747 = vmatprep.mubr.bf16.mxu0 0
    %748 = vmatmul.mubr.bf16.gmra.mrb[0].mxu0 %v713
    %v749 = vpop.f32.mrb[0].mxu0
    %v750 = vadd.f32 0.0, %v749
    %v751 = vpop.f32.mrb[0].mxu0
    %v752 = vadd.f32 0.0, %v751
    %v753 = vpop.f32.mrb[0].mxu0
    %v754 = vpop.f32.mrb[0].mxu0
    %755 = vdwg.mxu0
    %v756 = vadd.f32 %v343, %v750
    %v757 = vxor.u32 %v756, 2147483648
    %v758 = vmul.f32 %v757, 1.442695
    %v759 = vpow.pop %v758
    %v760 = vadd.f32 %v759, 1.0
    %v761 = vrcp.pop %v760
    %v762 = vmul.f32 1.0, %v761
    %v763 = vtanh.pop %v756
    %v764 = vmul.f32 %v762, %v622
    %766 = vrot.lane.b32.xlu0 %v763, 32
    %v767 = vpop.permute.xlu0 %766
    %v769 = vmul.f32 %v762, %v767
    %771 = vrot.lane.b32.xlu0 %v769, 32
    %v772 = vpop.permute.xlu0 %771
    %v774 = vadd.f32 %v764, %v772
    %v775 = vtanh.pop %v774
    %777 = vrot.lane.b32.xlu0 %v775, 32
    %v778 = vpop.permute.xlu0 %777
    %v780 = vmul.f32 %v762, %v778
    %v781 = vpack.c.bf16 %v780, %v780
    %783 = vrot.lane.b32.xlu0 %v781, 64
    %v784 = vpop.permute.xlu0 %783
    %v786 = vsel %vm480, %v784, 0
    %788 = vmatprep.subr.bf16.mxu0 0
    %789 = vmatpush1.bf16.msra.mxu0 %v476
    %790 = vmatprep.subr.bf16.mxu0 0
    %791 = vmatpush1.bf16.msra.mxu0 %v477
    %792 = vmatprep.subr.bf16.mxu0 0
    %793 = vmatpush1.bf16.msra.mxu0 0
    %794 = vmatprep.subr.bf16.mxu0 0
    %795 = vmatpush1.bf16.msra.mxu0 0
    %796 = vmatprep.subr.bf16.mxu0 0
    %797 = vmatpush1.bf16.msra.mxu0 0
    %798 = vmatprep.subr.bf16.mxu0 0
    %799 = vmatpush1.bf16.msra.mxu0 0
    %800 = vmatprep.subr.bf16.mxu0 0
    %801 = vmatpush1.bf16.msra.mxu0 0
    %802 = vmatprep.subr.bf16.mxu0 0
    %803 = vmatpush1.bf16.msra.mxu0 0
    %804 = vmatprep.subr.bf16.mxu0 0
    %805 = vmatpush1.bf16.msra.mxu0 0
    %806 = vmatprep.subr.bf16.mxu0 0
    %807 = vmatpush1.bf16.msra.mxu0 0
    %808 = vmatprep.subr.bf16.mxu0 0
    %809 = vmatpush1.bf16.msra.mxu0 0
    %810 = vmatprep.subr.bf16.mxu0 0
    %811 = vmatpush1.bf16.msra.mxu0 0
    %812 = vmatprep.subr.bf16.mxu0 0
    %813 = vmatpush1.bf16.msra.mxu0 0
    %814 = vmatprep.subr.bf16.mxu0 0
    %815 = vmatpush1.bf16.msra.mxu0 0
    %816 = vmatprep.subr.bf16.mxu0 0
    %817 = vmatpush1.bf16.msra.mxu0 0
    %818 = vmatprep.subr.bf16.mxu0 0
    %819 = vmatpush1.bf16.msra.mxu0 0
    %820 = vmatprep.mubr.bf16.mxu0 0
    %821 = vmatmul.mubr.bf16.gmra.mrb[0].mxu0 %v786
    %v822 = vpop.f32.mrb[0].mxu0
    %v823 = vadd.f32 %v752, %v822
    %v824 = vpop.f32.mrb[0].mxu0
    %v825 = vpop.f32.mrb[0].mxu0
    %v826 = vpop.f32.mrb[0].mxu0
    %827 = vdwg.mxu0
    %v828 = vadd.f32 %v823, %v75
    %v829 = vxor.u32 %v828, 2147483648
    %v830 = vmul.f32 %v829, 1.442695
    %v831 = vpow.pop %v830
    %v832 = vadd.f32 %v831, 1.0
    %v833 = vrcp.pop %v832
    %v834 = vmul.f32 1.0, %v833
    %v835 = vtanh.pop %v828
    %v836 = vmul.f32 %v834, %v694
    %838 = vrot.lane.b32.xlu0 %v835, 32
    %v839 = vpop.permute.xlu0 %838
    %v841 = vmul.f32 %v834, %v839
    %843 = vrot.lane.b32.xlu0 %v841, 32
    %v844 = vpop.permute.xlu0 %843
    %v846 = vadd.f32 %v836, %v844
    %v847 = vtanh.pop %v846
    %849 = vrot.lane.b32.xlu0 %v847, 32
    %v850 = vpop.permute.xlu0 %849
    %v852 = vmul.f32 %v834, %v850
    %v853 = vmax.f32 %v852, 0.0
    %855 = vrot.lane.b32.xlu0 %v780, 64
    %v856 = vpop.permute.xlu0 %855
    %859 = vrot.lane.b32.xlu0 %v852, 96
    %v860 = vpop.permute.xlu0 %859
    %v862 = vsel %vm480, %v856, %v860
    %v863 = vpack.c.bf16 %v862, %v862
    %v865 = vsel %vm394, %v863, 0
    %867 = vmatprep.subr.bf16.mxu0 %v379
    %868 = vmatpush1.bf16.msra.mxu0 %v378
    %869 = vmatprep.subr.bf16.mxu0 %v381
    %870 = vmatpush1.bf16.msra.mxu0 %v380
    %871 = vmatprep.subr.bf16.mxu0 %v383
    %872 = vmatpush1.bf16.msra.mxu0 %v382
    %873 = vmatprep.subr.bf16.mxu0 %v385
    %874 = vmatpush1.bf16.msra.mxu0 %v384
    %875 = vmatprep.subr.bf16.mxu0 0
    %876 = vmatpush1.bf16.msra.mxu0 0
    %877 = vmatprep.subr.bf16.mxu0 0
    %878 = vmatpush1.bf16.msra.mxu0 0
    %879 = vmatprep.subr.bf16.mxu0 0
    %880 = vmatpush1.bf16.msra.mxu0 0
    %881 = vmatprep.subr.bf16.mxu0 0
    %882 = vmatpush1.bf16.msra.mxu0 0
    %883 = vmatprep.subr.bf16.mxu0 0
    %884 = vmatpush1.bf16.msra.mxu0 0
    %885 = vmatprep.subr.bf16.mxu0 0
    %886 = vmatpush1.bf16.msra.mxu0 0
    %887 = vmatprep.subr.bf16.mxu0 0
    %888 = vmatpush1.bf16.msra.mxu0 0
    %889 = vmatprep.subr.bf16.mxu0 0
    %890 = vmatpush1.bf16.msra.mxu0 0
    %891 = vmatprep.subr.bf16.mxu0 0
    %892 = vmatpush1.bf16.msra.mxu0 0
    %893 = vmatprep.subr.bf16.mxu0 0
    %894 = vmatpush1.bf16.msra.mxu0 0
    %895 = vmatprep.subr.bf16.mxu0 0
    %896 = vmatpush1.bf16.msra.mxu0 0
    %897 = vmatprep.subr.bf16.mxu0 0
    %898 = vmatpush1.bf16.msra.mxu0 0
    %899 = vmatprep.mubr.bf16.mxu0 0
    %900 = vmatmul.mubr.bf16.gmra.mrb[0].mxu0 %v865
    %v901 = vpop.f32.mrb[0].mxu0
    %v902 = vadd.f32 0.0, %v901
    %v903 = vpop.f32.mrb[0].mxu0
    %v904 = vadd.f32 0.0, %v903
    %v905 = vpop.f32.mrb[0].mxu0
    %v906 = vpop.f32.mrb[0].mxu0
    %907 = vdwg.mxu0
    %v908 = vadd.f32 %v344, %v902
    %v909 = vxor.u32 %v908, 2147483648
    %v910 = vmul.f32 %v909, 1.442695
    %v911 = vpow.pop %v910
    %v912 = vadd.f32 %v911, 1.0
    %v913 = vrcp.pop %v912
    %v914 = vmul.f32 1.0, %v913
    %v915 = vtanh.pop %v908
    %v916 = vmul.f32 %v914, %v774
    %918 = vrot.lane.b32.xlu0 %v915, 32
    %v919 = vpop.permute.xlu0 %918
    %v921 = vmul.f32 %v914, %v919
    %923 = vrot.lane.b32.xlu0 %v921, 32
    %v924 = vpop.permute.xlu0 %923
    %v926 = vadd.f32 %v916, %v924
    %v927 = vtanh.pop %v926
    %929 = vrot.lane.b32.xlu0 %v927, 32
    %v930 = vpop.permute.xlu0 %929
    %v932 = vmul.f32 %v914, %v930
    %v933 = vpack.c.bf16 %v932, %v932
    %935 = vrot.lane.b32.xlu0 %v933, 64
    %v936 = vpop.permute.xlu0 %935
    %v938 = vsel %vm480, %v936, 0
    %940 = vmatprep.subr.bf16.mxu0 0
    %941 = vmatpush1.bf16.msra.mxu0 %v476
    %942 = vmatprep.subr.bf16.mxu0 0
    %943 = vmatpush1.bf16.msra.mxu0 %v477
    %944 = vmatprep.subr.bf16.mxu0 0
    %945 = vmatpush1.bf16.msra.mxu0 0
    %946 = vmatprep.subr.bf16.mxu0 0
    %947 = vmatpush1.bf16.msra.mxu0 0
    %948 = vmatprep.subr.bf16.mxu0 0
    %949 = vmatpush1.bf16.msra.mxu0 0
    %950 = vmatprep.subr.bf16.mxu0 0
    %951 = vmatpush1.bf16.msra.mxu0 0
    %952 = vmatprep.subr.bf16.mxu0 0
    %953 = vmatpush1.bf16.msra.mxu0 0
    %954 = vmatprep.subr.bf16.mxu0 0
    %955 = vmatpush1.bf16.msra.mxu0 0
    %956 = vmatprep.subr.bf16.mxu0 0
    %957 = vmatpush1.bf16.msra.mxu0 0
    %958 = vmatprep.subr.bf16.mxu0 0
    %959 = vmatpush1.bf16.msra.mxu0 0
    %960 = vmatprep.subr.bf16.mxu0 0
    %961 = vmatpush1.bf16.msra.mxu0 0
    %962 = vmatprep.subr.bf16.mxu0 0
    %963 = vmatpush1.bf16.msra.mxu0 0
    %964 = vmatprep.subr.bf16.mxu0 0
    %965 = vmatpush1.bf16.msra.mxu0 0
    %966 = vmatprep.subr.bf16.mxu0 0
    %967 = vmatpush1.bf16.msra.mxu0 0
    %968 = vmatprep.subr.bf16.mxu0 0
    %969 = vmatpush1.bf16.msra.mxu0 0
    %970 = vmatprep.subr.bf16.mxu0 0
    %971 = vmatpush1.bf16.msra.mxu0 0
    %972 = vmatprep.mubr.bf16.mxu0 0
    %973 = vmatmul.mubr.bf16.gmra.mrb[0].mxu0 %v938
    %v974 = vpop.f32.mrb[0].mxu0
    %v975 = vadd.f32 %v904, %v974
    %v976 = vpop.f32.mrb[0].mxu0
    %v977 = vpop.f32.mrb[0].mxu0
    %v978 = vpop.f32.mrb[0].mxu0
    %979 = vdwg.mxu0
    %v980 = vadd.f32 %v975, %v75
    %v981 = vxor.u32 %v980, 2147483648
    %v982 = vmul.f32 %v981, 1.442695
    %v983 = vpow.pop %v982
    %v984 = vadd.f32 %v983, 1.0
    %v985 = vrcp.pop %v984
    %v986 = vmul.f32 1.0, %v985
    %v987 = vtanh.pop %v980
    %v988 = vmul.f32 %v986, %v846
    %990 = vrot.lane.b32.xlu0 %v987, 32
    %v991 = vpop.permute.xlu0 %990
    %v993 = vmul.f32 %v986, %v991
    %995 = vrot.lane.b32.xlu0 %v993, 32
    %v996 = vpop.permute.xlu0 %995
    %v998 = vadd.f32 %v988, %v996
    %v999 = vtanh.pop %v998
    %1001 = vrot.lane.b32.xlu0 %v999, 32
    %v1002 = vpop.permute.xlu0 %1001
    %v1004 = vmul.f32 %v986, %v1002
    %v1005 = vmax.f32 %v1004, 0.0
    %1007 = vrot.lane.b32.xlu0 %v932, 64
    %v1008 = vpop.permute.xlu0 %1007
    %1011 = vrot.lane.b32.xlu0 %v1004, 96
    %v1012 = vpop.permute.xlu0 %1011
    %v1014 = vsel %vm480, %v1008, %v1012
    %v1015 = vpack.c.bf16 %v1014, %v1014
    %v1017 = vsel %vm394, %v1015, 0
    %1019 = vmatprep.subr.bf16.mxu0 %v379
    %1020 = vmatpush1.bf16.msra.mxu0 %v378
    %1021 = vmatprep.subr.bf16.mxu0 %v381
    %1022 = vmatpush1.bf16.msra.mxu0 %v380
    %1023 = vmatprep.subr.bf16.mxu0 %v383
    %1024 = vmatpush1.bf16.msra.mxu0 %v382
    %1025 = vmatprep.subr.bf16.mxu0 %v385
    %1026 = vmatpush1.bf16.msra.mxu0 %v384
    %1027 = vmatprep.subr.bf16.mxu0 0
    %1028 = vmatpush1.bf16.msra.mxu0 0
    %1029 = vmatprep.subr.bf16.mxu0 0
    %1030 = vmatpush1.bf16.msra.mxu0 0
    %1031 = vmatprep.subr.bf16.mxu0 0
    %1032 = vmatpush1.bf16.msra.mxu0 0
    %1033 = vmatprep.subr.bf16.mxu0 0
    %1034 = vmatpush1.bf16.msra.mxu0 0
    %1035 = vmatprep.subr.bf16.mxu0 0
    %1036 = vmatpush1.bf16.msra.mxu0 0
    %1037 = vmatprep.subr.bf16.mxu0 0
    %1038 = vmatpush1.bf16.msra.mxu0 0
    %1039 = vmatprep.subr.bf16.mxu0 0
    %1040 = vmatpush1.bf16.msra.mxu0 0
    %1041 = vmatprep.subr.bf16.mxu0 0
    %1042 = vmatpush1.bf16.msra.mxu0 0
    %1043 = vmatprep.subr.bf16.mxu0 0
    %1044 = vmatpush1.bf16.msra.mxu0 0
    %1045 = vmatprep.subr.bf16.mxu0 0
    %1046 = vmatpush1.bf16.msra.mxu0 0
    %1047 = vmatprep.subr.bf16.mxu0 0
    %1048 = vmatpush1.bf16.msra.mxu0 0
    %1049 = vmatprep.subr.bf16.mxu0 0
    %1050 = vmatpush1.bf16.msra.mxu0 0
    %1051 = vmatprep.mubr.bf16.mxu0 0
    %1052 = vmatmul.mubr.bf16.gmra.mrb[0].mxu0 %v1017
    %v1053 = vpop.f32.mrb[0].mxu0
    %v1054 = vadd.f32 0.0, %v1053
    %v1055 = vpop.f32.mrb[0].mxu0
    %v1056 = vadd.f32 0.0, %v1055
    %v1057 = vpop.f32.mrb[0].mxu0
    %v1058 = vpop.f32.mrb[0].mxu0
    %1059 = vdwg.mxu0
    %v1060 = vadd.f32 %v345, %v1054
    %v1061 = vxor.u32 %v1060, 2147483648
    %v1062 = vmul.f32 %v1061, 1.442695
    %v1063 = vpow.pop %v1062
    %v1064 = vadd.f32 %v1063, 1.0
    %v1065 = vrcp.pop %v1064
    %v1066 = vmul.f32 1.0, %v1065
    %v1067 = vtanh.pop %v1060
    %v1068 = vmul.f32 %v1066, %v926
    %1070 = vrot.lane.b32.xlu0 %v1067, 32
    %v1071 = vpop.permute.xlu0 %1070
    %v1073 = vmul.f32 %v1066, %v1071
    %1075 = vrot.lane.b32.xlu0 %v1073, 32
    %v1076 = vpop.permute.xlu0 %1075
    %v1078 = vadd.f32 %v1068, %v1076
    %v1079 = vtanh.pop %v1078
    %1081 = vrot.lane.b32.xlu0 %v1079, 32
    %v1082 = vpop.permute.xlu0 %1081
    %v1084 = vmul.f32 %v1066, %v1082
    %v1085 = vpack.c.bf16 %v1084, %v1084
    %1087 = vrot.lane.b32.xlu0 %v1085, 64
    %v1088 = vpop.permute.xlu0 %1087
    %v1090 = vsel %vm480, %v1088, 0
    %1092 = vmatprep.subr.bf16.mxu0 0
    %1093 = vmatpush1.bf16.msra.mxu0 %v476
    %1094 = vmatprep.subr.bf16.mxu0 0
    %1095 = vmatpush1.bf16.msra.mxu0 %v477
    %1096 = vmatprep.subr.bf16.mxu0 0
    %1097 = vmatpush1.bf16.msra.mxu0 0
    %1098 = vmatprep.subr.bf16.mxu0 0
    %1099 = vmatpush1.bf16.msra.mxu0 0
    %1100 = vmatprep.subr.bf16.mxu0 0
    %1101 = vmatpush1.bf16.msra.mxu0 0
    %1102 = vmatprep.subr.bf16.mxu0 0
    %1103 = vmatpush1.bf16.msra.mxu0 0
    %1104 = vmatprep.subr.bf16.mxu0 0
    %1105 = vmatpush1.bf16.msra.mxu0 0
    %1106 = vmatprep.subr.bf16.mxu0 0
    %1107 = vmatpush1.bf16.msra.mxu0 0
    %1108 = vmatprep.subr.bf16.mxu0 0
    %1109 = vmatpush1.bf16.msra.mxu0 0
    %1110 = vmatprep.subr.bf16.mxu0 0
    %1111 = vmatpush1.bf16.msra.mxu0 0
    %1112 = vmatprep.subr.bf16.mxu0 0
    %1113 = vmatpush1.bf16.msra.mxu0 0
    %1114 = vmatprep.subr.bf16.mxu0 0
    %1115 = vmatpush1.bf16.msra.mxu0 0
    %1116 = vmatprep.subr.bf16.mxu0 0
    %1117 = vmatpush1.bf16.msra.mxu0 0
    %1118 = vmatprep.subr.bf16.mxu0 0
    %1119 = vmatpush1.bf16.msra.mxu0 0
    %1120 = vmatprep.subr.bf16.mxu0 0
    %1121 = vmatpush1.bf16.msra.mxu0 0
    %1122 = vmatprep.subr.bf16.mxu0 0
    %1123 = vmatpush1.bf16.msra.mxu0 0
    %1124 = vmatprep.mubr.bf16.mxu0 0
    %1125 = vmatmul.mubr.bf16.gmra.mrb[0].mxu0 %v1090
    %v1126 = vpop.f32.mrb[0].mxu0
    %v1127 = vadd.f32 %v1056, %v1126
    %v1128 = vpop.f32.mrb[0].mxu0
    %v1129 = vpop.f32.mrb[0].mxu0
    %v1130 = vpop.f32.mrb[0].mxu0
    %1131 = vdwg.mxu0
    %v1132 = vadd.f32 %v1127, %v75
    %v1133 = vxor.u32 %v1132, 2147483648
    %v1134 = vmul.f32 %v1133, 1.442695
    %v1135 = vpow.pop %v1134
    %v1136 = vadd.f32 %v1135, 1.0
    %v1137 = vrcp.pop %v1136
    %v1138 = vmul.f32 1.0, %v1137
    %v1139 = vtanh.pop %v1132
    %v1140 = vmul.f32 %v1138, %v998
    %1142 = vrot.lane.b32.xlu0 %v1139, 32
    %v1143 = vpop.permute.xlu0 %1142
    %v1145 = vmul.f32 %v1138, %v1143
    %1147 = vrot.lane.b32.xlu0 %v1145, 32
    %v1148 = vpop.permute.xlu0 %1147
    %v1150 = vadd.f32 %v1140, %v1148
    %v1151 = vtanh.pop %v1150
    %1153 = vrot.lane.b32.xlu0 %v1151, 32
    %v1154 = vpop.permute.xlu0 %1153
    %v1156 = vmul.f32 %v1138, %v1154
    %v1157 = vmax.f32 %v1156, 0.0
    %1159 = vrot.lane.b32.xlu0 %v1084, 64
    %v1160 = vpop.permute.xlu0 %1159
    %1163 = vrot.lane.b32.xlu0 %v1156, 96
    %v1164 = vpop.permute.xlu0 %1163
    %v1166 = vsel %vm480, %v1160, %v1164
    %v1167 = vpack.c.bf16 %v1166, %v1166
    %v1169 = vsel %vm394, %v1167, 0
    %1171 = vmatprep.subr.bf16.mxu0 %v379
    %1172 = vmatpush1.bf16.msra.mxu0 %v378
    %1173 = vmatprep.subr.bf16.mxu0 %v381
    %1174 = vmatpush1.bf16.msra.mxu0 %v380
    %1175 = vmatprep.subr.bf16.mxu0 %v383
    %1176 = vmatpush1.bf16.msra.mxu0 %v382
    %1177 = vmatprep.subr.bf16.mxu0 %v385
    %1178 = vmatpush1.bf16.msra.mxu0 %v384
    %1179 = vmatprep.subr.bf16.mxu0 0
    %1180 = vmatpush1.bf16.msra.mxu0 0
    %1181 = vmatprep.subr.bf16.mxu0 0
    %1182 = vmatpush1.bf16.msra.mxu0 0
    %1183 = vmatprep.subr.bf16.mxu0 0
    %1184 = vmatpush1.bf16.msra.mxu0 0
    %1185 = vmatprep.subr.bf16.mxu0 0
    %1186 = vmatpush1.bf16.msra.mxu0 0
    %1187 = vmatprep.subr.bf16.mxu0 0
    %1188 = vmatpush1.bf16.msra.mxu0 0
    %1189 = vmatprep.subr.bf16.mxu0 0
    %1190 = vmatpush1.bf16.msra.mxu0 0
    %1191 = vmatprep.subr.bf16.mxu0 0
    %1192 = vmatpush1.bf16.msra.mxu0 0
    %1193 = vmatprep.subr.bf16.mxu0 0
    %1194 = vmatpush1.bf16.msra.mxu0 0
    %1195 = vmatprep.subr.bf16.mxu0 0
    %1196 = vmatpush1.bf16.msra.mxu0 0
    %1197 = vmatprep.subr.bf16.mxu0 0
    %1198 = vmatpush1.bf16.msra.mxu0 0
    %1199 = vmatprep.subr.bf16.mxu0 0
    %1200 = vmatpush1.bf16.msra.mxu0 0
    %1201 = vmatprep.subr.bf16.mxu0 0
    %1202 = vmatpush1.bf16.msra.mxu0 0
    %1203 = vmatprep.mubr.bf16.mxu0 0
    %1204 = vmatmul.mubr.bf16.gmra.mrb[0].mxu0 %v1169
    %v1205 = vpop.f32.mrb[0].mxu0
    %v1206 = vadd.f32 0.0, %v1205
    %v1207 = vpop.f32.mrb[0].mxu0
    %v1208 = vadd.f32 0.0, %v1207
    %v1209 = vpop.f32.mrb[0].mxu0
    %v1210 = vpop.f32.mrb[0].mxu0
    %1211 = vdwg.mxu0
    %v1212 = vadd.f32 %v346, %v1206
    %v1213 = vxor.u32 %v1212, 2147483648
    %v1214 = vmul.f32 %v1213, 1.442695
    %v1215 = vpow.pop %v1214
    %v1216 = vadd.f32 %v1215, 1.0
    %v1217 = vrcp.pop %v1216
    %v1218 = vmul.f32 1.0, %v1217
    %v1219 = vtanh.pop %v1212
    %v1220 = vmul.f32 %v1218, %v1078
    %1222 = vrot.lane.b32.xlu0 %v1219, 32
    %v1223 = vpop.permute.xlu0 %1222
    %v1225 = vmul.f32 %v1218, %v1223
    %1227 = vrot.lane.b32.xlu0 %v1225, 32
    %v1228 = vpop.permute.xlu0 %1227
    %v1230 = vadd.f32 %v1220, %v1228
    %v1231 = vtanh.pop %v1230
    %1233 = vrot.lane.b32.xlu0 %v1231, 32
    %v1234 = vpop.permute.xlu0 %1233
    %v1236 = vmul.f32 %v1218, %v1234
    %v1237 = vpack.c.bf16 %v1236, %v1236
    %1239 = vrot.lane.b32.xlu0 %v1237, 64
    %v1240 = vpop.permute.xlu0 %1239
    %v1242 = vsel %vm480, %v1240, 0
    %1244 = vmatprep.subr.bf16.mxu0 0
    %1245 = vmatpush1.bf16.msra.mxu0 %v476
    %1246 = vmatprep.subr.bf16.mxu0 0
    %1247 = vmatpush1.bf16.msra.mxu0 %v477
    %1248 = vmatprep.subr.bf16.mxu0 0
    %1249 = vmatpush1.bf16.msra.mxu0 0
    %1250 = vmatprep.subr.bf16.mxu0 0
    %1251 = vmatpush1.bf16.msra.mxu0 0
    %1252 = vmatprep.subr.bf16.mxu0 0
    %1253 = vmatpush1.bf16.msra.mxu0 0
    %1254 = vmatprep.subr.bf16.mxu0 0
    %1255 = vmatpush1.bf16.msra.mxu0 0
    %1256 = vmatprep.subr.bf16.mxu0 0
    %1257 = vmatpush1.bf16.msra.mxu0 0
    %1258 = vmatprep.subr.bf16.mxu0 0
    %1259 = vmatpush1.bf16.msra.mxu0 0
    %1260 = vmatprep.subr.bf16.mxu0 0
    %1261 = vmatpush1.bf16.msra.mxu0 0
    %1262 = vmatprep.subr.bf16.mxu0 0
    %1263 = vmatpush1.bf16.msra.mxu0 0
    %1264 = vmatprep.subr.bf16.mxu0 0
    %1265 = vmatpush1.bf16.msra.mxu0 0
    %1266 = vmatprep.subr.bf16.mxu0 0
    %1267 = vmatpush1.bf16.msra.mxu0 0
    %1268 = vmatprep.subr.bf16.mxu0 0
    %1269 = vmatpush1.bf16.msra.mxu0 0
    %1270 = vmatprep.subr.bf16.mxu0 0
    %1271 = vmatpush1.bf16.msra.mxu0 0
    %1272 = vmatprep.subr.bf16.mxu0 0
    %1273 = vmatpush1.bf16.msra.mxu0 0
    %1274 = vmatprep.subr.bf16.mxu0 0
    %1275 = vmatpush1.bf16.msra.mxu0 0
    %1276 = vmatprep.mubr.bf16.mxu0 0
    %1277 = vmatmul.mubr.bf16.gmra.mrb[0].mxu0 %v1242
    %v1278 = vpop.f32.mrb[0].mxu0
    %v1279 = vadd.f32 %v1208, %v1278
    %v1280 = vpop.f32.mrb[0].mxu0
    %v1281 = vpop.f32.mrb[0].mxu0
    %v1282 = vpop.f32.mrb[0].mxu0
    %1283 = vdwg.mxu0
    %v1284 = vadd.f32 %v1279, %v75
    %v1285 = vxor.u32 %v1284, 2147483648
    %v1286 = vmul.f32 %v1285, 1.442695
    %v1287 = vpow.pop %v1286
    %v1288 = vadd.f32 %v1287, 1.0
    %v1289 = vrcp.pop %v1288
    %v1290 = vmul.f32 1.0, %v1289
    %v1291 = vtanh.pop %v1284
    %v1292 = vmul.f32 %v1290, %v1150
    %1294 = vrot.lane.b32.xlu0 %v1291, 32
    %v1295 = vpop.permute.xlu0 %1294
    %v1297 = vmul.f32 %v1290, %v1295
    %1299 = vrot.lane.b32.xlu0 %v1297, 32
    %v1300 = vpop.permute.xlu0 %1299
    %v1302 = vadd.f32 %v1292, %v1300
    %v1303 = vtanh.pop %v1302
    %1305 = vrot.lane.b32.xlu0 %v1303, 32
    %v1306 = vpop.permute.xlu0 %1305
    %v1308 = vmul.f32 %v1290, %v1306
    %v1309 = vmax.f32 %v1308, 0.0
    %1311 = vrot.lane.b32.xlu0 %v1236, 64
    %v1312 = vpop.permute.xlu0 %1311
    %1315 = vrot.lane.b32.xlu0 %v1308, 96
    %v1316 = vpop.permute.xlu0 %1315
    %v1318 = vsel %vm480, %v1312, %v1316
    %v1319 = vpack.c.bf16 %v1318, %v1318
    %v1321 = vsel %vm394, %v1319, 0
    %1323 = vmatprep.subr.bf16.mxu0 %v379
    %1324 = vmatpush1.bf16.msra.mxu0 %v378
    %1325 = vmatprep.subr.bf16.mxu0 %v381
    %1326 = vmatpush1.bf16.msra.mxu0 %v380
    %1327 = vmatprep.subr.bf16.mxu0 %v383
    %1328 = vmatpush1.bf16.msra.mxu0 %v382
    %1329 = vmatprep.subr.bf16.mxu0 %v385
    %1330 = vmatpush1.bf16.msra.mxu0 %v384
    %1331 = vmatprep.subr.bf16.mxu0 0
    %1332 = vmatpush1.bf16.msra.mxu0 0
    %1333 = vmatprep.subr.bf16.mxu0 0
    %1334 = vmatpush1.bf16.msra.mxu0 0
    %1335 = vmatprep.subr.bf16.mxu0 0
    %1336 = vmatpush1.bf16.msra.mxu0 0
    %1337 = vmatprep.subr.bf16.mxu0 0
    %1338 = vmatpush1.bf16.msra.mxu0 0
    %1339 = vmatprep.subr.bf16.mxu0 0
    %1340 = vmatpush1.bf16.msra.mxu0 0
    %1341 = vmatprep.subr.bf16.mxu0 0
    %1342 = vmatpush1.bf16.msra.mxu0 0
    %1343 = vmatprep.subr.bf16.mxu0 0
    %1344 = vmatpush1.bf16.msra.mxu0 0
    %1345 = vmatprep.subr.bf16.mxu0 0
    %1346 = vmatpush1.bf16.msra.mxu0 0
    %1347 = vmatprep.subr.bf16.mxu0 0
    %1348 = vmatpush1.bf16.msra.mxu0 0
    %1349 = vmatprep.subr.bf16.mxu0 0
    %1350 = vmatpush1.bf16.msra.mxu0 0
    %1351 = vmatprep.subr.bf16.mxu0 0
    %1352 = vmatpush1.bf16.msra.mxu0 0
    %1353 = vmatprep.subr.bf16.mxu0 0
    %1354 = vmatpush1.bf16.msra.mxu0 0
    %1355 = vmatprep.mubr.bf16.mxu0 0
    %1356 = vmatmul.mubr.bf16.gmra.mrb[0].mxu0 %v1321
    %v1357 = vpop.f32.mrb[0].mxu0
    %v1358 = vadd.f32 0.0, %v1357
    %v1359 = vpop.f32.mrb[0].mxu0
    %v1360 = vadd.f32 0.0, %v1359
    %v1361 = vpop.f32.mrb[0].mxu0
    %v1362 = vpop.f32.mrb[0].mxu0
    %1363 = vdwg.mxu0
    %v1364 = vadd.f32 %v347, %v1358
    %v1365 = vxor.u32 %v1364, 2147483648
    %v1366 = vmul.f32 %v1365, 1.442695
    %v1367 = vpow.pop %v1366
    %v1368 = vadd.f32 %v1367, 1.0
    %v1369 = vrcp.pop %v1368
    %v1370 = vmul.f32 1.0, %v1369
    %v1371 = vtanh.pop %v1364
    %v1372 = vmul.f32 %v1370, %v1230
    %1374 = vrot.lane.b32.xlu0 %v1371, 32
    %v1375 = vpop.permute.xlu0 %1374
    %v1377 = vmul.f32 %v1370, %v1375
    %1379 = vrot.lane.b32.xlu0 %v1377, 32
    %v1380 = vpop.permute.xlu0 %1379
    %v1382 = vadd.f32 %v1372, %v1380
    %v1383 = vtanh.pop %v1382
    %1385 = vrot.lane.b32.xlu0 %v1383, 32
    %v1386 = vpop.permute.xlu0 %1385
    %v1388 = vmul.f32 %v1370, %v1386
    %v1389 = vpack.c.bf16 %v1388, %v1388
    %1391 = vrot.lane.b32.xlu0 %v1389, 64
    %v1392 = vpop.permute.xlu0 %1391
    %v1394 = vsel %vm480, %v1392, 0
    %1396 = vmatprep.subr.bf16.mxu0 0
    %1397 = vmatpush1.bf16.msra.mxu0 %v476
    %1398 = vmatprep.subr.bf16.mxu0 0
    %1399 = vmatpush1.bf16.msra.mxu0 %v477
    %1400 = vmatprep.subr.bf16.mxu0 0
    %1401 = vmatpush1.bf16.msra.mxu0 0
    %1402 = vmatprep.subr.bf16.mxu0 0
    %1403 = vmatpush1.bf16.msra.mxu0 0
    %1404 = vmatprep.subr.bf16.mxu0 0
    %1405 = vmatpush1.bf16.msra.mxu0 0
    %1406 = vmatprep.subr.bf16.mxu0 0
    %1407 = vmatpush1.bf16.msra.mxu0 0
    %1408 = vmatprep.subr.bf16.mxu0 0
    %1409 = vmatpush1.bf16.msra.mxu0 0
    %1410 = vmatprep.subr.bf16.mxu0 0
    %1411 = vmatpush1.bf16.msra.mxu0 0
    %1412 = vmatprep.subr.bf16.mxu0 0
    %1413 = vmatpush1.bf16.msra.mxu0 0
    %1414 = vmatprep.subr.bf16.mxu0 0
    %1415 = vmatpush1.bf16.msra.mxu0 0
    %1416 = vmatprep.subr.bf16.mxu0 0
    %1417 = vmatpush1.bf16.msra.mxu0 0
    %1418 = vmatprep.subr.bf16.mxu0 0
    %1419 = vmatpush1.bf16.msra.mxu0 0
    %1420 = vmatprep.subr.bf16.mxu0 0
    %1421 = vmatpush1.bf16.msra.mxu0 0
    %1422 = vmatprep.subr.bf16.mxu0 0
    %1423 = vmatpush1.bf16.msra.mxu0 0
    %1424 = vmatprep.subr.bf16.mxu0 0
    %1425 = vmatpush1.bf16.msra.mxu0 0
    %1426 = vmatprep.subr.bf16.mxu0 0
    %1427 = vmatpush1.bf16.msra.mxu0 0
    %1428 = vmatprep.mubr.bf16.mxu0 0
    %1429 = vmatmul.mubr.bf16.gmra.mrb[0].mxu0 %v1394
    %v1430 = vpop.f32.mrb[0].mxu0
    %v1431 = vadd.f32 %v1360, %v1430
    %v1432 = vpop.f32.mrb[0].mxu0
    %v1433 = vpop.f32.mrb[0].mxu0
    %v1434 = vpop.f32.mrb[0].mxu0
    %1435 = vdwg.mxu0
    %v1436 = vadd.f32 %v1431, %v75
    %v1437 = vxor.u32 %v1436, 2147483648
    %v1438 = vmul.f32 %v1437, 1.442695
    %v1439 = vpow.pop %v1438
    %v1440 = vadd.f32 %v1439, 1.0
    %v1441 = vrcp.pop %v1440
    %v1442 = vmul.f32 1.0, %v1441
    %v1443 = vtanh.pop %v1436
    %v1444 = vmul.f32 %v1442, %v1302
    %1446 = vrot.lane.b32.xlu0 %v1443, 32
    %v1447 = vpop.permute.xlu0 %1446
    %v1449 = vmul.f32 %v1442, %v1447
    %1451 = vrot.lane.b32.xlu0 %v1449, 32
    %v1452 = vpop.permute.xlu0 %1451
    %v1454 = vadd.f32 %v1444, %v1452
    %v1455 = vtanh.pop %v1454
    %1457 = vrot.lane.b32.xlu0 %v1455, 32
    %v1458 = vpop.permute.xlu0 %1457
    %v1460 = vmul.f32 %v1442, %v1458
    %v1461 = vmax.f32 %v1460, 0.0
    %1463 = vrot.lane.b32.xlu0 %v1388, 64
    %v1464 = vpop.permute.xlu0 %1463
    %1467 = vrot.lane.b32.xlu0 %v1460, 96
    %v1468 = vpop.permute.xlu0 %1467
    %v1470 = vsel %vm480, %v1464, %v1468
    %v1471 = vpack.c.bf16 %v1470, %v1470
    %v1473 = vsel %vm394, %v1471, 0
    %1475 = vmatprep.subr.bf16.mxu0 %v379
    %1476 = vmatpush1.bf16.msra.mxu0 %v378
    %1477 = vmatprep.subr.bf16.mxu0 %v381
    %1478 = vmatpush1.bf16.msra.mxu0 %v380
    %1479 = vmatprep.subr.bf16.mxu0 %v383
    %1480 = vmatpush1.bf16.msra.mxu0 %v382
    %1481 = vmatprep.subr.bf16.mxu0 %v385
    %1482 = vmatpush1.bf16.msra.mxu0 %v384
    %1483 = vmatprep.subr.bf16.mxu0 0
    %1484 = vmatpush1.bf16.msra.mxu0 0
    %1485 = vmatprep.subr.bf16.mxu0 0
    %1486 = vmatpush1.bf16.msra.mxu0 0
    %1487 = vmatprep.subr.bf16.mxu0 0
    %1488 = vmatpush1.bf16.msra.mxu0 0
    %1489 = vmatprep.subr.bf16.mxu0 0
    %1490 = vmatpush1.bf16.msra.mxu0 0
    %1491 = vmatprep.subr.bf16.mxu0 0
    %1492 = vmatpush1.bf16.msra.mxu0 0
    %1493 = vmatprep.subr.bf16.mxu0 0
    %1494 = vmatpush1.bf16.msra.mxu0 0
    %1495 = vmatprep.subr.bf16.mxu0 0
    %1496 = vmatpush1.bf16.msra.mxu0 0
    %1497 = vmatprep.subr.bf16.mxu0 0
    %1498 = vmatpush1.bf16.msra.mxu0 0
    %1499 = vmatprep.subr.bf16.mxu0 0
    %1500 = vmatpush1.bf16.msra.mxu0 0
    %1501 = vmatprep.subr.bf16.mxu0 0
    %1502 = vmatpush1.bf16.msra.mxu0 0
    %1503 = vmatprep.subr.bf16.mxu0 0
    %1504 = vmatpush1.bf16.msra.mxu0 0
    %1505 = vmatprep.subr.bf16.mxu0 0
    %1506 = vmatpush1.bf16.msra.mxu0 0
    %1507 = vmatprep.mubr.bf16.mxu0 0
    %1508 = vmatmul.mubr.bf16.gmra.mrb[0].mxu0 %v1473
    %v1509 = vpop.f32.mrb[0].mxu0
    %v1510 = vadd.f32 0.0, %v1509
    %v1511 = vpop.f32.mrb[0].mxu0
    %v1512 = vadd.f32 0.0, %v1511
    %v1513 = vpop.f32.mrb[0].mxu0
    %v1514 = vpop.f32.mrb[0].mxu0
    %1515 = vdwg.mxu0
    %v1516 = vadd.f32 %v348, %v1510
    %v1517 = vxor.u32 %v1516, 2147483648
    %v1518 = vmul.f32 %v1517, 1.442695
    %v1519 = vpow.pop %v1518
    %v1520 = vadd.f32 %v1519, 1.0
    %v1521 = vrcp.pop %v1520
    %v1522 = vmul.f32 1.0, %v1521
    %v1523 = vtanh.pop %v1516
    %v1524 = vmul.f32 %v1522, %v1382
    %1526 = vrot.lane.b32.xlu0 %v1523, 32
    %v1527 = vpop.permute.xlu0 %1526
    %v1529 = vmul.f32 %v1522, %v1527
    %1531 = vrot.lane.b32.xlu0 %v1529, 32
    %v1532 = vpop.permute.xlu0 %1531
    %v1534 = vadd.f32 %v1524, %v1532
    %v1535 = vtanh.pop %v1534
    %1537 = vrot.lane.b32.xlu0 %v1535, 32
    %v1538 = vpop.permute.xlu0 %1537
    %v1540 = vmul.f32 %v1522, %v1538
    %v1541 = vpack.c.bf16 %v1540, %v1540
    %1543 = vrot.lane.b32.xlu0 %v1541, 64
    %v1544 = vpop.permute.xlu0 %1543
    %v1546 = vsel %vm480, %v1544, 0
    %1548 = vmatprep.subr.bf16.mxu0 0
    %1549 = vmatpush1.bf16.msra.mxu0 %v476
    %1550 = vmatprep.subr.bf16.mxu0 0
    %1551 = vmatpush1.bf16.msra.mxu0 %v477
    %1552 = vmatprep.subr.bf16.mxu0 0
    %1553 = vmatpush1.bf16.msra.mxu0 0
    %1554 = vmatprep.subr.bf16.mxu0 0
    %1555 = vmatpush1.bf16.msra.mxu0 0
    %1556 = vmatprep.subr.bf16.mxu0 0
    %1557 = vmatpush1.bf16.msra.mxu0 0
    %1558 = vmatprep.subr.bf16.mxu0 0
    %1559 = vmatpush1.bf16.msra.mxu0 0
    %1560 = vmatprep.subr.bf16.mxu0 0
    %1561 = vmatpush1.bf16.msra.mxu0 0
    %1562 = vmatprep.subr.bf16.mxu0 0
    %1563 = vmatpush1.bf16.msra.mxu0 0
    %1564 = vmatprep.subr.bf16.mxu0 0
    %1565 = vmatpush1.bf16.msra.mxu0 0
    %1566 = vmatprep.subr.bf16.mxu0 0
    %1567 = vmatpush1.bf16.msra.mxu0 0
    %1568 = vmatprep.subr.bf16.mxu0 0
    %1569 = vmatpush1.bf16.msra.mxu0 0
    %1570 = vmatprep.subr.bf16.mxu0 0
    %1571 = vmatpush1.bf16.msra.mxu0 0
    %1572 = vmatprep.subr.bf16.mxu0 0
    %1573 = vmatpush1.bf16.msra.mxu0 0
    %1574 = vmatprep.subr.bf16.mxu0 0
    %1575 = vmatpush1.bf16.msra.mxu0 0
    %1576 = vmatprep.subr.bf16.mxu0 0
    %1577 = vmatpush1.bf16.msra.mxu0 0
    %1578 = vmatprep.subr.bf16.mxu0 0
    %1579 = vmatpush1.bf16.msra.mxu0 0
    %1580 = vmatprep.mubr.bf16.mxu0 0
    %1581 = vmatmul.mubr.bf16.gmra.mrb[0].mxu0 %v1546
    %v1582 = vpop.f32.mrb[0].mxu0
    %v1583 = vadd.f32 %v1512, %v1582
    %v1584 = vpop.f32.mrb[0].mxu0
    %v1585 = vpop.f32.mrb[0].mxu0
    %v1586 = vpop.f32.mrb[0].mxu0
    %1587 = vdwg.mxu0
    %v1588 = vadd.f32 %v1583, %v75
    %v1589 = vxor.u32 %v1588, 2147483648
    %v1590 = vmul.f32 %v1589, 1.442695
    %v1591 = vpow.pop %v1590
    %v1592 = vadd.f32 %v1591, 1.0
    %v1593 = vrcp.pop %v1592
    %v1594 = vmul.f32 1.0, %v1593
    %v1595 = vtanh.pop %v1588
    %v1596 = vmul.f32 %v1594, %v1454
    %1598 = vrot.lane.b32.xlu0 %v1595, 32
    %v1599 = vpop.permute.xlu0 %1598
    %v1601 = vmul.f32 %v1594, %v1599
    %1603 = vrot.lane.b32.xlu0 %v1601, 32
    %v1604 = vpop.permute.xlu0 %1603
    %v1606 = vadd.f32 %v1596, %v1604
    %v1607 = vtanh.pop %v1606
    %1609 = vrot.lane.b32.xlu0 %v1607, 32
    %v1610 = vpop.permute.xlu0 %1609
    %v1612 = vmul.f32 %v1594, %v1610
    %v1613 = vmax.f32 %v1612, 0.0
    %1614 = vrot.lane.b32.xlu0 %v82, 64
    %v1615 = vpop.permute.xlu0 %1614
    %v1617 = vmul.f32 %v1613, %v1615
    %1619 = vrot.lane.b32.xlu0 %v1617, 64
    %v1620 = vpop.permute.xlu0 %1619
    %v1622 = vsel %vm480, %v1620, 0.0
    %1623 = vadd.xlane.f32.xlu0 %v1622
    %v1624 = vpop.xlane.xlu0 %1623
    %v1625 = vadd.f32 %v1624, %v94
    %1626 = vrot.lane.b32.xlu0 %v88, 64
    %v1627 = vpop.permute.xlu0 %1626
    %v1629 = vmul.f32 %v1613, %v1627
    %1631 = vrot.lane.b32.xlu0 %v1629, 64
    %v1632 = vpop.permute.xlu0 %1631
    %v1634 = vsel %vm480, %v1632, 0.0
    %1635 = vadd.xlane.f32.xlu0 %v1634
    %v1636 = vpop.xlane.xlu0 %1635
    %v1637 = vadd.f32 %v1636, %v101
    %v1638 = vmax.f32 %v1637, 0.0
    %v1639 = vand.u32 2147483647, %v1637
    %v1640 = vsub.f32 0.0, %v1639
    %v1641 = vmul.f32 %v1640, 1.442695
    %v1642 = vpow.pop %v1641
    %v1643 = vadd.f32 %v1642, 1.0
    %v1644 = vlog2.pop %v1643
    %v1645 = vmul.f32 %v1644, 0.6931472
    %v1646 = vadd.f32 %v1638, %v1645
    %v1647 = vadd.f32 %v1646, 1e-06
    %1648 = vrot.lane.b32.xlu0 %v110, 127
    %v1649 = vpop.permute.xlu0 %1648
    %v1651 = vmul.f32 %v1647, %v1649
    %v1652 = vadd.f32 %v1625, %v1651
    %1654 = vset.pattern.permute.xlu0 0
    %1655 = vperm.xlu0 %1654, %v1652
    %v1656 = vpop.permute.xlu0 %1655
    %v1658 = vmul.f32 %v1656, %v68
    %v1659 = vadd.f32 %v349, %v1658
    %1661 = vrot.lane.b32.xlu0 %v1540, 64
    %v1662 = vpop.permute.xlu0 %1661
    %1665 = vrot.lane.b32.xlu0 %v1612, 96
    %v1666 = vpop.permute.xlu0 %1665
    %v1668 = vsel %vm480, %v1662, %v1666
    %v1669 = vpack.c.bf16 %v1668, %v1668
    %v1671 = vsel %vm394, %v1669, 0
    %1673 = vmatprep.subr.bf16.mxu0 %v379
    %1674 = vmatpush1.bf16.msra.mxu0 %v378
    %1675 = vmatprep.subr.bf16.mxu0 %v381
    %1676 = vmatpush1.bf16.msra.mxu0 %v380
    %1677 = vmatprep.subr.bf16.mxu0 %v383
    %1678 = vmatpush1.bf16.msra.mxu0 %v382
    %1679 = vmatprep.subr.bf16.mxu0 %v385
    %1680 = vmatpush1.bf16.msra.mxu0 %v384
    %1681 = vmatprep.subr.bf16.mxu0 0
    %1682 = vmatpush1.bf16.msra.mxu0 0
    %1683 = vmatprep.subr.bf16.mxu0 0
    %1684 = vmatpush1.bf16.msra.mxu0 0
    %1685 = vmatprep.subr.bf16.mxu0 0
    %1686 = vmatpush1.bf16.msra.mxu0 0
    %1687 = vmatprep.subr.bf16.mxu0 0
    %1688 = vmatpush1.bf16.msra.mxu0 0
    %1689 = vmatprep.subr.bf16.mxu0 0
    %1690 = vmatpush1.bf16.msra.mxu0 0
    %1691 = vmatprep.subr.bf16.mxu0 0
    %1692 = vmatpush1.bf16.msra.mxu0 0
    %1693 = vmatprep.subr.bf16.mxu0 0
    %1694 = vmatpush1.bf16.msra.mxu0 0
    %1695 = vmatprep.subr.bf16.mxu0 0
    %1696 = vmatpush1.bf16.msra.mxu0 0
    %1697 = vmatprep.subr.bf16.mxu0 0
    %1698 = vmatpush1.bf16.msra.mxu0 0
    %1699 = vmatprep.subr.bf16.mxu0 0
    %1700 = vmatpush1.bf16.msra.mxu0 0
    %1701 = vmatprep.subr.bf16.mxu0 0
    %1702 = vmatpush1.bf16.msra.mxu0 0
    %1703 = vmatprep.subr.bf16.mxu0 0
    %1704 = vmatpush1.bf16.msra.mxu0 0
    %1705 = vmatprep.mubr.bf16.mxu0 0
    %1706 = vmatmul.mubr.bf16.gmra.mrb[0].mxu0 %v1671
    %v1707 = vpop.f32.mrb[0].mxu0
    %v1708 = vadd.f32 0.0, %v1707
    %v1709 = vpop.f32.mrb[0].mxu0
    %v1710 = vadd.f32 0.0, %v1709
    %v1711 = vpop.f32.mrb[0].mxu0
    %v1712 = vpop.f32.mrb[0].mxu0
    %1713 = vdwg.mxu0
    %v1714 = vadd.f32 %v1659, %v1708
    %v1715 = vxor.u32 %v1714, 2147483648
    %v1716 = vmul.f32 %v1715, 1.442695
    %v1717 = vpow.pop %v1716
    %v1718 = vadd.f32 %v1717, 1.0
    %v1719 = vrcp.pop %v1718
    %v1720 = vmul.f32 1.0, %v1719
    %v1721 = vtanh.pop %v1714
    %v1722 = vmul.f32 %v1720, %v1534
    %1724 = vrot.lane.b32.xlu0 %v1721, 32
    %v1725 = vpop.permute.xlu0 %1724
    %v1727 = vmul.f32 %v1720, %v1725
    %1729 = vrot.lane.b32.xlu0 %v1727, 32
    %v1730 = vpop.permute.xlu0 %1729
    %v1732 = vadd.f32 %v1722, %v1730
    %v1733 = vtanh.pop %v1732
    %1735 = vrot.lane.b32.xlu0 %v1733, 32
    %v1736 = vpop.permute.xlu0 %1735
    %v1738 = vmul.f32 %v1720, %v1736
    %v1739 = vpack.c.bf16 %v1738, %v1738
    %1741 = vrot.lane.b32.xlu0 %v1739, 64
    %v1742 = vpop.permute.xlu0 %1741
    %v1744 = vsel %vm480, %v1742, 0
    %1746 = vmatprep.subr.bf16.mxu0 0
    %1747 = vmatpush1.bf16.msra.mxu0 %v476
    %1748 = vmatprep.subr.bf16.mxu0 0
    %1749 = vmatpush1.bf16.msra.mxu0 %v477
    %1750 = vmatprep.subr.bf16.mxu0 0
    %1751 = vmatpush1.bf16.msra.mxu0 0
    %1752 = vmatprep.subr.bf16.mxu0 0
    %1753 = vmatpush1.bf16.msra.mxu0 0
    %1754 = vmatprep.subr.bf16.mxu0 0
    %1755 = vmatpush1.bf16.msra.mxu0 0
    %1756 = vmatprep.subr.bf16.mxu0 0
    %1757 = vmatpush1.bf16.msra.mxu0 0
    %1758 = vmatprep.subr.bf16.mxu0 0
    %1759 = vmatpush1.bf16.msra.mxu0 0
    %1760 = vmatprep.subr.bf16.mxu0 0
    %1761 = vmatpush1.bf16.msra.mxu0 0
    %1762 = vmatprep.subr.bf16.mxu0 0
    %1763 = vmatpush1.bf16.msra.mxu0 0
    %1764 = vmatprep.subr.bf16.mxu0 0
    %1765 = vmatpush1.bf16.msra.mxu0 0
    %1766 = vmatprep.subr.bf16.mxu0 0
    %1767 = vmatpush1.bf16.msra.mxu0 0
    %1768 = vmatprep.subr.bf16.mxu0 0
    %1769 = vmatpush1.bf16.msra.mxu0 0
    %1770 = vmatprep.subr.bf16.mxu0 0
    %1771 = vmatpush1.bf16.msra.mxu0 0
    %1772 = vmatprep.subr.bf16.mxu0 0
    %1773 = vmatpush1.bf16.msra.mxu0 0
    %1774 = vmatprep.subr.bf16.mxu0 0
    %1775 = vmatpush1.bf16.msra.mxu0 0
    %1776 = vmatprep.subr.bf16.mxu0 0
    %1777 = vmatpush1.bf16.msra.mxu0 0
    %1778 = vmatprep.mubr.bf16.mxu0 0
    %1779 = vmatmul.mubr.bf16.gmra.mrb[0].mxu0 %v1744
    %v1780 = vpop.f32.mrb[0].mxu0
    %v1781 = vadd.f32 %v1710, %v1780
    %v1782 = vpop.f32.mrb[0].mxu0
    %v1783 = vpop.f32.mrb[0].mxu0
    %v1784 = vpop.f32.mrb[0].mxu0
    %1785 = vdwg.mxu0
    %v1786 = vadd.f32 %v1781, %v75
    %v1787 = vxor.u32 %v1786, 2147483648
    %v1788 = vmul.f32 %v1787, 1.442695
    %v1789 = vpow.pop %v1788
    %v1790 = vadd.f32 %v1789, 1.0
    %v1791 = vrcp.pop %v1790
    %v1792 = vmul.f32 1.0, %v1791
    %v1793 = vtanh.pop %v1786
    %v1794 = vmul.f32 %v1792, %v1606
    %1796 = vrot.lane.b32.xlu0 %v1793, 32
    %v1797 = vpop.permute.xlu0 %1796
    %v1799 = vmul.f32 %v1792, %v1797
    %1801 = vrot.lane.b32.xlu0 %v1799, 32
    %v1802 = vpop.permute.xlu0 %1801
    %v1804 = vadd.f32 %v1794, %v1802
    %v1805 = vtanh.pop %v1804
    %1807 = vrot.lane.b32.xlu0 %v1805, 32
    %v1808 = vpop.permute.xlu0 %1807
    %v1810 = vmul.f32 %v1792, %v1808
    %v1811 = vmax.f32 %v1810, 0.0
    %v1812 = vmul.f32 %v1811, %v1615
    %1814 = vrot.lane.b32.xlu0 %v1812, 64
    %v1815 = vpop.permute.xlu0 %1814
    %v1817 = vsel %vm480, %v1815, 0.0
    %1818 = vadd.xlane.f32.xlu0 %v1817
    %v1819 = vpop.xlane.xlu0 %1818
    %v1820 = vadd.f32 %v1819, %v94
    %v1821 = vmul.f32 %v1811, %v1627
    %1823 = vrot.lane.b32.xlu0 %v1821, 64
    %v1824 = vpop.permute.xlu0 %1823
    %v1826 = vsel %vm480, %v1824, 0.0
    %1827 = vadd.xlane.f32.xlu0 %v1826
    %v1828 = vpop.xlane.xlu0 %1827
    %v1829 = vadd.f32 %v1828, %v101
    %v1830 = vmax.f32 %v1829, 0.0
    %v1831 = vand.u32 2147483647, %v1829
    %v1832 = vsub.f32 0.0, %v1831
    %v1833 = vmul.f32 %v1832, 1.442695
    %v1834 = vpow.pop %v1833
    %v1835 = vadd.f32 %v1834, 1.0
    %v1836 = vlog2.pop %v1835
    %v1837 = vmul.f32 %v1836, 0.6931472
    %v1838 = vadd.f32 %v1830, %v1837
    %v1839 = vadd.f32 %v1838, 1e-06
    %1840 = vrot.lane.b32.xlu0 %v111, 127
    %v1841 = vpop.permute.xlu0 %1840
    %v1843 = vmul.f32 %v1839, %v1841
    %v1844 = vadd.f32 %v1820, %v1843
    %1846 = vset.pattern.permute.xlu0 0
    %1847 = vperm.xlu0 %1846, %v1844
    %v1848 = vpop.permute.xlu0 %1847
    %v1850 = vmul.f32 %v1848, %v68
    %v1851 = vadd.f32 %v350, %v1850
    %1853 = vrot.lane.b32.xlu0 %v1738, 64
    %v1854 = vpop.permute.xlu0 %1853
    %1857 = vrot.lane.b32.xlu0 %v1810, 96
    %v1858 = vpop.permute.xlu0 %1857
    %v1860 = vsel %vm480, %v1854, %v1858
    %v1861 = vpack.c.bf16 %v1860, %v1860
    %v1863 = vsel %vm394, %v1861, 0
    %1865 = vmatprep.subr.bf16.mxu0 %v379
    %1866 = vmatpush1.bf16.msra.mxu0 %v378
    %1867 = vmatprep.subr.bf16.mxu0 %v381
    %1868 = vmatpush1.bf16.msra.mxu0 %v380
    %1869 = vmatprep.subr.bf16.mxu0 %v383
    %1870 = vmatpush1.bf16.msra.mxu0 %v382
    %1871 = vmatprep.subr.bf16.mxu0 %v385
    %1872 = vmatpush1.bf16.msra.mxu0 %v384
    %1873 = vmatprep.subr.bf16.mxu0 0
    %1874 = vmatpush1.bf16.msra.mxu0 0
    %1875 = vmatprep.subr.bf16.mxu0 0
    %1876 = vmatpush1.bf16.msra.mxu0 0
    %1877 = vmatprep.subr.bf16.mxu0 0
    %1878 = vmatpush1.bf16.msra.mxu0 0
    %1879 = vmatprep.subr.bf16.mxu0 0
    %1880 = vmatpush1.bf16.msra.mxu0 0
    %1881 = vmatprep.subr.bf16.mxu0 0
    %1882 = vmatpush1.bf16.msra.mxu0 0
    %1883 = vmatprep.subr.bf16.mxu0 0
    %1884 = vmatpush1.bf16.msra.mxu0 0
    %1885 = vmatprep.subr.bf16.mxu0 0
    %1886 = vmatpush1.bf16.msra.mxu0 0
    %1887 = vmatprep.subr.bf16.mxu0 0
    %1888 = vmatpush1.bf16.msra.mxu0 0
    %1889 = vmatprep.subr.bf16.mxu0 0
    %1890 = vmatpush1.bf16.msra.mxu0 0
    %1891 = vmatprep.subr.bf16.mxu0 0
    %1892 = vmatpush1.bf16.msra.mxu0 0
    %1893 = vmatprep.subr.bf16.mxu0 0
    %1894 = vmatpush1.bf16.msra.mxu0 0
    %1895 = vmatprep.subr.bf16.mxu0 0
    %1896 = vmatpush1.bf16.msra.mxu0 0
    %1897 = vmatprep.mubr.bf16.mxu0 0
    %1898 = vmatmul.mubr.bf16.gmra.mrb[0].mxu0 %v1863
    %v1899 = vpop.f32.mrb[0].mxu0
    %v1900 = vadd.f32 0.0, %v1899
    %v1901 = vpop.f32.mrb[0].mxu0
    %v1902 = vadd.f32 0.0, %v1901
    %v1903 = vpop.f32.mrb[0].mxu0
    %v1904 = vpop.f32.mrb[0].mxu0
    %1905 = vdwg.mxu0
    %v1906 = vadd.f32 %v1851, %v1900
    %v1907 = vxor.u32 %v1906, 2147483648
    %v1908 = vmul.f32 %v1907, 1.442695
    %v1909 = vpow.pop %v1908
    %v1910 = vadd.f32 %v1909, 1.0
    %v1911 = vrcp.pop %v1910
    %v1912 = vmul.f32 1.0, %v1911
    %v1913 = vtanh.pop %v1906
    %v1914 = vmul.f32 %v1912, %v1732
    %1916 = vrot.lane.b32.xlu0 %v1913, 32
    %v1917 = vpop.permute.xlu0 %1916
    %v1919 = vmul.f32 %v1912, %v1917
    %1921 = vrot.lane.b32.xlu0 %v1919, 32
    %v1922 = vpop.permute.xlu0 %1921
    %v1924 = vadd.f32 %v1914, %v1922
    %v1925 = vtanh.pop %v1924
    %1927 = vrot.lane.b32.xlu0 %v1925, 32
    %v1928 = vpop.permute.xlu0 %1927
    %v1930 = vmul.f32 %v1912, %v1928
    %v1931 = vpack.c.bf16 %v1930, %v1930
    %1933 = vrot.lane.b32.xlu0 %v1931, 64
    %v1934 = vpop.permute.xlu0 %1933
    %v1936 = vsel %vm480, %v1934, 0
    %1938 = vmatprep.subr.bf16.mxu0 0
    %1939 = vmatpush1.bf16.msra.mxu0 %v476
    %1940 = vmatprep.subr.bf16.mxu0 0
    %1941 = vmatpush1.bf16.msra.mxu0 %v477
    %1942 = vmatprep.subr.bf16.mxu0 0
    %1943 = vmatpush1.bf16.msra.mxu0 0
    %1944 = vmatprep.subr.bf16.mxu0 0
    %1945 = vmatpush1.bf16.msra.mxu0 0
    %1946 = vmatprep.subr.bf16.mxu0 0
    %1947 = vmatpush1.bf16.msra.mxu0 0
    %1948 = vmatprep.subr.bf16.mxu0 0
    %1949 = vmatpush1.bf16.msra.mxu0 0
    %1950 = vmatprep.subr.bf16.mxu0 0
    %1951 = vmatpush1.bf16.msra.mxu0 0
    %1952 = vmatprep.subr.bf16.mxu0 0
    %1953 = vmatpush1.bf16.msra.mxu0 0
    %1954 = vmatprep.subr.bf16.mxu0 0
    %1955 = vmatpush1.bf16.msra.mxu0 0
    %1956 = vmatprep.subr.bf16.mxu0 0
    %1957 = vmatpush1.bf16.msra.mxu0 0
    %1958 = vmatprep.subr.bf16.mxu0 0
    %1959 = vmatpush1.bf16.msra.mxu0 0
    %1960 = vmatprep.subr.bf16.mxu0 0
    %1961 = vmatpush1.bf16.msra.mxu0 0
    %1962 = vmatprep.subr.bf16.mxu0 0
    %1963 = vmatpush1.bf16.msra.mxu0 0
    %1964 = vmatprep.subr.bf16.mxu0 0
    %1965 = vmatpush1.bf16.msra.mxu0 0
    %1966 = vmatprep.subr.bf16.mxu0 0
    %1967 = vmatpush1.bf16.msra.mxu0 0
    %1968 = vmatprep.subr.bf16.mxu0 0
    %1969 = vmatpush1.bf16.msra.mxu0 0
    %1970 = vmatprep.mubr.bf16.mxu0 0
    %1971 = vmatmul.mubr.bf16.gmra.mrb[0].mxu0 %v1936
    %v1972 = vpop.f32.mrb[0].mxu0
    %v1973 = vadd.f32 %v1902, %v1972
    %v1974 = vpop.f32.mrb[0].mxu0
    %v1975 = vpop.f32.mrb[0].mxu0
    %v1976 = vpop.f32.mrb[0].mxu0
    %1977 = vdwg.mxu0
    %v1978 = vadd.f32 %v1973, %v75
    %v1979 = vxor.u32 %v1978, 2147483648
    %v1980 = vmul.f32 %v1979, 1.442695
    %v1981 = vpow.pop %v1980
    %v1982 = vadd.f32 %v1981, 1.0
    %v1983 = vrcp.pop %v1982
    %v1984 = vmul.f32 1.0, %v1983
    %v1985 = vtanh.pop %v1978
    %v1986 = vmul.f32 %v1984, %v1804
    %1988 = vrot.lane.b32.xlu0 %v1985, 32
    %v1989 = vpop.permute.xlu0 %1988
    %v1991 = vmul.f32 %v1984, %v1989
    %1993 = vrot.lane.b32.xlu0 %v1991, 32
    %v1994 = vpop.permute.xlu0 %1993
    %v1996 = vadd.f32 %v1986, %v1994
    %v1997 = vtanh.pop %v1996
    %1999 = vrot.lane.b32.xlu0 %v1997, 32
    %v2000 = vpop.permute.xlu0 %1999
    %v2002 = vmul.f32 %v1984, %v2000
    %v2003 = vmax.f32 %v2002, 0.0
    %v2004 = vmul.f32 %v2003, %v1615
    %2006 = vrot.lane.b32.xlu0 %v2004, 64
    %v2007 = vpop.permute.xlu0 %2006
    %v2009 = vsel %vm480, %v2007, 0.0
    %2010 = vadd.xlane.f32.xlu0 %v2009
    %v2011 = vpop.xlane.xlu0 %2010
    %v2012 = vadd.f32 %v2011, %v94
    %v2013 = vmul.f32 %v2003, %v1627
    %2015 = vrot.lane.b32.xlu0 %v2013, 64
    %v2016 = vpop.permute.xlu0 %2015
    %v2018 = vsel %vm480, %v2016, 0.0
    %2019 = vadd.xlane.f32.xlu0 %v2018
    %v2020 = vpop.xlane.xlu0 %2019
    %v2021 = vadd.f32 %v2020, %v101
    %v2022 = vmax.f32 %v2021, 0.0
    %v2023 = vand.u32 2147483647, %v2021
    %v2024 = vsub.f32 0.0, %v2023
    %v2025 = vmul.f32 %v2024, 1.442695
    %v2026 = vpow.pop %v2025
    %v2027 = vadd.f32 %v2026, 1.0
    %v2028 = vlog2.pop %v2027
    %v2029 = vmul.f32 %v2028, 0.6931472
    %v2030 = vadd.f32 %v2022, %v2029
    %v2031 = vadd.f32 %v2030, 1e-06
    %2032 = vrot.lane.b32.xlu0 %v112, 127
    %v2033 = vpop.permute.xlu0 %2032
    %v2035 = vmul.f32 %v2031, %v2033
    %v2036 = vadd.f32 %v2012, %v2035
    %2038 = vset.pattern.permute.xlu0 0
    %2039 = vperm.xlu0 %2038, %v2036
    %v2040 = vpop.permute.xlu0 %2039
    %v2042 = vmul.f32 %v2040, %v68
    %v2043 = vadd.f32 %v351, %v2042
    %2045 = vrot.lane.b32.xlu0 %v1930, 64
    %v2046 = vpop.permute.xlu0 %2045
    %2049 = vrot.lane.b32.xlu0 %v2002, 96
    %v2050 = vpop.permute.xlu0 %2049
    %v2052 = vsel %vm480, %v2046, %v2050
    %v2053 = vpack.c.bf16 %v2052, %v2052
    %v2055 = vsel %vm394, %v2053, 0
    %2057 = vmatprep.subr.bf16.mxu0 %v379
    %2058 = vmatpush1.bf16.msra.mxu0 %v378
    %2059 = vmatprep.subr.bf16.mxu0 %v381
    %2060 = vmatpush1.bf16.msra.mxu0 %v380
    %2061 = vmatprep.subr.bf16.mxu0 %v383
    %2062 = vmatpush1.bf16.msra.mxu0 %v382
    %2063 = vmatprep.subr.bf16.mxu0 %v385
    %2064 = vmatpush1.bf16.msra.mxu0 %v384
    %2065 = vmatprep.subr.bf16.mxu0 0
    %2066 = vmatpush1.bf16.msra.mxu0 0
    %2067 = vmatprep.subr.bf16.mxu0 0
    %2068 = vmatpush1.bf16.msra.mxu0 0
    %2069 = vmatprep.subr.bf16.mxu0 0
    %2070 = vmatpush1.bf16.msra.mxu0 0
    %2071 = vmatprep.subr.bf16.mxu0 0
    %2072 = vmatpush1.bf16.msra.mxu0 0
    %2073 = vmatprep.subr.bf16.mxu0 0
    %2074 = vmatpush1.bf16.msra.mxu0 0
    %2075 = vmatprep.subr.bf16.mxu0 0
    %2076 = vmatpush1.bf16.msra.mxu0 0
    %2077 = vmatprep.subr.bf16.mxu0 0
    %2078 = vmatpush1.bf16.msra.mxu0 0
    %2079 = vmatprep.subr.bf16.mxu0 0
    %2080 = vmatpush1.bf16.msra.mxu0 0
    %2081 = vmatprep.subr.bf16.mxu0 0
    %2082 = vmatpush1.bf16.msra.mxu0 0
    %2083 = vmatprep.subr.bf16.mxu0 0
    %2084 = vmatpush1.bf16.msra.mxu0 0
    %2085 = vmatprep.subr.bf16.mxu0 0
    %2086 = vmatpush1.bf16.msra.mxu0 0
    %2087 = vmatprep.subr.bf16.mxu0 0
    %2088 = vmatpush1.bf16.msra.mxu0 0
    %2089 = vmatprep.mubr.bf16.mxu0 0
    %2090 = vmatmul.mubr.bf16.gmra.mrb[0].mxu0 %v2055
    %v2091 = vpop.f32.mrb[0].mxu0
    %v2092 = vadd.f32 0.0, %v2091
    %v2093 = vpop.f32.mrb[0].mxu0
    %v2094 = vadd.f32 0.0, %v2093
    %v2095 = vpop.f32.mrb[0].mxu0
    %v2096 = vpop.f32.mrb[0].mxu0
    %2097 = vdwg.mxu0
    %v2098 = vadd.f32 %v2043, %v2092
    %v2099 = vxor.u32 %v2098, 2147483648
    %v2100 = vmul.f32 %v2099, 1.442695
    %v2101 = vpow.pop %v2100
    %v2102 = vadd.f32 %v2101, 1.0
    %v2103 = vrcp.pop %v2102
    %v2104 = vmul.f32 1.0, %v2103
    %v2105 = vtanh.pop %v2098
    %v2106 = vmul.f32 %v2104, %v1924
    %2108 = vrot.lane.b32.xlu0 %v2105, 32
    %v2109 = vpop.permute.xlu0 %2108
    %v2111 = vmul.f32 %v2104, %v2109
    %2113 = vrot.lane.b32.xlu0 %v2111, 32
    %v2114 = vpop.permute.xlu0 %2113
    %v2116 = vadd.f32 %v2106, %v2114
    %v2117 = vtanh.pop %v2116
    %2119 = vrot.lane.b32.xlu0 %v2117, 32
    %v2120 = vpop.permute.xlu0 %2119
    %v2122 = vmul.f32 %v2104, %v2120
    %v2123 = vpack.c.bf16 %v2122, %v2122
    %2125 = vrot.lane.b32.xlu0 %v2123, 64
    %v2126 = vpop.permute.xlu0 %2125
    %v2128 = vsel %vm480, %v2126, 0
    %2130 = vmatprep.subr.bf16.mxu0 0
    %2131 = vmatpush1.bf16.msra.mxu0 %v476
    %2132 = vmatprep.subr.bf16.mxu0 0
    %2133 = vmatpush1.bf16.msra.mxu0 %v477
    %2134 = vmatprep.subr.bf16.mxu0 0
    %2135 = vmatpush1.bf16.msra.mxu0 0
    %2136 = vmatprep.subr.bf16.mxu0 0
    %2137 = vmatpush1.bf16.msra.mxu0 0
    %2138 = vmatprep.subr.bf16.mxu0 0
    %2139 = vmatpush1.bf16.msra.mxu0 0
    %2140 = vmatprep.subr.bf16.mxu0 0
    %2141 = vmatpush1.bf16.msra.mxu0 0
    %2142 = vmatprep.subr.bf16.mxu0 0
    %2143 = vmatpush1.bf16.msra.mxu0 0
    %2144 = vmatprep.subr.bf16.mxu0 0
    %2145 = vmatpush1.bf16.msra.mxu0 0
    %2146 = vmatprep.subr.bf16.mxu0 0
    %2147 = vmatpush1.bf16.msra.mxu0 0
    %2148 = vmatprep.subr.bf16.mxu0 0
    %2149 = vmatpush1.bf16.msra.mxu0 0
    %2150 = vmatprep.subr.bf16.mxu0 0
    %2151 = vmatpush1.bf16.msra.mxu0 0
    %2152 = vmatprep.subr.bf16.mxu0 0
    %2153 = vmatpush1.bf16.msra.mxu0 0
    %2154 = vmatprep.subr.bf16.mxu0 0
    %2155 = vmatpush1.bf16.msra.mxu0 0
    %2156 = vmatprep.subr.bf16.mxu0 0
    %2157 = vmatpush1.bf16.msra.mxu0 0
    %2158 = vmatprep.subr.bf16.mxu0 0
    %2159 = vmatpush1.bf16.msra.mxu0 0
    %2160 = vmatprep.subr.bf16.mxu0 0
    %2161 = vmatpush1.bf16.msra.mxu0 0
    %2162 = vmatprep.mubr.bf16.mxu0 0
    %2163 = vmatmul.mubr.bf16.gmra.mrb[0].mxu0 %v2128
    %v2164 = vpop.f32.mrb[0].mxu0
    %v2165 = vadd.f32 %v2094, %v2164
    %v2166 = vpop.f32.mrb[0].mxu0
    %v2167 = vpop.f32.mrb[0].mxu0
    %v2168 = vpop.f32.mrb[0].mxu0
    %2169 = vdwg.mxu0
    %v2170 = vadd.f32 %v2165, %v75
    %v2171 = vxor.u32 %v2170, 2147483648
    %v2172 = vmul.f32 %v2171, 1.442695
    %v2173 = vpow.pop %v2172
    %v2174 = vadd.f32 %v2173, 1.0
    %v2175 = vrcp.pop %v2174
    %v2176 = vmul.f32 1.0, %v2175
    %v2177 = vtanh.pop %v2170
    %v2178 = vmul.f32 %v2176, %v1996
    %2180 = vrot.lane.b32.xlu0 %v2177, 32
    %v2181 = vpop.permute.xlu0 %2180
    %v2183 = vmul.f32 %v2176, %v2181
    %2185 = vrot.lane.b32.xlu0 %v2183, 32
    %v2186 = vpop.permute.xlu0 %2185
    %v2188 = vadd.f32 %v2178, %v2186
    %v2189 = vtanh.pop %v2188
    %2191 = vrot.lane.b32.xlu0 %v2189, 32
    %v2192 = vpop.permute.xlu0 %2191
    %v2194 = vmul.f32 %v2176, %v2192
    %v2195 = vmax.f32 %v2194, 0.0
    %v2196 = vmul.f32 %v2195, %v1615
    %2198 = vrot.lane.b32.xlu0 %v2196, 64
    %v2199 = vpop.permute.xlu0 %2198
    %v2201 = vsel %vm480, %v2199, 0.0
    %2202 = vadd.xlane.f32.xlu0 %v2201
    %v2203 = vpop.xlane.xlu0 %2202
    %v2204 = vadd.f32 %v2203, %v94
    %v2205 = vmul.f32 %v2195, %v1627
    %2207 = vrot.lane.b32.xlu0 %v2205, 64
    %v2208 = vpop.permute.xlu0 %2207
    %v2210 = vsel %vm480, %v2208, 0.0
    %2211 = vadd.xlane.f32.xlu0 %v2210
    %v2212 = vpop.xlane.xlu0 %2211
    %v2213 = vadd.f32 %v2212, %v101
    %v2214 = vmax.f32 %v2213, 0.0
    %v2215 = vand.u32 2147483647, %v2213
    %v2216 = vsub.f32 0.0, %v2215
    %v2217 = vmul.f32 %v2216, 1.442695
    %v2218 = vpow.pop %v2217
    %v2219 = vadd.f32 %v2218, 1.0
    %v2220 = vlog2.pop %v2219
    %v2221 = vmul.f32 %v2220, 0.6931472
    %v2222 = vadd.f32 %v2214, %v2221
    %v2223 = vadd.f32 %v2222, 1e-06
    %2224 = vrot.lane.b32.xlu0 %v113, 127
    %v2225 = vpop.permute.xlu0 %2224
    %v2227 = vmul.f32 %v2223, %v2225
    %v2228 = vadd.f32 %v2204, %v2227
    %2230 = vset.pattern.permute.xlu0 0
    %2231 = vperm.xlu0 %2230, %v2228
    %v2232 = vpop.permute.xlu0 %2231
    %v2234 = vmul.f32 %v2232, %v68
    %v2235 = vadd.f32 %v352, %v2234
    %2237 = vrot.lane.b32.xlu0 %v2122, 64
    %v2238 = vpop.permute.xlu0 %2237
    %2241 = vrot.lane.b32.xlu0 %v2194, 96
    %v2242 = vpop.permute.xlu0 %2241
    %v2244 = vsel %vm480, %v2238, %v2242
    %v2245 = vpack.c.bf16 %v2244, %v2244
    %v2247 = vsel %vm394, %v2245, 0
    %2249 = vmatprep.subr.bf16.mxu0 %v379
    %2250 = vmatpush1.bf16.msra.mxu0 %v378
    %2251 = vmatprep.subr.bf16.mxu0 %v381
    %2252 = vmatpush1.bf16.msra.mxu0 %v380
    %2253 = vmatprep.subr.bf16.mxu0 %v383
    %2254 = vmatpush1.bf16.msra.mxu0 %v382
    %2255 = vmatprep.subr.bf16.mxu0 %v385
    %2256 = vmatpush1.bf16.msra.mxu0 %v384
    %2257 = vmatprep.subr.bf16.mxu0 0
    %2258 = vmatpush1.bf16.msra.mxu0 0
    %2259 = vmatprep.subr.bf16.mxu0 0
    %2260 = vmatpush1.bf16.msra.mxu0 0
    %2261 = vmatprep.subr.bf16.mxu0 0
    %2262 = vmatpush1.bf16.msra.mxu0 0
    %2263 = vmatprep.subr.bf16.mxu0 0
    %2264 = vmatpush1.bf16.msra.mxu0 0
    %2265 = vmatprep.subr.bf16.mxu0 0
    %2266 = vmatpush1.bf16.msra.mxu0 0
    %2267 = vmatprep.subr.bf16.mxu0 0
    %2268 = vmatpush1.bf16.msra.mxu0 0
    %2269 = vmatprep.subr.bf16.mxu0 0
    %2270 = vmatpush1.bf16.msra.mxu0 0
    %2271 = vmatprep.subr.bf16.mxu0 0
    %2272 = vmatpush1.bf16.msra.mxu0 0
    %2273 = vmatprep.subr.bf16.mxu0 0
    %2274 = vmatpush1.bf16.msra.mxu0 0
    %2275 = vmatprep.subr.bf16.mxu0 0
    %2276 = vmatpush1.bf16.msra.mxu0 0
    %2277 = vmatprep.subr.bf16.mxu0 0
    %2278 = vmatpush1.bf16.msra.mxu0 0
    %2279 = vmatprep.subr.bf16.mxu0 0
    %2280 = vmatpush1.bf16.msra.mxu0 0
    %2281 = vmatprep.mubr.bf16.mxu0 0
    %2282 = vmatmul.mubr.bf16.gmra.mrb[0].mxu0 %v2247
    %v2283 = vpop.f32.mrb[0].mxu0
    %v2284 = vadd.f32 0.0, %v2283
    %v2285 = vpop.f32.mrb[0].mxu0
    %v2286 = vadd.f32 0.0, %v2285
    %v2287 = vpop.f32.mrb[0].mxu0
    %v2288 = vpop.f32.mrb[0].mxu0
    %2289 = vdwg.mxu0
    %v2290 = vadd.f32 %v2235, %v2284
    %v2291 = vxor.u32 %v2290, 2147483648
    %v2292 = vmul.f32 %v2291, 1.442695
    %v2293 = vpow.pop %v2292
    %v2294 = vadd.f32 %v2293, 1.0
    %v2295 = vrcp.pop %v2294
    %v2296 = vmul.f32 1.0, %v2295
    %v2297 = vtanh.pop %v2290
    %v2298 = vmul.f32 %v2296, %v2116
    %2300 = vrot.lane.b32.xlu0 %v2297, 32
    %v2301 = vpop.permute.xlu0 %2300
    %v2303 = vmul.f32 %v2296, %v2301
    %2305 = vrot.lane.b32.xlu0 %v2303, 32
    %v2306 = vpop.permute.xlu0 %2305
    %v2308 = vadd.f32 %v2298, %v2306
    %v2309 = vtanh.pop %v2308
    %2311 = vrot.lane.b32.xlu0 %v2309, 32
    %v2312 = vpop.permute.xlu0 %2311
    %v2314 = vmul.f32 %v2296, %v2312
    %v2315 = vpack.c.bf16 %v2314, %v2314
    %2317 = vrot.lane.b32.xlu0 %v2315, 64
    %v2318 = vpop.permute.xlu0 %2317
    %v2320 = vsel %vm480, %v2318, 0
    %2322 = vmatprep.subr.bf16.mxu0 0
    %2323 = vmatpush1.bf16.msra.mxu0 %v476
    %2324 = vmatprep.subr.bf16.mxu0 0
    %2325 = vmatpush1.bf16.msra.mxu0 %v477
    %2326 = vmatprep.subr.bf16.mxu0 0
    %2327 = vmatpush1.bf16.msra.mxu0 0
    %2328 = vmatprep.subr.bf16.mxu0 0
    %2329 = vmatpush1.bf16.msra.mxu0 0
    %2330 = vmatprep.subr.bf16.mxu0 0
    %2331 = vmatpush1.bf16.msra.mxu0 0
    %2332 = vmatprep.subr.bf16.mxu0 0
    %2333 = vmatpush1.bf16.msra.mxu0 0
    %2334 = vmatprep.subr.bf16.mxu0 0
    %2335 = vmatpush1.bf16.msra.mxu0 0
    %2336 = vmatprep.subr.bf16.mxu0 0
    %2337 = vmatpush1.bf16.msra.mxu0 0
    %2338 = vmatprep.subr.bf16.mxu0 0
    %2339 = vmatpush1.bf16.msra.mxu0 0
    %2340 = vmatprep.subr.bf16.mxu0 0
    %2341 = vmatpush1.bf16.msra.mxu0 0
    %2342 = vmatprep.subr.bf16.mxu0 0
    %2343 = vmatpush1.bf16.msra.mxu0 0
    %2344 = vmatprep.subr.bf16.mxu0 0
    %2345 = vmatpush1.bf16.msra.mxu0 0
    %2346 = vmatprep.subr.bf16.mxu0 0
    %2347 = vmatpush1.bf16.msra.mxu0 0
    %2348 = vmatprep.subr.bf16.mxu0 0
    %2349 = vmatpush1.bf16.msra.mxu0 0
    %2350 = vmatprep.subr.bf16.mxu0 0
    %2351 = vmatpush1.bf16.msra.mxu0 0
    %2352 = vmatprep.subr.bf16.mxu0 0
    %2353 = vmatpush1.bf16.msra.mxu0 0
    %2354 = vmatprep.mubr.bf16.mxu0 0
    %2355 = vmatmul.mubr.bf16.gmra.mrb[0].mxu0 %v2320
    %v2356 = vpop.f32.mrb[0].mxu0
    %v2357 = vadd.f32 %v2286, %v2356
    %v2358 = vpop.f32.mrb[0].mxu0
    %v2359 = vpop.f32.mrb[0].mxu0
    %v2360 = vpop.f32.mrb[0].mxu0
    %2361 = vdwg.mxu0
    %v2362 = vadd.f32 %v2357, %v75
    %v2363 = vxor.u32 %v2362, 2147483648
    %v2364 = vmul.f32 %v2363, 1.442695
    %v2365 = vpow.pop %v2364
    %v2366 = vadd.f32 %v2365, 1.0
    %v2367 = vrcp.pop %v2366
    %v2368 = vmul.f32 1.0, %v2367
    %v2369 = vtanh.pop %v2362
    %v2370 = vmul.f32 %v2368, %v2188
    %2372 = vrot.lane.b32.xlu0 %v2369, 32
    %v2373 = vpop.permute.xlu0 %2372
    %v2375 = vmul.f32 %v2368, %v2373
    %2377 = vrot.lane.b32.xlu0 %v2375, 32
    %v2378 = vpop.permute.xlu0 %2377
    %v2380 = vadd.f32 %v2370, %v2378
    %v2381 = vtanh.pop %v2380
    %2383 = vrot.lane.b32.xlu0 %v2381, 32
    %v2384 = vpop.permute.xlu0 %2383
    %v2386 = vmul.f32 %v2368, %v2384
    %v2387 = vmax.f32 %v2386, 0.0
    %v2388 = vmul.f32 %v2387, %v1615
    %2390 = vrot.lane.b32.xlu0 %v2388, 64
    %v2391 = vpop.permute.xlu0 %2390
    %v2393 = vsel %vm480, %v2391, 0.0
    %2394 = vadd.xlane.f32.xlu0 %v2393
    %v2395 = vpop.xlane.xlu0 %2394
    %v2396 = vadd.f32 %v2395, %v94
    %v2397 = vmul.f32 %v2387, %v1627
    %2399 = vrot.lane.b32.xlu0 %v2397, 64
    %v2400 = vpop.permute.xlu0 %2399
    %v2402 = vsel %vm480, %v2400, 0.0
    %2403 = vadd.xlane.f32.xlu0 %v2402
    %v2404 = vpop.xlane.xlu0 %2403
    %v2405 = vadd.f32 %v2404, %v101
    %v2406 = vmax.f32 %v2405, 0.0
    %v2407 = vand.u32 2147483647, %v2405
    %v2408 = vsub.f32 0.0, %v2407
    %v2409 = vmul.f32 %v2408, 1.442695
    %v2410 = vpow.pop %v2409
    %v2411 = vadd.f32 %v2410, 1.0
    %v2412 = vlog2.pop %v2411
    %v2413 = vmul.f32 %v2412, 0.6931472
    %v2414 = vadd.f32 %v2406, %v2413
    %v2415 = vadd.f32 %v2414, 1e-06
    %v2416 = vmul.f32 %v549, %v1615
    %v2417 = vmul.f32 %v701, %v1615
    %v2418 = vmul.f32 %v853, %v1615
    %v2419 = vmul.f32 %v1005, %v1615
    %v2420 = vmul.f32 %v1157, %v1615
    %v2421 = vmul.f32 %v1309, %v1615
    %v2422 = vmul.f32 %v1461, %v1615
    %2430 = vrot.lane.b32.xlu0 %v2416, 64
    %v2431 = vpop.permute.xlu0 %2430
    %2432 = vrot.lane.b32.xlu0 %v2417, 64
    %v2433 = vpop.permute.xlu0 %2432
    %2434 = vrot.lane.b32.xlu0 %v2418, 64
    %v2435 = vpop.permute.xlu0 %2434
    %2436 = vrot.lane.b32.xlu0 %v2419, 64
    %v2437 = vpop.permute.xlu0 %2436
    %2438 = vrot.lane.b32.xlu0 %v2420, 64
    %v2439 = vpop.permute.xlu0 %2438
    %2440 = vrot.lane.b32.xlu0 %v2421, 64
    %v2441 = vpop.permute.xlu0 %2440
    %2442 = vrot.lane.b32.xlu0 %v2422, 64
    %v2443 = vpop.permute.xlu0 %2442
    %v2451 = vsel %vm480, %v2431, 0.0
    %2452 = vadd.xlane.f32.xlu0 %v2451
    %v2453 = vpop.xlane.xlu0 %2452
    %v2454 = vsel %vm480, %v2433, 0.0
    %2455 = vadd.xlane.f32.xlu0 %v2454
    %v2456 = vpop.xlane.xlu0 %2455
    %v2457 = vsel %vm480, %v2435, 0.0
    %2458 = vadd.xlane.f32.xlu0 %v2457
    %v2459 = vpop.xlane.xlu0 %2458
    %v2460 = vsel %vm480, %v2437, 0.0
    %2461 = vadd.xlane.f32.xlu0 %v2460
    %v2462 = vpop.xlane.xlu0 %2461
    %v2463 = vsel %vm480, %v2439, 0.0
    %2464 = vadd.xlane.f32.xlu0 %v2463
    %v2465 = vpop.xlane.xlu0 %2464
    %v2466 = vsel %vm480, %v2441, 0.0
    %2467 = vadd.xlane.f32.xlu0 %v2466
    %v2468 = vpop.xlane.xlu0 %2467
    %v2469 = vsel %vm480, %v2443, 0.0
    %2470 = vadd.xlane.f32.xlu0 %v2469
    %v2471 = vpop.xlane.xlu0 %2470
    %v2472 = vadd.f32 %v2453, %v94
    %v2473 = vadd.f32 %v2456, %v94
    %v2474 = vadd.f32 %v2459, %v94
    %v2475 = vadd.f32 %v2462, %v94
    %v2476 = vadd.f32 %v2465, %v94
    %v2477 = vadd.f32 %v2468, %v94
    %v2478 = vadd.f32 %v2471, %v94
    %v2479 = vmul.f32 %v549, %v1627
    %v2480 = vmul.f32 %v701, %v1627
    %v2481 = vmul.f32 %v853, %v1627
    %v2482 = vmul.f32 %v1005, %v1627
    %v2483 = vmul.f32 %v1157, %v1627
    %v2484 = vmul.f32 %v1309, %v1627
    %v2485 = vmul.f32 %v1461, %v1627
    %2493 = vrot.lane.b32.xlu0 %v2479, 64
    %v2494 = vpop.permute.xlu0 %2493
    %2495 = vrot.lane.b32.xlu0 %v2480, 64
    %v2496 = vpop.permute.xlu0 %2495
    %2497 = vrot.lane.b32.xlu0 %v2481, 64
    %v2498 = vpop.permute.xlu0 %2497
    %2499 = vrot.lane.b32.xlu0 %v2482, 64
    %v2500 = vpop.permute.xlu0 %2499
    %2501 = vrot.lane.b32.xlu0 %v2483, 64
    %v2502 = vpop.permute.xlu0 %2501
    %2503 = vrot.lane.b32.xlu0 %v2484, 64
    %v2504 = vpop.permute.xlu0 %2503
    %2505 = vrot.lane.b32.xlu0 %v2485, 64
    %v2506 = vpop.permute.xlu0 %2505
    %v2514 = vsel %vm480, %v2494, 0.0
    %2515 = vadd.xlane.f32.xlu0 %v2514
    %v2516 = vpop.xlane.xlu0 %2515
    %v2517 = vsel %vm480, %v2496, 0.0
    %2518 = vadd.xlane.f32.xlu0 %v2517
    %v2519 = vpop.xlane.xlu0 %2518
    %v2520 = vsel %vm480, %v2498, 0.0
    %2521 = vadd.xlane.f32.xlu0 %v2520
    %v2522 = vpop.xlane.xlu0 %2521
    %v2523 = vsel %vm480, %v2500, 0.0
    %2524 = vadd.xlane.f32.xlu0 %v2523
    %v2525 = vpop.xlane.xlu0 %2524
    %v2526 = vsel %vm480, %v2502, 0.0
    %2527 = vadd.xlane.f32.xlu0 %v2526
    %v2528 = vpop.xlane.xlu0 %2527
    %v2529 = vsel %vm480, %v2504, 0.0
    %2530 = vadd.xlane.f32.xlu0 %v2529
    %v2531 = vpop.xlane.xlu0 %2530
    %v2532 = vsel %vm480, %v2506, 0.0
    %2533 = vadd.xlane.f32.xlu0 %v2532
    %v2534 = vpop.xlane.xlu0 %2533
    %v2535 = vadd.f32 %v2516, %v101
    %v2536 = vadd.f32 %v2519, %v101
    %v2537 = vadd.f32 %v2522, %v101
    %v2538 = vadd.f32 %v2525, %v101
    %v2539 = vadd.f32 %v2528, %v101
    %v2540 = vadd.f32 %v2531, %v101
    %v2541 = vadd.f32 %v2534, %v101
    %v2542 = vmax.f32 %v2535, 0.0
    %v2543 = vmax.f32 %v2536, 0.0
    %v2544 = vmax.f32 %v2537, 0.0
    %v2545 = vmax.f32 %v2538, 0.0
    %v2546 = vmax.f32 %v2539, 0.0
    %v2547 = vmax.f32 %v2540, 0.0
    %v2548 = vmax.f32 %v2541, 0.0
    %v2549 = vand.u32 2147483647, %v2535
    %v2550 = vand.u32 2147483647, %v2536
    %v2551 = vand.u32 2147483647, %v2537
    %v2552 = vand.u32 2147483647, %v2538
    %v2553 = vand.u32 2147483647, %v2539
    %v2554 = vand.u32 2147483647, %v2540
    %v2555 = vand.u32 2147483647, %v2541
    %v2556 = vsub.f32 0.0, %v2549
    %v2557 = vsub.f32 0.0, %v2550
    %v2558 = vsub.f32 0.0, %v2551
    %v2559 = vsub.f32 0.0, %v2552
    %v2560 = vsub.f32 0.0, %v2553
    %v2561 = vsub.f32 0.0, %v2554
    %v2562 = vsub.f32 0.0, %v2555
    %v2563 = vmul.f32 %v2556, 1.442695
    %v2564 = vpow.pop %v2563
    %v2565 = vmul.f32 %v2557, 1.442695
    %v2566 = vpow.pop %v2565
    %v2567 = vmul.f32 %v2558, 1.442695
    %v2568 = vpow.pop %v2567
    %v2569 = vmul.f32 %v2559, 1.442695
    %v2570 = vpow.pop %v2569
    %v2571 = vmul.f32 %v2560, 1.442695
    %v2572 = vpow.pop %v2571
    %v2573 = vmul.f32 %v2561, 1.442695
    %v2574 = vpow.pop %v2573
    %v2575 = vmul.f32 %v2562, 1.442695
    %v2576 = vpow.pop %v2575
    %v2577 = vadd.f32 %v2564, 1.0
    %v2578 = vadd.f32 %v2566, 1.0
    %v2579 = vadd.f32 %v2568, 1.0
    %v2580 = vadd.f32 %v2570, 1.0
    %v2581 = vadd.f32 %v2572, 1.0
    %v2582 = vadd.f32 %v2574, 1.0
    %v2583 = vadd.f32 %v2576, 1.0
    %v2584 = vlog2.pop %v2577
    %v2585 = vmul.f32 %v2584, 0.6931472
    %v2586 = vlog2.pop %v2578
    %v2587 = vmul.f32 %v2586, 0.6931472
    %v2588 = vlog2.pop %v2579
    %v2589 = vmul.f32 %v2588, 0.6931472
    %v2590 = vlog2.pop %v2580
    %v2591 = vmul.f32 %v2590, 0.6931472
    %v2592 = vlog2.pop %v2581
    %v2593 = vmul.f32 %v2592, 0.6931472
    %v2594 = vlog2.pop %v2582
    %v2595 = vmul.f32 %v2594, 0.6931472
    %v2596 = vlog2.pop %v2583
    %v2597 = vmul.f32 %v2596, 0.6931472
    %v2598 = vadd.f32 %v2542, %v2585
    %v2599 = vadd.f32 %v2543, %v2587
    %v2600 = vadd.f32 %v2544, %v2589
    %v2601 = vadd.f32 %v2545, %v2591
    %v2602 = vadd.f32 %v2546, %v2593
    %v2603 = vadd.f32 %v2547, %v2595
    %v2604 = vadd.f32 %v2548, %v2597
    %v2605 = vadd.f32 %v2598, 1e-06
    %v2606 = vadd.f32 %v2599, 1e-06
    %v2607 = vadd.f32 %v2600, 1e-06
    %v2608 = vadd.f32 %v2601, 1e-06
    %v2609 = vadd.f32 %v2602, 1e-06
    %v2610 = vadd.f32 %v2603, 1e-06
    %v2611 = vadd.f32 %v2604, 1e-06
    %2613 = vrot.lane.b32.xlu0 %v2473, 1
    %v2614 = vpop.permute.xlu0 %2613
    %2617 = vrot.lane.b32.xlu0 %v2474, 2
    %v2618 = vpop.permute.xlu0 %2617
    %2621 = vrot.lane.b32.xlu0 %v2475, 3
    %v2622 = vpop.permute.xlu0 %2621
    %2625 = vrot.lane.b32.xlu0 %v2476, 4
    %v2626 = vpop.permute.xlu0 %2625
    %2629 = vrot.lane.b32.xlu0 %v2477, 5
    %v2630 = vpop.permute.xlu0 %2629
    %2633 = vrot.lane.b32.xlu0 %v2478, 6
    %v2634 = vpop.permute.xlu0 %2633
    %2637 = vrot.lane.b32.xlu0 %v1625, 7
    %v2638 = vpop.permute.xlu0 %2637
    %2641 = vrot.lane.b32.xlu0 %v1820, 8
    %v2642 = vpop.permute.xlu0 %2641
    %2645 = vrot.lane.b32.xlu0 %v2012, 9
    %v2646 = vpop.permute.xlu0 %2645
    %2649 = vrot.lane.b32.xlu0 %v2204, 10
    %v2650 = vpop.permute.xlu0 %2649
    %2653 = vrot.lane.b32.xlu0 %v2396, 11
    %v2654 = vpop.permute.xlu0 %2653
    %vm2656 = vcmask 7168
    %v2657 = vsel %vm2656, %v2472, %v2614
    %vm2658 = vcmask 15360
    %v2659 = vsel %vm2658, %v2657, %v2618
    %vm2660 = vcmask 23552
    %v2661 = vsel %vm2660, %v2659, %v2622
    %v2662 = vsel %vm230, %v2661, %v2626
    %vm2663 = vcmask 39936
    %v2664 = vsel %vm2663, %v2662, %v2630
    %vm2665 = vcmask 48128
    %v2666 = vsel %vm2665, %v2664, %v2634
    %vm2667 = vcmask 56320
    %v2668 = vsel %vm2667, %v2666, %v2638
    %vm2669 = vcmask 64512
    %v2670 = vsel %vm2669, %v2668, %v2642
    %vm2671 = vcmask 72704
    %v2672 = vsel %vm2671, %v2670, %v2646
    %vm2673 = vcmask 80896
    %v2674 = vsel %vm2673, %v2672, %v2650
    %vm2675 = vcmask 89088
    %v2676 = vsel %vm2675, %v2674, %v2654
    %vm2677 = vcmask 97280
    %2678 = vst.msk [vmem:[#allocation4] sm:$0xff] %vm2677, %v2676
    %2680 = vrot.lane.b32.xlu0 %v2606, 1
    %v2681 = vpop.permute.xlu0 %2680
    %2684 = vrot.lane.b32.xlu0 %v2607, 2
    %v2685 = vpop.permute.xlu0 %2684
    %2688 = vrot.lane.b32.xlu0 %v2608, 3
    %v2689 = vpop.permute.xlu0 %2688
    %2692 = vrot.lane.b32.xlu0 %v2609, 4
    %v2693 = vpop.permute.xlu0 %2692
    %2696 = vrot.lane.b32.xlu0 %v2610, 5
    %v2697 = vpop.permute.xlu0 %2696
    %2700 = vrot.lane.b32.xlu0 %v2611, 6
    %v2701 = vpop.permute.xlu0 %2700
    %2704 = vrot.lane.b32.xlu0 %v1647, 7
    %v2705 = vpop.permute.xlu0 %2704
    %2708 = vrot.lane.b32.xlu0 %v1839, 8
    %v2709 = vpop.permute.xlu0 %2708
    %2712 = vrot.lane.b32.xlu0 %v2031, 9
    %v2713 = vpop.permute.xlu0 %2712
    %2716 = vrot.lane.b32.xlu0 %v2223, 10
    %v2717 = vpop.permute.xlu0 %2716
    %2720 = vrot.lane.b32.xlu0 %v2415, 11
    %v2721 = vpop.permute.xlu0 %2720
    %v2723 = vsel %vm2656, %v2605, %v2681
    %v2724 = vsel %vm2658, %v2723, %v2685
    %v2725 = vsel %vm2660, %v2724, %v2689
    %v2726 = vsel %vm230, %v2725, %v2693
    %v2727 = vsel %vm2663, %v2726, %v2697
    %v2728 = vsel %vm2665, %v2727, %v2701
    %v2729 = vsel %vm2667, %v2728, %v2705
    %v2730 = vsel %vm2669, %v2729, %v2709
    %v2731 = vsel %vm2671, %v2730, %v2713
    %v2732 = vsel %vm2673, %v2731, %v2717
    %v2733 = vsel %vm2675, %v2732, %v2721
    %2734 = vst.msk [vmem:[#allocation6] sm:$0xff] %vm2677, %v2733
    %2735 = vrot.lane.b32.xlu0 %v1844, 1
    %v2736 = vpop.permute.xlu0 %2735
    %2738 = vrot.lane.b32.xlu0 %v2036, 2
    %v2739 = vpop.permute.xlu0 %2738
    %2741 = vrot.lane.b32.xlu0 %v2228, 3
    %v2742 = vpop.permute.xlu0 %2741
    %v2744 = vsel %vm2656, %v1652, %v2736
    %v2745 = vsel %vm2658, %v2744, %v2739
    %v2746 = vsel %vm2660, %v2745, %v2742
    %2747 = vst.msk [vmem:[%s14] sm:$0xff] %vm230, %v2746
    // Predicated region
    $region50: #{tpu_custom_call.1} parent=1 // pred_check
      _
    $region51: #{tpu_custom_call.1} parent=1 // pred_check_branch
      %2749 = sbr.rel (0) target = $region53
    $region52: #{tpu_custom_call.1} parent=1 // pred_region
      %s2751 = ssub.s32 128, 128
      %2752 = vsyncadd [#allocation5], %s2751
      %s2754 = sshll.u32 [#allocation4], 4
      %s2755 = int_to_ptr.vmem [resolvable:$true] %s2754
      %2757 = dma.vmem_to_hbm [thread:$0]  %s2755, 128, %s12, [#allocation5]
    $region53: #{tpu_custom_call.1} parent=1 // pred_fallthru
      _
    // Predicated region
    $region54: #{tpu_custom_call.1} parent=1 // pred_check
      _
    $region55: #{tpu_custom_call.1} parent=1 // pred_check_branch
      %2759 = sbr.rel (0) target = $region57
    $region56: #{tpu_custom_call.1} parent=1 // pred_region
      %s2761 = ssub.s32 128, 128
      %2762 = vsyncadd [#allocation7], %s2761
      %s2764 = sshll.u32 [#allocation6], 4
      %s2765 = int_to_ptr.vmem [resolvable:$true] %s2764
      %2767 = dma.vmem_to_hbm [thread:$0]  %s2765, 128, %s13, [#allocation7]
    $region57: #{tpu_custom_call.1} parent=1 // pred_fallthru
      _
    // Predicated region
    $region58: #{tpu_custom_call.1} parent=1 // pred_check
      _
    $region59: #{tpu_custom_call.1} parent=1 // pred_check_branch
      %2769 = sbr.rel (0) target = $region61
    $region60: #{tpu_custom_call.1} parent=1 // pred_region
      _
    $region61: #{tpu_custom_call.1} parent=1 // pred_fallthru
      _
    // Predicated region
    $region62: #{tpu_custom_call.1} parent=1 // pred_check
      _
    $region63: #{tpu_custom_call.1} parent=1 // pred_check_branch
      %2771 = sbr.rel (0) target = $region65
    $region64: #{tpu_custom_call.1} parent=1 // pred_region
      %2772 = dma.done [#allocation5], 128
    $region65: #{tpu_custom_call.1} parent=1 // pred_fallthru
      _
    // Predicated region
    $region66: #{tpu_custom_call.1} parent=1 // pred_check
      _
    $region67: #{tpu_custom_call.1} parent=1 // pred_check_branch
      %2774 = sbr.rel (0) target = $region69
    $region68: #{tpu_custom_call.1} parent=1 // pred_region
      %2775 = dma.done [#allocation7], 128
    $region69: #{tpu_custom_call.1} parent=1 // pred_fallthru
      _
    // Predicated region
    $region70: #{tpu_custom_call.1} parent=1 // pred_check
      _
    $region71: #{tpu_custom_call.1} parent=1 // pred_check_branch
      %2777 = sbr.rel (0) target = $region73
    $region72: #{tpu_custom_call.1} parent=1 // pred_region
      _
    $region73: #{tpu_custom_call.1} parent=1 // pred_fallthru
      _
    %2778 = vsyncpa [#allocation5], 1
    %2779 = vsyncpa [#allocation7], 1

</llo_original>
